<compile_context>
chip_gen: v5e
topology: v5e:2x2
jax: 0.10.0
libtpu: 0.0.40
codegen_flags: <defaults>
</compile_context>

<pallas_src>
import jax
import jax.numpy as jnp
from jax.experimental import pallas as pl
from jax.experimental.pallas import tpu as pltpu

KSIZE = 7
PAD = (KSIZE - 1) // 2     # 3
TOP = 8                    # interior row origin in padded scratch (mult of 8)
LEFT = 128                 # interior lane origin in padded scratch (mult of 128)


def _round_up(v, m):
    return (v + m - 1) // m * m


def _largest_divisor_leq(n, cap):
    cap = max(1, min(n, cap))
    for d in range(cap, 0, -1):
        if n % d == 0:
            return d
    return 1


def _make_kernel(b_blk, c_blk, c_sub, H, W):
    R0 = TOP - PAD            # first padded row the conv reads
    C0 = LEFT - PAD           # first padded lane the conv reads
    HC = H + KSIZE - 1        # rows in one column slab

    def kernel(x_ref, w_ref, o_ref, pad_sum, pad_max, colslab):
        # x_ref   : (b_blk, c_blk, H, W) input block
        # w_ref   : (98,) SMEM conv weights, layout [c*49 + di*7 + dj]; the
        #           avg half already carries the 1/C mean scale
        # o_ref   : (b_blk, 1, H, W) output block (written on last channel step)
        # pad_sum/pad_max : (b_blk, Hs, Ws) zero-bordered planes; interior at
        #           [TOP:TOP+H, LEFT:LEFT+W] holds the running channel sum/max
        # colslab : (HC, W) staging scratch, reused per (plane, dj)
        k = pl.program_id(1)

        @pl.when(k == 0)
        def _init():
            pad_sum[...] = jnp.zeros(pad_sum.shape, jnp.float32)
            pad_max[...] = jnp.zeros(pad_max.shape, jnp.float32)
            pad_max[:, TOP:TOP + H, LEFT:LEFT + W] = jnp.full(
                (b_blk, H, W), -jnp.inf, jnp.float32)

        # ---- partial channel reduction for this (batch, channel) block ----
        # Sub-chunked so the live set stays ~ accumulators + one streaming
        # chunk (bounds vreg pressure / spills for large planes).
        cc0 = min(c_sub, c_blk)
        xc = x_ref[:, 0:cc0].astype(jnp.float32)          # (b_blk, cc0, H, W)
        csum = jnp.sum(xc, axis=1)
        cmax = jnp.max(xc, axis=1)
        c0 = cc0
        while c0 < c_blk:                                  # static trip count
            cc = min(c_sub, c_blk - c0)
            xc = x_ref[:, c0:c0 + cc].astype(jnp.float32)
            csum = csum + jnp.sum(xc, axis=1)
            cmax = jnp.maximum(cmax, jnp.max(xc, axis=1))
            c0 += cc

        # single (8,128)-aligned read-modify-write of the interiors per step
        pad_sum[:, TOP:TOP + H, LEFT:LEFT + W] = (
            pad_sum[:, TOP:TOP + H, LEFT:LEFT + W] + csum)
        pad_max[:, TOP:TOP + H, LEFT:LEFT + W] = jnp.maximum(
            pad_max[:, TOP:TOP + H, LEFT:LEFT + W], cmax)

        # ---- last channel step: 7x7 conv (2 planes -> 1 ch) + sigmoid ------
        @pl.when(k == pl.num_programs(1) - 1)
        def _finish():
            for b in range(b_blk):
                acc = jnp.zeros((H, W), jnp.float32)
                for p_idx in range(2):                     # 0: sum, 1: max
                    pad_ref = pad_sum if p_idx == 0 else pad_max
                    wb = p_idx * KSIZE * KSIZE
                    for dj in range(KSIZE):
                        # one lane-shifted slab load + aligned scratch store,
                        colslab[...] = pad_ref[b, R0:R0 + HC,
                                               C0 + dj:C0 + dj + W]
                        # ... then 7 sublane-offset ref loads (free addr math)
                        part = w_ref[wb + dj] * colslab[0:H, :]
                        for di in range(1, KSIZE):
                            part = part + (w_ref[wb + di * KSIZE + dj]
                                           * colslab[di:di + H, :])
                        acc = acc + part
                o_ref[b, 0] = jax.nn.sigmoid(acc).astype(o_ref.dtype)

    return kernel


def spatial_attention(x, conv_weight):
    """x: (N, C, H, W). conv_weight: (1, 2, 7, 7), no bias."""
    N, C, H, W = x.shape
    itemsize = x.dtype.itemsize

    # ---- tiling heuristics: bounded VMEM, amortized per-step overhead ------
    per_batch_bytes = C * H * W * itemsize
    b_blk = _largest_divisor_leq(
        N, max(1, min(4, (1 << 20) // max(per_batch_bytes, 1))))
    plane_bytes = b_blk * H * W * itemsize
    c_blk = _largest_divisor_leq(C, max(1, (4 << 20) // max(plane_bytes, 1)))
    c_sub = max(1, min(c_blk, 32768 // max(b_blk * H * W, 1)))

    # padded conv planes: interior origin on an (8, 128) boundary
    hs = TOP + _round_up(H + PAD, 8)
    ws = LEFT + _round_up(W + PAD, 128)
    hc = H + KSIZE - 1

    # ---- fold the 1/C mean scale into the avg half of the weights ----------
    w = conv_weight.astype(jnp.float32)
    w = w * jnp.array([1.0 / C, 1.0], jnp.float32).reshape(1, 2, 1, 1)
    w_flat = w.reshape(-1)                                 # (98,)

    # ---- explicit VMEM accounting for the compiler limit --------------------
    h_pad, w_pad = _round_up(H, 8), _round_up(W, 128)
    need = (2 * b_blk * c_blk * h_pad * w_pad * itemsize   # input (dbl buffer)
            + 2 * b_blk * h_pad * w_pad * itemsize         # output (dbl buffer)
            + 2 * b_blk * hs * ws * 4                      # padded planes
            + _round_up(hc, 8) * w_pad * 4)                # column slab
    vmem_limit = int(min(max(need + (8 << 20), 32 << 20), 100 << 20))

    kernel = _make_kernel(b_blk, c_blk, c_sub, H, W)

    return pl.pallas_call(
        kernel,
        out_shape=jax.ShapeDtypeStruct((N, 1, H, W), x.dtype),
        grid_spec=pltpu.PrefetchScalarGridSpec(
            num_scalar_prefetch=0,
            grid=(N // b_blk, C // c_blk),      # reduction (channel) axis last
            in_specs=[
                pl.BlockSpec((b_blk, c_blk, H, W), lambda n, k: (n, k, 0, 0)),
                pl.BlockSpec(memory_space=pltpu.MemorySpace.SMEM),
            ],
            out_specs=pl.BlockSpec((b_blk, 1, H, W), lambda n, k: (n, 0, 0, 0)),
            scratch_shapes=[
                pltpu.VMEM((b_blk, hs, ws), jnp.float32),   # padded sum plane
                pltpu.VMEM((b_blk, hs, ws), jnp.float32),   # padded max plane
                pltpu.VMEM((hc, W), jnp.float32),           # column slab
            ],
        ),
        compiler_params=pltpu.CompilerParams(
            dimension_semantics=("parallel", "arbitrary"),
            vmem_limit_bytes=vmem_limit),
    )(x, w_flat)


def spatial_attention_ref(x, conv_weight):
    """Pure-JAX reference for the correctness check."""
    avg = jnp.mean(x, axis=1, keepdims=True)
    mx = jnp.max(x, axis=1, keepdims=True)
    cat = jnp.concatenate([avg, mx], axis=1)               # (N, 2, H, W)
    y = jax.lax.conv_general_dilated(
        cat, conv_weight, window_strides=(1, 1),
        padding=[(PAD, PAD), (PAD, PAD)],
        dimension_numbers=("NCHW", "OIHW", "NCHW"))
    return jax.nn.sigmoid(y)


if __name__ == "__main__":
    key = jax.random.PRNGKey(0)
    kx, kw = jax.random.split(key)

    N, C, H, W = 2, 4, 16, 16
    x = jax.random.normal(kx, (N, C, H, W), dtype=jnp.float32)

    # Deterministic conv weight: shape (out=1, in=2, 7, 7), no bias.
    fan_in = 2 * KSIZE * KSIZE
    bound = 1.0 / jnp.sqrt(fan_in)
    conv_weight = jax.random.uniform(
        kw, (1, 2, KSIZE, KSIZE), dtype=jnp.float32,
        minval=-bound, maxval=bound)

    out = spatial_attention(x, conv_weight)
    out = jax.block_until_ready(out)

    ref = spatial_attention_ref(x, conv_weight)
    assert out.shape == (N, 1, H, W)
    assert jnp.allclose(out, ref, atol=1e-5, rtol=1e-5), (
        float(jnp.max(jnp.abs(out - ref))))

    print("KERNEL_OK")
</pallas_src>

<mosaic_0001>
module attributes {stable_mosaic.version = 11 : i64} {
  func.func @kernel(%arg0: i32, %arg1: i32, %arg2: memref<2x4x16x16xf32, #tpu.memory_space<vmem>>, %arg3: memref<98xf32, #tpu.memory_space<smem>>, %arg4: memref<2x1x16x16xf32, #tpu.memory_space<vmem>>, %arg5: memref<2x32x256xf32, #tpu.memory_space<vmem>>, %arg6: memref<2x32x256xf32, #tpu.memory_space<vmem>>, %arg7: memref<22x16xf32, #tpu.memory_space<vmem>>) attributes {dimension_semantics = [#tpu.dimension_semantics<parallel>, #tpu.dimension_semantics<arbitrary>], iteration_bounds = array<i64: 1, 1>, scalar_prefetch = 0 : i64, scratch_operands = 3 : i64, tpu.core_type = #tpu.core_type<tc>, window_params = [{transform_indices = @transform_0, window_bounds = array<i64: 2, 4, 16, 16>}, {transform_indices = @transform_1, window_bounds = array<i64: 98>}, {transform_indices = @transform_2, window_bounds = array<i64: 2, 1, 16, 16>}]} {
    %c0_i32 = arith.constant 0 : i32
    %0 = arith.cmpi eq, %arg1, %c0_i32 : i32
    %1 = arith.extui %0 : i1 to i32
    %c0_i32_0 = arith.constant 0 : i32
    %2 = arith.cmpi ne, %1, %c0_i32_0 : i32
    scf.if %2 {
      %cst_17 = arith.constant 0.000000e+00 : f32
      %15 = vector.broadcast %cst_17 : f32 to vector<2x32x256xf32>
      %c0_18 = arith.constant 0 : index
      %c0_19 = arith.constant 0 : index
      %c0_20 = arith.constant 0 : index
      %16 = vector.load %arg5[%c0_18, %c0_19, %c0_20] : memref<2x32x256xf32, #tpu.memory_space<vmem>>, vector<2x32x256xf32>
      tpu.vector_store %arg5[%c0_18, %c0_19, %c0_20], %15 {strides = array<i32>} : memref<2x32x256xf32, #tpu.memory_space<vmem>>, vector<2x32x256xf32>,
      %cst_21 = arith.constant 0.000000e+00 : f32
      %17 = vector.broadcast %cst_21 : f32 to vector<2x32x256xf32>
      %c0_22 = arith.constant 0 : index
      %c0_23 = arith.constant 0 : index
      %c0_24 = arith.constant 0 : index
      %18 = vector.load %arg6[%c0_22, %c0_23, %c0_24] : memref<2x32x256xf32, #tpu.memory_space<vmem>>, vector<2x32x256xf32>
      tpu.vector_store %arg6[%c0_22, %c0_23, %c0_24], %17 {strides = array<i32>} : memref<2x32x256xf32, #tpu.memory_space<vmem>>, vector<2x32x256xf32>,
      %cst_25 = arith.constant 0xFF800000 : f32
      %19 = vector.broadcast %cst_25 : f32 to vector<2x16x16xf32>
      %c0_26 = arith.constant 0 : index
      %c8_27 = arith.constant 8 : index
      %c128_28 = arith.constant 128 : index
      %20 = vector.load %arg6[%c0_26, %c8_27, %c128_28] : memref<2x32x256xf32, #tpu.memory_space<vmem>>, vector<2x16x16xf32>
      tpu.vector_store %arg6[%c0_26, %c8_27, %c128_28], %19 {strides = array<i32>} : memref<2x32x256xf32, #tpu.memory_space<vmem>>, vector<2x16x16xf32>,
    } else {
    }
    %c0 = arith.constant 0 : index
    %c0_1 = arith.constant 0 : index
    %c0_2 = arith.constant 0 : index
    %c0_3 = arith.constant 0 : index
    %3 = vector.load %arg2[%c0, %c0_1, %c0_2, %c0_3] : memref<2x4x16x16xf32, #tpu.memory_space<vmem>>, vector<2x4x16x16xf32>
    %cst = arith.constant dense<0.000000e+00> : vector<2x16x16xf32>
    %4 = vector.multi_reduction <add>, %3, %cst [1] : vector<2x4x16x16xf32> to vector<2x16x16xf32>
    %cst_4 = arith.constant dense<0xFF800000> : vector<2x16x16xf32>
    %5 = vector.multi_reduction <maximumf>, %3, %cst_4 [1] : vector<2x4x16x16xf32> to vector<2x16x16xf32>
    %c0_5 = arith.constant 0 : index
    %c8 = arith.constant 8 : index
    %c128 = arith.constant 128 : index
    %6 = vector.load %arg5[%c0_5, %c8, %c128] : memref<2x32x256xf32, #tpu.memory_space<vmem>>, vector<2x16x16xf32>
    %7 = arith.addf %6, %4 : vector<2x16x16xf32>
    %c0_6 = arith.constant 0 : index
    %c8_7 = arith.constant 8 : index
    %c128_8 = arith.constant 128 : index
    %8 = vector.load %arg5[%c0_6, %c8_7, %c128_8] : memref<2x32x256xf32, #tpu.memory_space<vmem>>, vector<2x16x16xf32>
    tpu.vector_store %arg5[%c0_6, %c8_7, %c128_8], %7 {strides = array<i32>} : memref<2x32x256xf32, #tpu.memory_space<vmem>>, vector<2x16x16xf32>,
    %c0_9 = arith.constant 0 : index
    %c8_10 = arith.constant 8 : index
    %c128_11 = arith.constant 128 : index
    %9 = vector.load %arg6[%c0_9, %c8_10, %c128_11] : memref<2x32x256xf32, #tpu.memory_space<vmem>>, vector<2x16x16xf32>
    %10 = arith.maximumf %9, %5 : vector<2x16x16xf32>
    %c0_12 = arith.constant 0 : index
    %c8_13 = arith.constant 8 : index
    %c128_14 = arith.constant 128 : index
    %11 = vector.load %arg6[%c0_12, %c8_13, %c128_14] : memref<2x32x256xf32, #tpu.memory_space<vmem>>, vector<2x16x16xf32>
    tpu.vector_store %arg6[%c0_12, %c8_13, %c128_14], %10 {strides = array<i32>} : memref<2x32x256xf32, #tpu.memory_space<vmem>>, vector<2x16x16xf32>,
    %c0_i32_15 = arith.constant 0 : i32
    %12 = arith.cmpi eq, %arg1, %c0_i32_15 : i32
    %13 = arith.extui %12 : i1 to i32
    %c0_i32_16 = arith.constant 0 : i32
    %14 = arith.cmpi ne, %13, %c0_i32_16 : i32
    scf.if %14 {
      %cst_17 = arith.constant 0.000000e+00 : f32
      %15 = vector.broadcast %cst_17 : f32 to vector<16x16xf32>
      %c0_18 = arith.constant 0 : index
      %c5 = arith.constant 5 : index
      %c125 = arith.constant 125 : index
      %16 = vector.load %arg5[%c0_18, %c5, %c125] : memref<2x32x256xf32, #tpu.memory_space<vmem>>, vector<1x22x16xf32>
      %17 = vector.shape_cast %16 : vector<1x22x16xf32> to vector<22x16xf32>
      %c0_19 = arith.constant 0 : index
      %c0_20 = arith.constant 0 : index
      %18 = vector.load %arg7[%c0_19, %c0_20] : memref<22x16xf32, #tpu.memory_space<vmem>>, vector<22x16xf32>
      tpu.vector_store %arg7[%c0_19, %c0_20], %17 {strides = array<i32>} : memref<22x16xf32, #tpu.memory_space<vmem>>, vector<22x16xf32>,
      %c0_21 = arith.constant 0 : index
      %19 = memref.load %arg3[%c0_21] : memref<98xf32, #tpu.memory_space<smem>>
      %c0_22 = arith.constant 0 : index
      %c0_23 = arith.constant 0 : index
      %20 = vector.load %arg7[%c0_22, %c0_23] : memref<22x16xf32, #tpu.memory_space<vmem>>, vector<16x16xf32>
      %21 = vector.broadcast %19 : f32 to vector<16x16xf32>
      %22 = arith.mulf %21, %20 : vector<16x16xf32>
      %c7 = arith.constant 7 : index
      %23 = memref.load %arg3[%c7] : memref<98xf32, #tpu.memory_space<smem>>
      %c1 = arith.constant 1 : index
      %c0_24 = arith.constant 0 : index
      %24 = vector.load %arg7[%c1, %c0_24] : memref<22x16xf32, #tpu.memory_space<vmem>>, vector<16x16xf32>
      %25 = vector.broadcast %23 : f32 to vector<16x16xf32>
      %26 = arith.mulf %25, %24 : vector<16x16xf32>
      %27 = arith.addf %22, %26 : vector<16x16xf32>
      %c14 = arith.constant 14 : index
      %28 = memref.load %arg3[%c14] : memref<98xf32, #tpu.memory_space<smem>>
      %c2 = arith.constant 2 : index
      %c0_25 = arith.constant 0 : index
      %29 = vector.load %arg7[%c2, %c0_25] : memref<22x16xf32, #tpu.memory_space<vmem>>, vector<16x16xf32>
      %30 = vector.broadcast %28 : f32 to vector<16x16xf32>
      %31 = arith.mulf %30, %29 : vector<16x16xf32>
      %32 = arith.addf %27, %31 : vector<16x16xf32>
      %c21 = arith.constant 21 : index
      %33 = memref.load %arg3[%c21] : memref<98xf32, #tpu.memory_space<smem>>
      %c3 = arith.constant 3 : index
      %c0_26 = arith.constant 0 : index
      %34 = vector.load %arg7[%c3, %c0_26] : memref<22x16xf32, #tpu.memory_space<vmem>>, vector<16x16xf32>
      %35 = vector.broadcast %33 : f32 to vector<16x16xf32>
      %36 = arith.mulf %35, %34 : vector<16x16xf32>
      %37 = arith.addf %32, %36 : vector<16x16xf32>
      %c28 = arith.constant 28 : index
      %38 = memref.load %arg3[%c28] : memref<98xf32, #tpu.memory_space<smem>>
      %c4 = arith.constant 4 : index
      %c0_27 = arith.constant 0 : index
      %39 = vector.load %arg7[%c4, %c0_27] : memref<22x16xf32, #tpu.memory_space<vmem>>, vector<16x16xf32>
      %40 = vector.broadcast %38 : f32 to vector<16x16xf32>
      %41 = arith.mulf %40, %39 : vector<16x16xf32>
      %42 = arith.addf %37, %41 : vector<16x16xf32>
      %c35 = arith.constant 35 : index
      %43 = memref.load %arg3[%c35] : memref<98xf32, #tpu.memory_space<smem>>
      %c5_28 = arith.constant 5 : index
      %c0_29 = arith.constant 0 : index
      %44 = vector.load %arg7[%c5_28, %c0_29] : memref<22x16xf32, #tpu.memory_space<vmem>>, vector<16x16xf32>
      %45 = vector.broadcast %43 : f32 to vector<16x16xf32>
      %46 = arith.mulf %45, %44 : vector<16x16xf32>
      %47 = arith.addf %42, %46 : vector<16x16xf32>
      %c42 = arith.constant 42 : index
      %48 = memref.load %arg3[%c42] : memref<98xf32, #tpu.memory_space<smem>>
      %c6 = arith.constant 6 : index
      %c0_30 = arith.constant 0 : index
      %49 = vector.load %arg7[%c6, %c0_30] : memref<22x16xf32, #tpu.memory_space<vmem>>, vector<16x16xf32>
      %50 = vector.broadcast %48 : f32 to vector<16x16xf32>
      %51 = arith.mulf %50, %49 : vector<16x16xf32>
      %52 = arith.addf %47, %51 : vector<16x16xf32>
      %53 = arith.addf %15, %52 : vector<16x16xf32>
      %c0_31 = arith.constant 0 : index
      %c5_32 = arith.constant 5 : index
      %c126 = arith.constant 126 : index
      %54 = vector.load %arg5[%c0_31, %c5_32, %c126] : memref<2x32x256xf32, #tpu.memory_space<vmem>>, vector<1x22x16xf32>
      %55 = vector.shape_cast %54 : vector<1x22x16xf32> to vector<22x16xf32>
      %c0_33 = arith.constant 0 : index
      %c0_34 = arith.constant 0 : index
      %56 = vector.load %arg7[%c0_33, %c0_34] : memref<22x16xf32, #tpu.memory_space<vmem>>, vector<22x16xf32>
      tpu.vector_store %arg7[%c0_33, %c0_34], %55 {strides = array<i32>} : memref<22x16xf32, #tpu.memory_space<vmem>>, vector<22x16xf32>,
      %c1_35 = arith.constant 1 : index
      %57 = memref.load %arg3[%c1_35] : memref<98xf32, #tpu.memory_space<smem>>
      %c0_36 = arith.constant 0 : index
      %c0_37 = arith.constant 0 : index
      %58 = vector.load %arg7[%c0_36, %c0_37] : memref<22x16xf32, #tpu.memory_space<vmem>>, vector<16x16xf32>
      %59 = vector.broadcast %57 : f32 to vector<16x16xf32>
      %60 = arith.mulf %59, %58 : vector<16x16xf32>
      %c8_38 = arith.constant 8 : index
      %61 = memref.load %arg3[%c8_38] : memref<98xf32, #tpu.memory_space<smem>>
      %c1_39 = arith.constant 1 : index
      %c0_40 = arith.constant 0 : index
      %62 = vector.load %arg7[%c1_39, %c0_40] : memref<22x16xf32, #tpu.memory_space<vmem>>, vector<16x16xf32>
      %63 = vector.broadcast %61 : f32 to vector<16x16xf32>
      %64 = arith.mulf %63, %62 : vector<16x16xf32>
      %65 = arith.addf %60, %64 : vector<16x16xf32>
      %c15 = arith.constant 15 : index
      %66 = memref.load %arg3[%c15] : memref<98xf32, #tpu.memory_space<smem>>
      %c2_41 = arith.constant 2 : index
      %c0_42 = arith.constant 0 : index
      %67 = vector.load %arg7[%c2_41, %c0_42] : memref<22x16xf32, #tpu.memory_space<vmem>>, vector<16x16xf32>
      %68 = vector.broadcast %66 : f32 to vector<16x16xf32>
      %69 = arith.mulf %68, %67 : vector<16x16xf32>
      %70 = arith.addf %65, %69 : vector<16x16xf32>
      %c22 = arith.constant 22 : index
      %71 = memref.load %arg3[%c22] : memref<98xf32, #tpu.memory_space<smem>>
      %c3_43 = arith.constant 3 : index
      %c0_44 = arith.constant 0 : index
      %72 = vector.load %arg7[%c3_43, %c0_44] : memref<22x16xf32, #tpu.memory_space<vmem>>, vector<16x16xf32>
      %73 = vector.broadcast %71 : f32 to vector<16x16xf32>
      %74 = arith.mulf %73, %72 : vector<16x16xf32>
      %75 = arith.addf %70, %74 : vector<16x16xf32>
      %c29 = arith.constant 29 : index
      %76 = memref.load %arg3[%c29] : memref<98xf32, #tpu.memory_space<smem>>
      %c4_45 = arith.constant 4 : index
      %c0_46 = arith.constant 0 : index
      %77 = vector.load %arg7[%c4_45, %c0_46] : memref<22x16xf32, #tpu.memory_space<vmem>>, vector<16x16xf32>
      %78 = vector.broadcast %76 : f32 to vector<16x16xf32>
      %79 = arith.mulf %78, %77 : vector<16x16xf32>
      %80 = arith.addf %75, %79 : vector<16x16xf32>
      %c36 = arith.constant 36 : index
      %81 = memref.load %arg3[%c36] : memref<98xf32, #tpu.memory_space<smem>>
      %c5_47 = arith.constant 5 : index
      %c0_48 = arith.constant 0 : index
      %82 = vector.load %arg7[%c5_47, %c0_48] : memref<22x16xf32, #tpu.memory_space<vmem>>, vector<16x16xf32>
      %83 = vector.broadcast %81 : f32 to vector<16x16xf32>
      %84 = arith.mulf %83, %82 : vector<16x16xf32>
      %85 = arith.addf %80, %84 : vector<16x16xf32>
      %c43 = arith.constant 43 : index
      %86 = memref.load %arg3[%c43] : memref<98xf32, #tpu.memory_space<smem>>
      %c6_49 = arith.constant 6 : index
      %c0_50 = arith.constant 0 : index
      %87 = vector.load %arg7[%c6_49, %c0_50] : memref<22x16xf32, #tpu.memory_space<vmem>>, vector<16x16xf32>
      %88 = vector.broadcast %86 : f32 to vector<16x16xf32>
      %89 = arith.mulf %88, %87 : vector<16x16xf32>
      %90 = arith.addf %85, %89 : vector<16x16xf32>
      %91 = arith.addf %53, %90 : vector<16x16xf32>
      %c0_51 = arith.constant 0 : index
      %c5_52 = arith.constant 5 : index
      %c127 = arith.constant 127 : index
      %92 = vector.load %arg5[%c0_51, %c5_52, %c127] : memref<2x32x256xf32, #tpu.memory_space<vmem>>, vector<1x22x16xf32>
      %93 = vector.shape_cast %92 : vector<1x22x16xf32> to vector<22x16xf32>
      %c0_53 = arith.constant 0 : index
      %c0_54 = arith.constant 0 : index
      %94 = vector.load %arg7[%c0_53, %c0_54] : memref<22x16xf32, #tpu.memory_space<vmem>>, vector<22x16xf32>
      tpu.vector_store %arg7[%c0_53, %c0_54], %93 {strides = array<i32>} : memref<22x16xf32, #tpu.memory_space<vmem>>, vector<22x16xf32>,
      %c2_55 = arith.constant 2 : index
      %95 = memref.load %arg3[%c2_55] : memref<98xf32, #tpu.memory_space<smem>>
      %c0_56 = arith.constant 0 : index
      %c0_57 = arith.constant 0 : index
      %96 = vector.load %arg7[%c0_56, %c0_57] : memref<22x16xf32, #tpu.memory_space<vmem>>, vector<16x16xf32>
      %97 = vector.broadcast %95 : f32 to vector<16x16xf32>
      %98 = arith.mulf %97, %96 : vector<16x16xf32>
      %c9 = arith.constant 9 : index
      %99 = memref.load %arg3[%c9] : memref<98xf32, #tpu.memory_space<smem>>
      %c1_58 = arith.constant 1 : index
      %c0_59 = arith.constant 0 : index
      %100 = vector.load %arg7[%c1_58, %c0_59] : memref<22x16xf32, #tpu.memory_space<vmem>>, vector<16x16xf32>
      %101 = vector.broadcast %99 : f32 to vector<16x16xf32>
      %102 = arith.mulf %101, %100 : vector<16x16xf32>
      %103 = arith.addf %98, %102 : vector<16x16xf32>
      %c16 = arith.constant 16 : index
      %104 = memref.load %arg3[%c16] : memref<98xf32, #tpu.memory_space<smem>>
      %c2_60 = arith.constant 2 : index
      %c0_61 = arith.constant 0 : index
      %105 = vector.load %arg7[%c2_60, %c0_61] : memref<22x16xf32, #tpu.memory_space<vmem>>, vector<16x16xf32>
      %106 = vector.broadcast %104 : f32 to vector<16x16xf32>
      %107 = arith.mulf %106, %105 : vector<16x16xf32>
      %108 = arith.addf %103, %107 : vector<16x16xf32>
      %c23 = arith.constant 23 : index
      %109 = memref.load %arg3[%c23] : memref<98xf32, #tpu.memory_space<smem>>
      %c3_62 = arith.constant 3 : index
      %c0_63 = arith.constant 0 : index
      %110 = vector.load %arg7[%c3_62, %c0_63] : memref<22x16xf32, #tpu.memory_space<vmem>>, vector<16x16xf32>
      %111 = vector.broadcast %109 : f32 to vector<16x16xf32>
      %112 = arith.mulf %111, %110 : vector<16x16xf32>
      %113 = arith.addf %108, %112 : vector<16x16xf32>
      %c30 = arith.constant 30 : index
      %114 = memref.load %arg3[%c30] : memref<98xf32, #tpu.memory_space<smem>>
      %c4_64 = arith.constant 4 : index
      %c0_65 = arith.constant 0 : index
      %115 = vector.load %arg7[%c4_64, %c0_65] : memref<22x16xf32, #tpu.memory_space<vmem>>, vector<16x16xf32>
      %116 = vector.broadcast %114 : f32 to vector<16x16xf32>
      %117 = arith.mulf %116, %115 : vector<16x16xf32>
      %118 = arith.addf %113, %117 : vector<16x16xf32>
      %c37 = arith.constant 37 : index
      %119 = memref.load %arg3[%c37] : memref<98xf32, #tpu.memory_space<smem>>
      %c5_66 = arith.constant 5 : index
      %c0_67 = arith.constant 0 : index
      %120 = vector.load %arg7[%c5_66, %c0_67] : memref<22x16xf32, #tpu.memory_space<vmem>>, vector<16x16xf32>
      %121 = vector.broadcast %119 : f32 to vector<16x16xf32>
      %122 = arith.mulf %121, %120 : vector<16x16xf32>
      %123 = arith.addf %118, %122 : vector<16x16xf32>
      %c44 = arith.constant 44 : index
      %124 = memref.load %arg3[%c44] : memref<98xf32, #tpu.memory_space<smem>>
      %c6_68 = arith.constant 6 : index
      %c0_69 = arith.constant 0 : index
      %125 = vector.load %arg7[%c6_68, %c0_69] : memref<22x16xf32, #tpu.memory_space<vmem>>, vector<16x16xf32>
      %126 = vector.broadcast %124 : f32 to vector<16x16xf32>
      %127 = arith.mulf %126, %125 : vector<16x16xf32>
      %128 = arith.addf %123, %127 : vector<16x16xf32>
      %129 = arith.addf %91, %128 : vector<16x16xf32>
      %c0_70 = arith.constant 0 : index
      %c5_71 = arith.constant 5 : index
      %c128_72 = arith.constant 128 : index
      %130 = vector.load %arg5[%c0_70, %c5_71, %c128_72] : memref<2x32x256xf32, #tpu.memory_space<vmem>>, vector<1x22x16xf32>
      %131 = vector.shape_cast %130 : vector<1x22x16xf32> to vector<22x16xf32>
      %c0_73 = arith.constant 0 : index
      %c0_74 = arith.constant 0 : index
      %132 = vector.load %arg7[%c0_73, %c0_74] : memref<22x16xf32, #tpu.memory_space<vmem>>, vector<22x16xf32>
      tpu.vector_store %arg7[%c0_73, %c0_74], %131 {strides = array<i32>} : memref<22x16xf32, #tpu.memory_space<vmem>>, vector<22x16xf32>,
      %c3_75 = arith.constant 3 : index
      %133 = memref.load %arg3[%c3_75] : memref<98xf32, #tpu.memory_space<smem>>
      %c0_76 = arith.constant 0 : index
      %c0_77 = arith.constant 0 : index
      %134 = vector.load %arg7[%c0_76, %c0_77] : memref<22x16xf32, #tpu.memory_space<vmem>>, vector<16x16xf32>
      %135 = vector.broadcast %133 : f32 to vector<16x16xf32>
      %136 = arith.mulf %135, %134 : vector<16x16xf32>
      %c10 = arith.constant 10 : index
      %137 = memref.load %arg3[%c10] : memref<98xf32, #tpu.memory_space<smem>>
      %c1_78 = arith.constant 1 : index
      %c0_79 = arith.constant 0 : index
      %138 = vector.load %arg7[%c1_78, %c0_79] : memref<22x16xf32, #tpu.memory_space<vmem>>, vector<16x16xf32>
      %139 = vector.broadcast %137 : f32 to vector<16x16xf32>
      %140 = arith.mulf %139, %138 : vector<16x16xf32>
      %141 = arith.addf %136, %140 : vector<16x16xf32>
      %c17 = arith.constant 17 : index
      %142 = memref.load %arg3[%c17] : memref<98xf32, #tpu.memory_space<smem>>
      %c2_80 = arith.constant 2 : index
      %c0_81 = arith.constant 0 : index
      %143 = vector.load %arg7[%c2_80, %c0_81] : memref<22x16xf32, #tpu.memory_space<vmem>>, vector<16x16xf32>
      %144 = vector.broadcast %142 : f32 to vector<16x16xf32>
      %145 = arith.mulf %144, %143 : vector<16x16xf32>
      %146 = arith.addf %141, %145 : vector<16x16xf32>
      %c24 = arith.constant 24 : index
      %147 = memref.load %arg3[%c24] : memref<98xf32, #tpu.memory_space<smem>>
      %c3_82 = arith.constant 3 : index
      %c0_83 = arith.constant 0 : index
      %148 = vector.load %arg7[%c3_82, %c0_83] : memref<22x16xf32, #tpu.memory_space<vmem>>, vector<16x16xf32>
      %149 = vector.broadcast %147 : f32 to vector<16x16xf32>
      %150 = arith.mulf %149, %148 : vector<16x16xf32>
      %151 = arith.addf %146, %150 : vector<16x16xf32>
      %c31 = arith.constant 31 : index
      %152 = memref.load %arg3[%c31] : memref<98xf32, #tpu.memory_space<smem>>
      %c4_84 = arith.constant 4 : index
      %c0_85 = arith.constant 0 : index
      %153 = vector.load %arg7[%c4_84, %c0_85] : memref<22x16xf32, #tpu.memory_space<vmem>>, vector<16x16xf32>
      %154 = vector.broadcast %152 : f32 to vector<16x16xf32>
      %155 = arith.mulf %154, %153 : vector<16x16xf32>
      %156 = arith.addf %151, %155 : vector<16x16xf32>
      %c38 = arith.constant 38 : index
      %157 = memref.load %arg3[%c38] : memref<98xf32, #tpu.memory_space<smem>>
      %c5_86 = arith.constant 5 : index
      %c0_87 = arith.constant 0 : index
      %158 = vector.load %arg7[%c5_86, %c0_87] : memref<22x16xf32, #tpu.memory_space<vmem>>, vector<16x16xf32>
      %159 = vector.broadcast %157 : f32 to vector<16x16xf32>
      %160 = arith.mulf %159, %158 : vector<16x16xf32>
      %161 = arith.addf %156, %160 : vector<16x16xf32>
      %c45 = arith.constant 45 : index
      %162 = memref.load %arg3[%c45] : memref<98xf32, #tpu.memory_space<smem>>
      %c6_88 = arith.constant 6 : index
      %c0_89 = arith.constant 0 : index
      %163 = vector.load %arg7[%c6_88, %c0_89] : memref<22x16xf32, #tpu.memory_space<vmem>>, vector<16x16xf32>
      %164 = vector.broadcast %162 : f32 to vector<16x16xf32>
      %165 = arith.mulf %164, %163 : vector<16x16xf32>
      %166 = arith.addf %161, %165 : vector<16x16xf32>
      %167 = arith.addf %129, %166 : vector<16x16xf32>
      %c0_90 = arith.constant 0 : index
      %c5_91 = arith.constant 5 : index
      %c129 = arith.constant 129 : index
      %168 = vector.load %arg5[%c0_90, %c5_91, %c129] : memref<2x32x256xf32, #tpu.memory_space<vmem>>, vector<1x22x16xf32>
      %169 = vector.shape_cast %168 : vector<1x22x16xf32> to vector<22x16xf32>
      %c0_92 = arith.constant 0 : index
      %c0_93 = arith.constant 0 : index
      %170 = vector.load %arg7[%c0_92, %c0_93] : memref<22x16xf32, #tpu.memory_space<vmem>>, vector<22x16xf32>
      tpu.vector_store %arg7[%c0_92, %c0_93], %169 {strides = array<i32>} : memref<22x16xf32, #tpu.memory_space<vmem>>, vector<22x16xf32>,
      %c4_94 = arith.constant 4 : index
      %171 = memref.load %arg3[%c4_94] : memref<98xf32, #tpu.memory_space<smem>>
      %c0_95 = arith.constant 0 : index
      %c0_96 = arith.constant 0 : index
      %172 = vector.load %arg7[%c0_95, %c0_96] : memref<22x16xf32, #tpu.memory_space<vmem>>, vector<16x16xf32>
      %173 = vector.broadcast %171 : f32 to vector<16x16xf32>
      %174 = arith.mulf %173, %172 : vector<16x16xf32>
      %c11 = arith.constant 11 : index
      %175 = memref.load %arg3[%c11] : memref<98xf32, #tpu.memory_space<smem>>
      %c1_97 = arith.constant 1 : index
      %c0_98 = arith.constant 0 : index
      %176 = vector.load %arg7[%c1_97, %c0_98] : memref<22x16xf32, #tpu.memory_space<vmem>>, vector<16x16xf32>
      %177 = vector.broadcast %175 : f32 to vector<16x16xf32>
      %178 = arith.mulf %177, %176 : vector<16x16xf32>
      %179 = arith.addf %174, %178 : vector<16x16xf32>
      %c18 = arith.constant 18 : index
      %180 = memref.load %arg3[%c18] : memref<98xf32, #tpu.memory_space<smem>>
      %c2_99 = arith.constant 2 : index
      %c0_100 = arith.constant 0 : index
      %181 = vector.load %arg7[%c2_99, %c0_100] : memref<22x16xf32, #tpu.memory_space<vmem>>, vector<16x16xf32>
      %182 = vector.broadcast %180 : f32 to vector<16x16xf32>
      %183 = arith.mulf %182, %181 : vector<16x16xf32>
      %184 = arith.addf %179, %183 : vector<16x16xf32>
      %c25 = arith.constant 25 : index
      %185 = memref.load %arg3[%c25] : memref<98xf32, #tpu.memory_space<smem>>
      %c3_101 = arith.constant 3 : index
      %c0_102 = arith.constant 0 : index
      %186 = vector.load %arg7[%c3_101, %c0_102] : memref<22x16xf32, #tpu.memory_space<vmem>>, vector<16x16xf32>
      %187 = vector.broadcast %185 : f32 to vector<16x16xf32>
      %188 = arith.mulf %187, %186 : vector<16x16xf32>
      %189 = arith.addf %184, %188 : vector<16x16xf32>
      %c32 = arith.constant 32 : index
      %190 = memref.load %arg3[%c32] : memref<98xf32, #tpu.memory_space<smem>>
      %c4_103 = arith.constant 4 : index
      %c0_104 = arith.constant 0 : index
      %191 = vector.load %arg7[%c4_103, %c0_104] : memref<22x16xf32, #tpu.memory_space<vmem>>, vector<16x16xf32>
      %192 = vector.broadcast %190 : f32 to vector<16x16xf32>
      %193 = arith.mulf %192, %191 : vector<16x16xf32>
      %194 = arith.addf %189, %193 : vector<16x16xf32>
      %c39 = arith.constant 39 : index
      %195 = memref.load %arg3[%c39] : memref<98xf32, #tpu.memory_space<smem>>
      %c5_105 = arith.constant 5 : index
      %c0_106 = arith.constant 0 : index
      %196 = vector.load %arg7[%c5_105, %c0_106] : memref<22x16xf32, #tpu.memory_space<vmem>>, vector<16x16xf32>
      %197 = vector.broadcast %195 : f32 to vector<16x16xf32>
      %198 = arith.mulf %197, %196 : vector<16x16xf32>
      %199 = arith.addf %194, %198 : vector<16x16xf32>
      %c46 = arith.constant 46 : index
      %200 = memref.load %arg3[%c46] : memref<98xf32, #tpu.memory_space<smem>>
      %c6_107 = arith.constant 6 : index
      %c0_108 = arith.constant 0 : index
      %201 = vector.load %arg7[%c6_107, %c0_108] : memref<22x16xf32, #tpu.memory_space<vmem>>, vector<16x16xf32>
      %202 = vector.broadcast %200 : f32 to vector<16x16xf32>
      %203 = arith.mulf %202, %201 : vector<16x16xf32>
      %204 = arith.addf %199, %203 : vector<16x16xf32>
      %205 = arith.addf %167, %204 : vector<16x16xf32>
      %c0_109 = arith.constant 0 : index
      %c5_110 = arith.constant 5 : index
      %c130 = arith.constant 130 : index
      %206 = vector.load %arg5[%c0_109, %c5_110, %c130] : memref<2x32x256xf32, #tpu.memory_space<vmem>>, vector<1x22x16xf32>
      %207 = vector.shape_cast %206 : vector<1x22x16xf32> to vector<22x16xf32>
      %c0_111 = arith.constant 0 : index
      %c0_112 = arith.constant 0 : index
      %208 = vector.load %arg7[%c0_111, %c0_112] : memref<22x16xf32, #tpu.memory_space<vmem>>, vector<22x16xf32>
      tpu.vector_store %arg7[%c0_111, %c0_112], %207 {strides = array<i32>} : memref<22x16xf32, #tpu.memory_space<vmem>>, vector<22x16xf32>,
      %c5_113 = arith.constant 5 : index
      %209 = memref.load %arg3[%c5_113] : memref<98xf32, #tpu.memory_space<smem>>
      %c0_114 = arith.constant 0 : index
      %c0_115 = arith.constant 0 : index
      %210 = vector.load %arg7[%c0_114, %c0_115] : memref<22x16xf32, #tpu.memory_space<vmem>>, vector<16x16xf32>
      %211 = vector.broadcast %209 : f32 to vector<16x16xf32>
      %212 = arith.mulf %211, %210 : vector<16x16xf32>
      %c12 = arith.constant 12 : index
      %213 = memref.load %arg3[%c12] : memref<98xf32, #tpu.memory_space<smem>>
      %c1_116 = arith.constant 1 : index
      %c0_117 = arith.constant 0 : index
      %214 = vector.load %arg7[%c1_116, %c0_117] : memref<22x16xf32, #tpu.memory_space<vmem>>, vector<16x16xf32>
      %215 = vector.broadcast %213 : f32 to vector<16x16xf32>
      %216 = arith.mulf %215, %214 : vector<16x16xf32>
      %217 = arith.addf %212, %216 : vector<16x16xf32>
      %c19 = arith.constant 19 : index
      %218 = memref.load %arg3[%c19] : memref<98xf32, #tpu.memory_space<smem>>
      %c2_118 = arith.constant 2 : index
      %c0_119 = arith.constant 0 : index
      %219 = vector.load %arg7[%c2_118, %c0_119] : memref<22x16xf32, #tpu.memory_space<vmem>>, vector<16x16xf32>
      %220 = vector.broadcast %218 : f32 to vector<16x16xf32>
      %221 = arith.mulf %220, %219 : vector<16x16xf32>
      %222 = arith.addf %217, %221 : vector<16x16xf32>
      %c26 = arith.constant 26 : index
      %223 = memref.load %arg3[%c26] : memref<98xf32, #tpu.memory_space<smem>>
      %c3_120 = arith.constant 3 : index
      %c0_121 = arith.constant 0 : index
      %224 = vector.load %arg7[%c3_120, %c0_121] : memref<22x16xf32, #tpu.memory_space<vmem>>, vector<16x16xf32>
      %225 = vector.broadcast %223 : f32 to vector<16x16xf32>
      %226 = arith.mulf %225, %224 : vector<16x16xf32>
      %227 = arith.addf %222, %226 : vector<16x16xf32>
      %c33 = arith.constant 33 : index
      %228 = memref.load %arg3[%c33] : memref<98xf32, #tpu.memory_space<smem>>
      %c4_122 = arith.constant 4 : index
      %c0_123 = arith.constant 0 : index
      %229 = vector.load %arg7[%c4_122, %c0_123] : memref<22x16xf32, #tpu.memory_space<vmem>>, vector<16x16xf32>
      %230 = vector.broadcast %228 : f32 to vector<16x16xf32>
      %231 = arith.mulf %230, %229 : vector<16x16xf32>
      %232 = arith.addf %227, %231 : vector<16x16xf32>
      %c40 = arith.constant 40 : index
      %233 = memref.load %arg3[%c40] : memref<98xf32, #tpu.memory_space<smem>>
      %c5_124 = arith.constant 5 : index
      %c0_125 = arith.constant 0 : index
      %234 = vector.load %arg7[%c5_124, %c0_125] : memref<22x16xf32, #tpu.memory_space<vmem>>, vector<16x16xf32>
      %235 = vector.broadcast %233 : f32 to vector<16x16xf32>
      %236 = arith.mulf %235, %234 : vector<16x16xf32>
      %237 = arith.addf %232, %236 : vector<16x16xf32>
      %c47 = arith.constant 47 : index
      %238 = memref.load %arg3[%c47] : memref<98xf32, #tpu.memory_space<smem>>
      %c6_126 = arith.constant 6 : index
      %c0_127 = arith.constant 0 : index
      %239 = vector.load %arg7[%c6_126, %c0_127] : memref<22x16xf32, #tpu.memory_space<vmem>>, vector<16x16xf32>
      %240 = vector.broadcast %238 : f32 to vector<16x16xf32>
      %241 = arith.mulf %240, %239 : vector<16x16xf32>
      %242 = arith.addf %237, %241 : vector<16x16xf32>
      %243 = arith.addf %205, %242 : vector<16x16xf32>
      %c0_128 = arith.constant 0 : index
      %c5_129 = arith.constant 5 : index
      %c131 = arith.constant 131 : index
      %244 = vector.load %arg5[%c0_128, %c5_129, %c131] : memref<2x32x256xf32, #tpu.memory_space<vmem>>, vector<1x22x16xf32>
      %245 = vector.shape_cast %244 : vector<1x22x16xf32> to vector<22x16xf32>
      %c0_130 = arith.constant 0 : index
      %c0_131 = arith.constant 0 : index
      %246 = vector.load %arg7[%c0_130, %c0_131] : memref<22x16xf32, #tpu.memory_space<vmem>>, vector<22x16xf32>
      tpu.vector_store %arg7[%c0_130, %c0_131], %245 {strides = array<i32>} : memref<22x16xf32, #tpu.memory_space<vmem>>, vector<22x16xf32>,
      %c6_132 = arith.constant 6 : index
      %247 = memref.load %arg3[%c6_132] : memref<98xf32, #tpu.memory_space<smem>>
      %c0_133 = arith.constant 0 : index
      %c0_134 = arith.constant 0 : index
      %248 = vector.load %arg7[%c0_133, %c0_134] : memref<22x16xf32, #tpu.memory_space<vmem>>, vector<16x16xf32>
      %249 = vector.broadcast %247 : f32 to vector<16x16xf32>
      %250 = arith.mulf %249, %248 : vector<16x16xf32>
      %c13 = arith.constant 13 : index
      %251 = memref.load %arg3[%c13] : memref<98xf32, #tpu.memory_space<smem>>
      %c1_135 = arith.constant 1 : index
      %c0_136 = arith.constant 0 : index
      %252 = vector.load %arg7[%c1_135, %c0_136] : memref<22x16xf32, #tpu.memory_space<vmem>>, vector<16x16xf32>
      %253 = vector.broadcast %251 : f32 to vector<16x16xf32>
      %254 = arith.mulf %253, %252 : vector<16x16xf32>
      %255 = arith.addf %250, %254 : vector<16x16xf32>
      %c20 = arith.constant 20 : index
      %256 = memref.load %arg3[%c20] : memref<98xf32, #tpu.memory_space<smem>>
      %c2_137 = arith.constant 2 : index
      %c0_138 = arith.constant 0 : index
      %257 = vector.load %arg7[%c2_137, %c0_138] : memref<22x16xf32, #tpu.memory_space<vmem>>, vector<16x16xf32>
      %258 = vector.broadcast %256 : f32 to vector<16x16xf32>
      %259 = arith.mulf %258, %257 : vector<16x16xf32>
      %260 = arith.addf %255, %259 : vector<16x16xf32>
      %c27 = arith.constant 27 : index
      %261 = memref.load %arg3[%c27] : memref<98xf32, #tpu.memory_space<smem>>
      %c3_139 = arith.constant 3 : index
      %c0_140 = arith.constant 0 : index
      %262 = vector.load %arg7[%c3_139, %c0_140] : memref<22x16xf32, #tpu.memory_space<vmem>>, vector<16x16xf32>
      %263 = vector.broadcast %261 : f32 to vector<16x16xf32>
      %264 = arith.mulf %263, %262 : vector<16x16xf32>
      %265 = arith.addf %260, %264 : vector<16x16xf32>
      %c34 = arith.constant 34 : index
      %266 = memref.load %arg3[%c34] : memref<98xf32, #tpu.memory_space<smem>>
      %c4_141 = arith.constant 4 : index
      %c0_142 = arith.constant 0 : index
      %267 = vector.load %arg7[%c4_141, %c0_142] : memref<22x16xf32, #tpu.memory_space<vmem>>, vector<16x16xf32>
      %268 = vector.broadcast %266 : f32 to vector<16x16xf32>
      %269 = arith.mulf %268, %267 : vector<16x16xf32>
      %270 = arith.addf %265, %269 : vector<16x16xf32>
      %c41 = arith.constant 41 : index
      %271 = memref.load %arg3[%c41] : memref<98xf32, #tpu.memory_space<smem>>
      %c5_143 = arith.constant 5 : index
      %c0_144 = arith.constant 0 : index
      %272 = vector.load %arg7[%c5_143, %c0_144] : memref<22x16xf32, #tpu.memory_space<vmem>>, vector<16x16xf32>
      %273 = vector.broadcast %271 : f32 to vector<16x16xf32>
      %274 = arith.mulf %273, %272 : vector<16x16xf32>
      %275 = arith.addf %270, %274 : vector<16x16xf32>
      %c48 = arith.constant 48 : index
      %276 = memref.load %arg3[%c48] : memref<98xf32, #tpu.memory_space<smem>>
      %c6_145 = arith.constant 6 : index
      %c0_146 = arith.constant 0 : index
      %277 = vector.load %arg7[%c6_145, %c0_146] : memref<22x16xf32, #tpu.memory_space<vmem>>, vector<16x16xf32>
      %278 = vector.broadcast %276 : f32 to vector<16x16xf32>
      %279 = arith.mulf %278, %277 : vector<16x16xf32>
      %280 = arith.addf %275, %279 : vector<16x16xf32>
      %281 = arith.addf %243, %280 : vector<16x16xf32>
      %c0_147 = arith.constant 0 : index
      %c5_148 = arith.constant 5 : index
      %c125_149 = arith.constant 125 : index
      %282 = vector.load %arg6[%c0_147, %c5_148, %c125_149] : memref<2x32x256xf32, #tpu.memory_space<vmem>>, vector<1x22x16xf32>
      %283 = vector.shape_cast %282 : vector<1x22x16xf32> to vector<22x16xf32>
      %c0_150 = arith.constant 0 : index
      %c0_151 = arith.constant 0 : index
      %284 = vector.load %arg7[%c0_150, %c0_151] : memref<22x16xf32, #tpu.memory_space<vmem>>, vector<22x16xf32>
      tpu.vector_store %arg7[%c0_150, %c0_151], %283 {strides = array<i32>} : memref<22x16xf32, #tpu.memory_space<vmem>>, vector<22x16xf32>,
      %c49 = arith.constant 49 : index
      %285 = memref.load %arg3[%c49] : memref<98xf32, #tpu.memory_space<smem>>
      %c0_152 = arith.constant 0 : index
      %c0_153 = arith.constant 0 : index
      %286 = vector.load %arg7[%c0_152, %c0_153] : memref<22x16xf32, #tpu.memory_space<vmem>>, vector<16x16xf32>
      %287 = vector.broadcast %285 : f32 to vector<16x16xf32>
      %288 = arith.mulf %287, %286 : vector<16x16xf32>
      %c56 = arith.constant 56 : index
      %289 = memref.load %arg3[%c56] : memref<98xf32, #tpu.memory_space<smem>>
      %c1_154 = arith.constant 1 : index
      %c0_155 = arith.constant 0 : index
      %290 = vector.load %arg7[%c1_154, %c0_155] : memref<22x16xf32, #tpu.memory_space<vmem>>, vector<16x16xf32>
      %291 = vector.broadcast %289 : f32 to vector<16x16xf32>
      %292 = arith.mulf %291, %290 : vector<16x16xf32>
      %293 = arith.addf %288, %292 : vector<16x16xf32>
      %c63 = arith.constant 63 : index
      %294 = memref.load %arg3[%c63] : memref<98xf32, #tpu.memory_space<smem>>
      %c2_156 = arith.constant 2 : index
      %c0_157 = arith.constant 0 : index
      %295 = vector.load %arg7[%c2_156, %c0_157] : memref<22x16xf32, #tpu.memory_space<vmem>>, vector<16x16xf32>
      %296 = vector.broadcast %294 : f32 to vector<16x16xf32>
      %297 = arith.mulf %296, %295 : vector<16x16xf32>
      %298 = arith.addf %293, %297 : vector<16x16xf32>
      %c70 = arith.constant 70 : index
      %299 = memref.load %arg3[%c70] : memref<98xf32, #tpu.memory_space<smem>>
      %c3_158 = arith.constant 3 : index
      %c0_159 = arith.constant 0 : index
      %300 = vector.load %arg7[%c3_158, %c0_159] : memref<22x16xf32, #tpu.memory_space<vmem>>, vector<16x16xf32>
      %301 = vector.broadcast %299 : f32 to vector<16x16xf32>
      %302 = arith.mulf %301, %300 : vector<16x16xf32>
      %303 = arith.addf %298, %302 : vector<16x16xf32>
      %c77 = arith.constant 77 : index
      %304 = memref.load %arg3[%c77] : memref<98xf32, #tpu.memory_space<smem>>
      %c4_160 = arith.constant 4 : index
      %c0_161 = arith.constant 0 : index
      %305 = vector.load %arg7[%c4_160, %c0_161] : memref<22x16xf32, #tpu.memory_space<vmem>>, vector<16x16xf32>
      %306 = vector.broadcast %304 : f32 to vector<16x16xf32>
      %307 = arith.mulf %306, %305 : vector<16x16xf32>
      %308 = arith.addf %303, %307 : vector<16x16xf32>
      %c84 = arith.constant 84 : index
      %309 = memref.load %arg3[%c84] : memref<98xf32, #tpu.memory_space<smem>>
      %c5_162 = arith.constant 5 : index
      %c0_163 = arith.constant 0 : index
      %310 = vector.load %arg7[%c5_162, %c0_163] : memref<22x16xf32, #tpu.memory_space<vmem>>, vector<16x16xf32>
      %311 = vector.broadcast %309 : f32 to vector<16x16xf32>
      %312 = arith.mulf %311, %310 : vector<16x16xf32>
      %313 = arith.addf %308, %312 : vector<16x16xf32>
      %c91 = arith.constant 91 : index
      %314 = memref.load %arg3[%c91] : memref<98xf32, #tpu.memory_space<smem>>
      %c6_164 = arith.constant 6 : index
      %c0_165 = arith.constant 0 : index
      %315 = vector.load %arg7[%c6_164, %c0_165] : memref<22x16xf32, #tpu.memory_space<vmem>>, vector<16x16xf32>
      %316 = vector.broadcast %314 : f32 to vector<16x16xf32>
      %317 = arith.mulf %316, %315 : vector<16x16xf32>
      %318 = arith.addf %313, %317 : vector<16x16xf32>
      %319 = arith.addf %281, %318 : vector<16x16xf32>
      %c0_166 = arith.constant 0 : index
      %c5_167 = arith.constant 5 : index
      %c126_168 = arith.constant 126 : index
      %320 = vector.load %arg6[%c0_166, %c5_167, %c126_168] : memref<2x32x256xf32, #tpu.memory_space<vmem>>, vector<1x22x16xf32>
      %321 = vector.shape_cast %320 : vector<1x22x16xf32> to vector<22x16xf32>
      %c0_169 = arith.constant 0 : index
      %c0_170 = arith.constant 0 : index
      %322 = vector.load %arg7[%c0_169, %c0_170] : memref<22x16xf32, #tpu.memory_space<vmem>>, vector<22x16xf32>
      tpu.vector_store %arg7[%c0_169, %c0_170], %321 {strides = array<i32>} : memref<22x16xf32, #tpu.memory_space<vmem>>, vector<22x16xf32>,
      %c50 = arith.constant 50 : index
      %323 = memref.load %arg3[%c50] : memref<98xf32, #tpu.memory_space<smem>>
      %c0_171 = arith.constant 0 : index
      %c0_172 = arith.constant 0 : index
      %324 = vector.load %arg7[%c0_171, %c0_172] : memref<22x16xf32, #tpu.memory_space<vmem>>, vector<16x16xf32>
      %325 = vector.broadcast %323 : f32 to vector<16x16xf32>
      %326 = arith.mulf %325, %324 : vector<16x16xf32>
      %c57 = arith.constant 57 : index
      %327 = memref.load %arg3[%c57] : memref<98xf32, #tpu.memory_space<smem>>
      %c1_173 = arith.constant 1 : index
      %c0_174 = arith.constant 0 : index
      %328 = vector.load %arg7[%c1_173, %c0_174] : memref<22x16xf32, #tpu.memory_space<vmem>>, vector<16x16xf32>
      %329 = vector.broadcast %327 : f32 to vector<16x16xf32>
      %330 = arith.mulf %329, %328 : vector<16x16xf32>
      %331 = arith.addf %326, %330 : vector<16x16xf32>
      %c64 = arith.constant 64 : index
      %332 = memref.load %arg3[%c64] : memref<98xf32, #tpu.memory_space<smem>>
      %c2_175 = arith.constant 2 : index
      %c0_176 = arith.constant 0 : index
      %333 = vector.load %arg7[%c2_175, %c0_176] : memref<22x16xf32, #tpu.memory_space<vmem>>, vector<16x16xf32>
      %334 = vector.broadcast %332 : f32 to vector<16x16xf32>
      %335 = arith.mulf %334, %333 : vector<16x16xf32>
      %336 = arith.addf %331, %335 : vector<16x16xf32>
      %c71 = arith.constant 71 : index
      %337 = memref.load %arg3[%c71] : memref<98xf32, #tpu.memory_space<smem>>
      %c3_177 = arith.constant 3 : index
      %c0_178 = arith.constant 0 : index
      %338 = vector.load %arg7[%c3_177, %c0_178] : memref<22x16xf32, #tpu.memory_space<vmem>>, vector<16x16xf32>
      %339 = vector.broadcast %337 : f32 to vector<16x16xf32>
      %340 = arith.mulf %339, %338 : vector<16x16xf32>
      %341 = arith.addf %336, %340 : vector<16x16xf32>
      %c78 = arith.constant 78 : index
      %342 = memref.load %arg3[%c78] : memref<98xf32, #tpu.memory_space<smem>>
      %c4_179 = arith.constant 4 : index
      %c0_180 = arith.constant 0 : index
      %343 = vector.load %arg7[%c4_179, %c0_180] : memref<22x16xf32, #tpu.memory_space<vmem>>, vector<16x16xf32>
      %344 = vector.broadcast %342 : f32 to vector<16x16xf32>
      %345 = arith.mulf %344, %343 : vector<16x16xf32>
      %346 = arith.addf %341, %345 : vector<16x16xf32>
      %c85 = arith.constant 85 : index
      %347 = memref.load %arg3[%c85] : memref<98xf32, #tpu.memory_space<smem>>
      %c5_181 = arith.constant 5 : index
      %c0_182 = arith.constant 0 : index
      %348 = vector.load %arg7[%c5_181, %c0_182] : memref<22x16xf32, #tpu.memory_space<vmem>>, vector<16x16xf32>
      %349 = vector.broadcast %347 : f32 to vector<16x16xf32>
      %350 = arith.mulf %349, %348 : vector<16x16xf32>
      %351 = arith.addf %346, %350 : vector<16x16xf32>
      %c92 = arith.constant 92 : index
      %352 = memref.load %arg3[%c92] : memref<98xf32, #tpu.memory_space<smem>>
      %c6_183 = arith.constant 6 : index
      %c0_184 = arith.constant 0 : index
      %353 = vector.load %arg7[%c6_183, %c0_184] : memref<22x16xf32, #tpu.memory_space<vmem>>, vector<16x16xf32>
      %354 = vector.broadcast %352 : f32 to vector<16x16xf32>
      %355 = arith.mulf %354, %353 : vector<16x16xf32>
      %356 = arith.addf %351, %355 : vector<16x16xf32>
      %357 = arith.addf %319, %356 : vector<16x16xf32>
      %c0_185 = arith.constant 0 : index
      %c5_186 = arith.constant 5 : index
      %c127_187 = arith.constant 127 : index
      %358 = vector.load %arg6[%c0_185, %c5_186, %c127_187] : memref<2x32x256xf32, #tpu.memory_space<vmem>>, vector<1x22x16xf32>
      %359 = vector.shape_cast %358 : vector<1x22x16xf32> to vector<22x16xf32>
      %c0_188 = arith.constant 0 : index
      %c0_189 = arith.constant 0 : index
      %360 = vector.load %arg7[%c0_188, %c0_189] : memref<22x16xf32, #tpu.memory_space<vmem>>, vector<22x16xf32>
      tpu.vector_store %arg7[%c0_188, %c0_189], %359 {strides = array<i32>} : memref<22x16xf32, #tpu.memory_space<vmem>>, vector<22x16xf32>,
      %c51 = arith.constant 51 : index
      %361 = memref.load %arg3[%c51] : memref<98xf32, #tpu.memory_space<smem>>
      %c0_190 = arith.constant 0 : index
      %c0_191 = arith.constant 0 : index
      %362 = vector.load %arg7[%c0_190, %c0_191] : memref<22x16xf32, #tpu.memory_space<vmem>>, vector<16x16xf32>
      %363 = vector.broadcast %361 : f32 to vector<16x16xf32>
      %364 = arith.mulf %363, %362 : vector<16x16xf32>
      %c58 = arith.constant 58 : index
      %365 = memref.load %arg3[%c58] : memref<98xf32, #tpu.memory_space<smem>>
      %c1_192 = arith.constant 1 : index
      %c0_193 = arith.constant 0 : index
      %366 = vector.load %arg7[%c1_192, %c0_193] : memref<22x16xf32, #tpu.memory_space<vmem>>, vector<16x16xf32>
      %367 = vector.broadcast %365 : f32 to vector<16x16xf32>
      %368 = arith.mulf %367, %366 : vector<16x16xf32>
      %369 = arith.addf %364, %368 : vector<16x16xf32>
      %c65 = arith.constant 65 : index
      %370 = memref.load %arg3[%c65] : memref<98xf32, #tpu.memory_space<smem>>
      %c2_194 = arith.constant 2 : index
      %c0_195 = arith.constant 0 : index
      %371 = vector.load %arg7[%c2_194, %c0_195] : memref<22x16xf32, #tpu.memory_space<vmem>>, vector<16x16xf32>
      %372 = vector.broadcast %370 : f32 to vector<16x16xf32>
      %373 = arith.mulf %372, %371 : vector<16x16xf32>
      %374 = arith.addf %369, %373 : vector<16x16xf32>
      %c72 = arith.constant 72 : index
      %375 = memref.load %arg3[%c72] : memref<98xf32, #tpu.memory_space<smem>>
      %c3_196 = arith.constant 3 : index
      %c0_197 = arith.constant 0 : index
      %376 = vector.load %arg7[%c3_196, %c0_197] : memref<22x16xf32, #tpu.memory_space<vmem>>, vector<16x16xf32>
      %377 = vector.broadcast %375 : f32 to vector<16x16xf32>
      %378 = arith.mulf %377, %376 : vector<16x16xf32>
      %379 = arith.addf %374, %378 : vector<16x16xf32>
      %c79 = arith.constant 79 : index
      %380 = memref.load %arg3[%c79] : memref<98xf32, #tpu.memory_space<smem>>
      %c4_198 = arith.constant 4 : index
      %c0_199 = arith.constant 0 : index
      %381 = vector.load %arg7[%c4_198, %c0_199] : memref<22x16xf32, #tpu.memory_space<vmem>>, vector<16x16xf32>
      %382 = vector.broadcast %380 : f32 to vector<16x16xf32>
      %383 = arith.mulf %382, %381 : vector<16x16xf32>
      %384 = arith.addf %379, %383 : vector<16x16xf32>
      %c86 = arith.constant 86 : index
      %385 = memref.load %arg3[%c86] : memref<98xf32, #tpu.memory_space<smem>>
      %c5_200 = arith.constant 5 : index
      %c0_201 = arith.constant 0 : index
      %386 = vector.load %arg7[%c5_200, %c0_201] : memref<22x16xf32, #tpu.memory_space<vmem>>, vector<16x16xf32>
      %387 = vector.broadcast %385 : f32 to vector<16x16xf32>
      %388 = arith.mulf %387, %386 : vector<16x16xf32>
      %389 = arith.addf %384, %388 : vector<16x16xf32>
      %c93 = arith.constant 93 : index
      %390 = memref.load %arg3[%c93] : memref<98xf32, #tpu.memory_space<smem>>
      %c6_202 = arith.constant 6 : index
      %c0_203 = arith.constant 0 : index
      %391 = vector.load %arg7[%c6_202, %c0_203] : memref<22x16xf32, #tpu.memory_space<vmem>>, vector<16x16xf32>
      %392 = vector.broadcast %390 : f32 to vector<16x16xf32>
      %393 = arith.mulf %392, %391 : vector<16x16xf32>
      %394 = arith.addf %389, %393 : vector<16x16xf32>
      %395 = arith.addf %357, %394 : vector<16x16xf32>
      %c0_204 = arith.constant 0 : index
      %c5_205 = arith.constant 5 : index
      %c128_206 = arith.constant 128 : index
      %396 = vector.load %arg6[%c0_204, %c5_205, %c128_206] : memref<2x32x256xf32, #tpu.memory_space<vmem>>, vector<1x22x16xf32>
      %397 = vector.shape_cast %396 : vector<1x22x16xf32> to vector<22x16xf32>
      %c0_207 = arith.constant 0 : index
      %c0_208 = arith.constant 0 : index
      %398 = vector.load %arg7[%c0_207, %c0_208] : memref<22x16xf32, #tpu.memory_space<vmem>>, vector<22x16xf32>
      tpu.vector_store %arg7[%c0_207, %c0_208], %397 {strides = array<i32>} : memref<22x16xf32, #tpu.memory_space<vmem>>, vector<22x16xf32>,
      %c52 = arith.constant 52 : index
      %399 = memref.load %arg3[%c52] : memref<98xf32, #tpu.memory_space<smem>>
      %c0_209 = arith.constant 0 : index
      %c0_210 = arith.constant 0 : index
      %400 = vector.load %arg7[%c0_209, %c0_210] : memref<22x16xf32, #tpu.memory_space<vmem>>, vector<16x16xf32>
      %401 = vector.broadcast %399 : f32 to vector<16x16xf32>
      %402 = arith.mulf %401, %400 : vector<16x16xf32>
      %c59 = arith.constant 59 : index
      %403 = memref.load %arg3[%c59] : memref<98xf32, #tpu.memory_space<smem>>
      %c1_211 = arith.constant 1 : index
      %c0_212 = arith.constant 0 : index
      %404 = vector.load %arg7[%c1_211, %c0_212] : memref<22x16xf32, #tpu.memory_space<vmem>>, vector<16x16xf32>
      %405 = vector.broadcast %403 : f32 to vector<16x16xf32>
      %406 = arith.mulf %405, %404 : vector<16x16xf32>
      %407 = arith.addf %402, %406 : vector<16x16xf32>
      %c66 = arith.constant 66 : index
      %408 = memref.load %arg3[%c66] : memref<98xf32, #tpu.memory_space<smem>>
      %c2_213 = arith.constant 2 : index
      %c0_214 = arith.constant 0 : index
      %409 = vector.load %arg7[%c2_213, %c0_214] : memref<22x16xf32, #tpu.memory_space<vmem>>, vector<16x16xf32>
      %410 = vector.broadcast %408 : f32 to vector<16x16xf32>
      %411 = arith.mulf %410, %409 : vector<16x16xf32>
      %412 = arith.addf %407, %411 : vector<16x16xf32>
      %c73 = arith.constant 73 : index
      %413 = memref.load %arg3[%c73] : memref<98xf32, #tpu.memory_space<smem>>
      %c3_215 = arith.constant 3 : index
      %c0_216 = arith.constant 0 : index
      %414 = vector.load %arg7[%c3_215, %c0_216] : memref<22x16xf32, #tpu.memory_space<vmem>>, vector<16x16xf32>
      %415 = vector.broadcast %413 : f32 to vector<16x16xf32>
      %416 = arith.mulf %415, %414 : vector<16x16xf32>
      %417 = arith.addf %412, %416 : vector<16x16xf32>
      %c80 = arith.constant 80 : index
      %418 = memref.load %arg3[%c80] : memref<98xf32, #tpu.memory_space<smem>>
      %c4_217 = arith.constant 4 : index
      %c0_218 = arith.constant 0 : index
      %419 = vector.load %arg7[%c4_217, %c0_218] : memref<22x16xf32, #tpu.memory_space<vmem>>, vector<16x16xf32>
      %420 = vector.broadcast %418 : f32 to vector<16x16xf32>
      %421 = arith.mulf %420, %419 : vector<16x16xf32>
      %422 = arith.addf %417, %421 : vector<16x16xf32>
      %c87 = arith.constant 87 : index
      %423 = memref.load %arg3[%c87] : memref<98xf32, #tpu.memory_space<smem>>
      %c5_219 = arith.constant 5 : index
      %c0_220 = arith.constant 0 : index
      %424 = vector.load %arg7[%c5_219, %c0_220] : memref<22x16xf32, #tpu.memory_space<vmem>>, vector<16x16xf32>
      %425 = vector.broadcast %423 : f32 to vector<16x16xf32>
      %426 = arith.mulf %425, %424 : vector<16x16xf32>
      %427 = arith.addf %422, %426 : vector<16x16xf32>
      %c94 = arith.constant 94 : index
      %428 = memref.load %arg3[%c94] : memref<98xf32, #tpu.memory_space<smem>>
      %c6_221 = arith.constant 6 : index
      %c0_222 = arith.constant 0 : index
      %429 = vector.load %arg7[%c6_221, %c0_222] : memref<22x16xf32, #tpu.memory_space<vmem>>, vector<16x16xf32>
      %430 = vector.broadcast %428 : f32 to vector<16x16xf32>
      %431 = arith.mulf %430, %429 : vector<16x16xf32>
      %432 = arith.addf %427, %431 : vector<16x16xf32>
      %433 = arith.addf %395, %432 : vector<16x16xf32>
      %c0_223 = arith.constant 0 : index
      %c5_224 = arith.constant 5 : index
      %c129_225 = arith.constant 129 : index
      %434 = vector.load %arg6[%c0_223, %c5_224, %c129_225] : memref<2x32x256xf32, #tpu.memory_space<vmem>>, vector<1x22x16xf32>
      %435 = vector.shape_cast %434 : vector<1x22x16xf32> to vector<22x16xf32>
      %c0_226 = arith.constant 0 : index
      %c0_227 = arith.constant 0 : index
      %436 = vector.load %arg7[%c0_226, %c0_227] : memref<22x16xf32, #tpu.memory_space<vmem>>, vector<22x16xf32>
      tpu.vector_store %arg7[%c0_226, %c0_227], %435 {strides = array<i32>} : memref<22x16xf32, #tpu.memory_space<vmem>>, vector<22x16xf32>,
      %c53 = arith.constant 53 : index
      %437 = memref.load %arg3[%c53] : memref<98xf32, #tpu.memory_space<smem>>
      %c0_228 = arith.constant 0 : index
      %c0_229 = arith.constant 0 : index
      %438 = vector.load %arg7[%c0_228, %c0_229] : memref<22x16xf32, #tpu.memory_space<vmem>>, vector<16x16xf32>
      %439 = vector.broadcast %437 : f32 to vector<16x16xf32>
      %440 = arith.mulf %439, %438 : vector<16x16xf32>
      %c60 = arith.constant 60 : index
      %441 = memref.load %arg3[%c60] : memref<98xf32, #tpu.memory_space<smem>>
      %c1_230 = arith.constant 1 : index
      %c0_231 = arith.constant 0 : index
      %442 = vector.load %arg7[%c1_230, %c0_231] : memref<22x16xf32, #tpu.memory_space<vmem>>, vector<16x16xf32>
      %443 = vector.broadcast %441 : f32 to vector<16x16xf32>
      %444 = arith.mulf %443, %442 : vector<16x16xf32>
      %445 = arith.addf %440, %444 : vector<16x16xf32>
      %c67 = arith.constant 67 : index
      %446 = memref.load %arg3[%c67] : memref<98xf32, #tpu.memory_space<smem>>
      %c2_232 = arith.constant 2 : index
      %c0_233 = arith.constant 0 : index
      %447 = vector.load %arg7[%c2_232, %c0_233] : memref<22x16xf32, #tpu.memory_space<vmem>>, vector<16x16xf32>
      %448 = vector.broadcast %446 : f32 to vector<16x16xf32>
      %449 = arith.mulf %448, %447 : vector<16x16xf32>
      %450 = arith.addf %445, %449 : vector<16x16xf32>
      %c74 = arith.constant 74 : index
      %451 = memref.load %arg3[%c74] : memref<98xf32, #tpu.memory_space<smem>>
      %c3_234 = arith.constant 3 : index
      %c0_235 = arith.constant 0 : index
      %452 = vector.load %arg7[%c3_234, %c0_235] : memref<22x16xf32, #tpu.memory_space<vmem>>, vector<16x16xf32>
      %453 = vector.broadcast %451 : f32 to vector<16x16xf32>
      %454 = arith.mulf %453, %452 : vector<16x16xf32>
      %455 = arith.addf %450, %454 : vector<16x16xf32>
      %c81 = arith.constant 81 : index
      %456 = memref.load %arg3[%c81] : memref<98xf32, #tpu.memory_space<smem>>
      %c4_236 = arith.constant 4 : index
      %c0_237 = arith.constant 0 : index
      %457 = vector.load %arg7[%c4_236, %c0_237] : memref<22x16xf32, #tpu.memory_space<vmem>>, vector<16x16xf32>
      %458 = vector.broadcast %456 : f32 to vector<16x16xf32>
      %459 = arith.mulf %458, %457 : vector<16x16xf32>
      %460 = arith.addf %455, %459 : vector<16x16xf32>
      %c88 = arith.constant 88 : index
      %461 = memref.load %arg3[%c88] : memref<98xf32, #tpu.memory_space<smem>>
      %c5_238 = arith.constant 5 : index
      %c0_239 = arith.constant 0 : index
      %462 = vector.load %arg7[%c5_238, %c0_239] : memref<22x16xf32, #tpu.memory_space<vmem>>, vector<16x16xf32>
      %463 = vector.broadcast %461 : f32 to vector<16x16xf32>
      %464 = arith.mulf %463, %462 : vector<16x16xf32>
      %465 = arith.addf %460, %464 : vector<16x16xf32>
      %c95 = arith.constant 95 : index
      %466 = memref.load %arg3[%c95] : memref<98xf32, #tpu.memory_space<smem>>
      %c6_240 = arith.constant 6 : index
      %c0_241 = arith.constant 0 : index
      %467 = vector.load %arg7[%c6_240, %c0_241] : memref<22x16xf32, #tpu.memory_space<vmem>>, vector<16x16xf32>
      %468 = vector.broadcast %466 : f32 to vector<16x16xf32>
      %469 = arith.mulf %468, %467 : vector<16x16xf32>
      %470 = arith.addf %465, %469 : vector<16x16xf32>
      %471 = arith.addf %433, %470 : vector<16x16xf32>
      %c0_242 = arith.constant 0 : index
      %c5_243 = arith.constant 5 : index
      %c130_244 = arith.constant 130 : index
      %472 = vector.load %arg6[%c0_242, %c5_243, %c130_244] : memref<2x32x256xf32, #tpu.memory_space<vmem>>, vector<1x22x16xf32>
      %473 = vector.shape_cast %472 : vector<1x22x16xf32> to vector<22x16xf32>
      %c0_245 = arith.constant 0 : index
      %c0_246 = arith.constant 0 : index
      %474 = vector.load %arg7[%c0_245, %c0_246] : memref<22x16xf32, #tpu.memory_space<vmem>>, vector<22x16xf32>
      tpu.vector_store %arg7[%c0_245, %c0_246], %473 {strides = array<i32>} : memref<22x16xf32, #tpu.memory_space<vmem>>, vector<22x16xf32>,
      %c54 = arith.constant 54 : index
      %475 = memref.load %arg3[%c54] : memref<98xf32, #tpu.memory_space<smem>>
      %c0_247 = arith.constant 0 : index
      %c0_248 = arith.constant 0 : index
      %476 = vector.load %arg7[%c0_247, %c0_248] : memref<22x16xf32, #tpu.memory_space<vmem>>, vector<16x16xf32>
      %477 = vector.broadcast %475 : f32 to vector<16x16xf32>
      %478 = arith.mulf %477, %476 : vector<16x16xf32>
      %c61 = arith.constant 61 : index
      %479 = memref.load %arg3[%c61] : memref<98xf32, #tpu.memory_space<smem>>
      %c1_249 = arith.constant 1 : index
      %c0_250 = arith.constant 0 : index
      %480 = vector.load %arg7[%c1_249, %c0_250] : memref<22x16xf32, #tpu.memory_space<vmem>>, vector<16x16xf32>
      %481 = vector.broadcast %479 : f32 to vector<16x16xf32>
      %482 = arith.mulf %481, %480 : vector<16x16xf32>
      %483 = arith.addf %478, %482 : vector<16x16xf32>
      %c68 = arith.constant 68 : index
      %484 = memref.load %arg3[%c68] : memref<98xf32, #tpu.memory_space<smem>>
      %c2_251 = arith.constant 2 : index
      %c0_252 = arith.constant 0 : index
      %485 = vector.load %arg7[%c2_251, %c0_252] : memref<22x16xf32, #tpu.memory_space<vmem>>, vector<16x16xf32>
      %486 = vector.broadcast %484 : f32 to vector<16x16xf32>
      %487 = arith.mulf %486, %485 : vector<16x16xf32>
      %488 = arith.addf %483, %487 : vector<16x16xf32>
      %c75 = arith.constant 75 : index
      %489 = memref.load %arg3[%c75] : memref<98xf32, #tpu.memory_space<smem>>
      %c3_253 = arith.constant 3 : index
      %c0_254 = arith.constant 0 : index
      %490 = vector.load %arg7[%c3_253, %c0_254] : memref<22x16xf32, #tpu.memory_space<vmem>>, vector<16x16xf32>
      %491 = vector.broadcast %489 : f32 to vector<16x16xf32>
      %492 = arith.mulf %491, %490 : vector<16x16xf32>
      %493 = arith.addf %488, %492 : vector<16x16xf32>
      %c82 = arith.constant 82 : index
      %494 = memref.load %arg3[%c82] : memref<98xf32, #tpu.memory_space<smem>>
      %c4_255 = arith.constant 4 : index
      %c0_256 = arith.constant 0 : index
      %495 = vector.load %arg7[%c4_255, %c0_256] : memref<22x16xf32, #tpu.memory_space<vmem>>, vector<16x16xf32>
      %496 = vector.broadcast %494 : f32 to vector<16x16xf32>
      %497 = arith.mulf %496, %495 : vector<16x16xf32>
      %498 = arith.addf %493, %497 : vector<16x16xf32>
      %c89 = arith.constant 89 : index
      %499 = memref.load %arg3[%c89] : memref<98xf32, #tpu.memory_space<smem>>
      %c5_257 = arith.constant 5 : index
      %c0_258 = arith.constant 0 : index
      %500 = vector.load %arg7[%c5_257, %c0_258] : memref<22x16xf32, #tpu.memory_space<vmem>>, vector<16x16xf32>
      %501 = vector.broadcast %499 : f32 to vector<16x16xf32>
      %502 = arith.mulf %501, %500 : vector<16x16xf32>
      %503 = arith.addf %498, %502 : vector<16x16xf32>
      %c96 = arith.constant 96 : index
      %504 = memref.load %arg3[%c96] : memref<98xf32, #tpu.memory_space<smem>>
      %c6_259 = arith.constant 6 : index
      %c0_260 = arith.constant 0 : index
      %505 = vector.load %arg7[%c6_259, %c0_260] : memref<22x16xf32, #tpu.memory_space<vmem>>, vector<16x16xf32>
      %506 = vector.broadcast %504 : f32 to vector<16x16xf32>
      %507 = arith.mulf %506, %505 : vector<16x16xf32>
      %508 = arith.addf %503, %507 : vector<16x16xf32>
      %509 = arith.addf %471, %508 : vector<16x16xf32>
      %c0_261 = arith.constant 0 : index
      %c5_262 = arith.constant 5 : index
      %c131_263 = arith.constant 131 : index
      %510 = vector.load %arg6[%c0_261, %c5_262, %c131_263] : memref<2x32x256xf32, #tpu.memory_space<vmem>>, vector<1x22x16xf32>
      %511 = vector.shape_cast %510 : vector<1x22x16xf32> to vector<22x16xf32>
      %c0_264 = arith.constant 0 : index
      %c0_265 = arith.constant 0 : index
      %512 = vector.load %arg7[%c0_264, %c0_265] : memref<22x16xf32, #tpu.memory_space<vmem>>, vector<22x16xf32>
      tpu.vector_store %arg7[%c0_264, %c0_265], %511 {strides = array<i32>} : memref<22x16xf32, #tpu.memory_space<vmem>>, vector<22x16xf32>,
      %c55 = arith.constant 55 : index
      %513 = memref.load %arg3[%c55] : memref<98xf32, #tpu.memory_space<smem>>
      %c0_266 = arith.constant 0 : index
      %c0_267 = arith.constant 0 : index
      %514 = vector.load %arg7[%c0_266, %c0_267] : memref<22x16xf32, #tpu.memory_space<vmem>>, vector<16x16xf32>
      %515 = vector.broadcast %513 : f32 to vector<16x16xf32>
      %516 = arith.mulf %515, %514 : vector<16x16xf32>
      %c62 = arith.constant 62 : index
      %517 = memref.load %arg3[%c62] : memref<98xf32, #tpu.memory_space<smem>>
      %c1_268 = arith.constant 1 : index
      %c0_269 = arith.constant 0 : index
      %518 = vector.load %arg7[%c1_268, %c0_269] : memref<22x16xf32, #tpu.memory_space<vmem>>, vector<16x16xf32>
      %519 = vector.broadcast %517 : f32 to vector<16x16xf32>
      %520 = arith.mulf %519, %518 : vector<16x16xf32>
      %521 = arith.addf %516, %520 : vector<16x16xf32>
      %c69 = arith.constant 69 : index
      %522 = memref.load %arg3[%c69] : memref<98xf32, #tpu.memory_space<smem>>
      %c2_270 = arith.constant 2 : index
      %c0_271 = arith.constant 0 : index
      %523 = vector.load %arg7[%c2_270, %c0_271] : memref<22x16xf32, #tpu.memory_space<vmem>>, vector<16x16xf32>
      %524 = vector.broadcast %522 : f32 to vector<16x16xf32>
      %525 = arith.mulf %524, %523 : vector<16x16xf32>
      %526 = arith.addf %521, %525 : vector<16x16xf32>
      %c76 = arith.constant 76 : index
      %527 = memref.load %arg3[%c76] : memref<98xf32, #tpu.memory_space<smem>>
      %c3_272 = arith.constant 3 : index
      %c0_273 = arith.constant 0 : index
      %528 = vector.load %arg7[%c3_272, %c0_273] : memref<22x16xf32, #tpu.memory_space<vmem>>, vector<16x16xf32>
      %529 = vector.broadcast %527 : f32 to vector<16x16xf32>
      %530 = arith.mulf %529, %528 : vector<16x16xf32>
      %531 = arith.addf %526, %530 : vector<16x16xf32>
      %c83 = arith.constant 83 : index
      %532 = memref.load %arg3[%c83] : memref<98xf32, #tpu.memory_space<smem>>
      %c4_274 = arith.constant 4 : index
      %c0_275 = arith.constant 0 : index
      %533 = vector.load %arg7[%c4_274, %c0_275] : memref<22x16xf32, #tpu.memory_space<vmem>>, vector<16x16xf32>
      %534 = vector.broadcast %532 : f32 to vector<16x16xf32>
      %535 = arith.mulf %534, %533 : vector<16x16xf32>
      %536 = arith.addf %531, %535 : vector<16x16xf32>
      %c90 = arith.constant 90 : index
      %537 = memref.load %arg3[%c90] : memref<98xf32, #tpu.memory_space<smem>>
      %c5_276 = arith.constant 5 : index
      %c0_277 = arith.constant 0 : index
      %538 = vector.load %arg7[%c5_276, %c0_277] : memref<22x16xf32, #tpu.memory_space<vmem>>, vector<16x16xf32>
      %539 = vector.broadcast %537 : f32 to vector<16x16xf32>
      %540 = arith.mulf %539, %538 : vector<16x16xf32>
      %541 = arith.addf %536, %540 : vector<16x16xf32>
      %c97 = arith.constant 97 : index
      %542 = memref.load %arg3[%c97] : memref<98xf32, #tpu.memory_space<smem>>
      %c6_278 = arith.constant 6 : index
      %c0_279 = arith.constant 0 : index
      %543 = vector.load %arg7[%c6_278, %c0_279] : memref<22x16xf32, #tpu.memory_space<vmem>>, vector<16x16xf32>
      %544 = vector.broadcast %542 : f32 to vector<16x16xf32>
      %545 = arith.mulf %544, %543 : vector<16x16xf32>
      %546 = arith.addf %541, %545 : vector<16x16xf32>
      %547 = arith.addf %509, %546 : vector<16x16xf32>
      %548 = arith.negf %547 : vector<16x16xf32>
      %549 = math.exp %548 : vector<16x16xf32>
      %cst_280 = arith.constant 1.000000e+00 : f32
      %550 = vector.broadcast %cst_280 : f32 to vector<16x16xf32>
      %551 = arith.addf %550, %549 : vector<16x16xf32>
      %552 = arith.divf %550, %551 : vector<16x16xf32>
      %c0_281 = arith.constant 0 : index
      %c0_282 = arith.constant 0 : index
      %c0_283 = arith.constant 0 : index
      %c0_284 = arith.constant 0 : index
      %553 = vector.load %arg4[%c0_281, %c0_282, %c0_283, %c0_284] : memref<2x1x16x16xf32, #tpu.memory_space<vmem>>, vector<1x1x16x16xf32>
      %554 = vector.shape_cast %553 : vector<1x1x16x16xf32> to vector<16x16xf32>
      %555 = vector.shape_cast %552 : vector<16x16xf32> to vector<1x1x16x16xf32>
      tpu.vector_store %arg4[%c0_281, %c0_282, %c0_283, %c0_284], %555 {strides = array<i32>} : memref<2x1x16x16xf32, #tpu.memory_space<vmem>>, vector<1x1x16x16xf32>,
      %cst_285 = arith.constant 0.000000e+00 : f32
      %556 = vector.broadcast %cst_285 : f32 to vector<16x16xf32>
      %c1_286 = arith.constant 1 : index
      %c5_287 = arith.constant 5 : index
      %c125_288 = arith.constant 125 : index
      %557 = vector.load %arg5[%c1_286, %c5_287, %c125_288] : memref<2x32x256xf32, #tpu.memory_space<vmem>>, vector<1x22x16xf32>
      %558 = vector.shape_cast %557 : vector<1x22x16xf32> to vector<22x16xf32>
      %c0_289 = arith.constant 0 : index
      %c0_290 = arith.constant 0 : index
      %559 = vector.load %arg7[%c0_289, %c0_290] : memref<22x16xf32, #tpu.memory_space<vmem>>, vector<22x16xf32>
      tpu.vector_store %arg7[%c0_289, %c0_290], %558 {strides = array<i32>} : memref<22x16xf32, #tpu.memory_space<vmem>>, vector<22x16xf32>,
      %c0_291 = arith.constant 0 : index
      %560 = memref.load %arg3[%c0_291] : memref<98xf32, #tpu.memory_space<smem>>
      %c0_292 = arith.constant 0 : index
      %c0_293 = arith.constant 0 : index
      %561 = vector.load %arg7[%c0_292, %c0_293] : memref<22x16xf32, #tpu.memory_space<vmem>>, vector<16x16xf32>
      %562 = vector.broadcast %560 : f32 to vector<16x16xf32>
      %563 = arith.mulf %562, %561 : vector<16x16xf32>
      %c7_294 = arith.constant 7 : index
      %564 = memref.load %arg3[%c7_294] : memref<98xf32, #tpu.memory_space<smem>>
      %c1_295 = arith.constant 1 : index
      %c0_296 = arith.constant 0 : index
      %565 = vector.load %arg7[%c1_295, %c0_296] : memref<22x16xf32, #tpu.memory_space<vmem>>, vector<16x16xf32>
      %566 = vector.broadcast %564 : f32 to vector<16x16xf32>
      %567 = arith.mulf %566, %565 : vector<16x16xf32>
      %568 = arith.addf %563, %567 : vector<16x16xf32>
      %c14_297 = arith.constant 14 : index
      %569 = memref.load %arg3[%c14_297] : memref<98xf32, #tpu.memory_space<smem>>
      %c2_298 = arith.constant 2 : index
      %c0_299 = arith.constant 0 : index
      %570 = vector.load %arg7[%c2_298, %c0_299] : memref<22x16xf32, #tpu.memory_space<vmem>>, vector<16x16xf32>
      %571 = vector.broadcast %569 : f32 to vector<16x16xf32>
      %572 = arith.mulf %571, %570 : vector<16x16xf32>
      %573 = arith.addf %568, %572 : vector<16x16xf32>
      %c21_300 = arith.constant 21 : index
      %574 = memref.load %arg3[%c21_300] : memref<98xf32, #tpu.memory_space<smem>>
      %c3_301 = arith.constant 3 : index
      %c0_302 = arith.constant 0 : index
      %575 = vector.load %arg7[%c3_301, %c0_302] : memref<22x16xf32, #tpu.memory_space<vmem>>, vector<16x16xf32>
      %576 = vector.broadcast %574 : f32 to vector<16x16xf32>
      %577 = arith.mulf %576, %575 : vector<16x16xf32>
      %578 = arith.addf %573, %577 : vector<16x16xf32>
      %c28_303 = arith.constant 28 : index
      %579 = memref.load %arg3[%c28_303] : memref<98xf32, #tpu.memory_space<smem>>
      %c4_304 = arith.constant 4 : index
      %c0_305 = arith.constant 0 : index
      %580 = vector.load %arg7[%c4_304, %c0_305] : memref<22x16xf32, #tpu.memory_space<vmem>>, vector<16x16xf32>
      %581 = vector.broadcast %579 : f32 to vector<16x16xf32>
      %582 = arith.mulf %581, %580 : vector<16x16xf32>
      %583 = arith.addf %578, %582 : vector<16x16xf32>
      %c35_306 = arith.constant 35 : index
      %584 = memref.load %arg3[%c35_306] : memref<98xf32, #tpu.memory_space<smem>>
      %c5_307 = arith.constant 5 : index
      %c0_308 = arith.constant 0 : index
      %585 = vector.load %arg7[%c5_307, %c0_308] : memref<22x16xf32, #tpu.memory_space<vmem>>, vector<16x16xf32>
      %586 = vector.broadcast %584 : f32 to vector<16x16xf32>
      %587 = arith.mulf %586, %585 : vector<16x16xf32>
      %588 = arith.addf %583, %587 : vector<16x16xf32>
      %c42_309 = arith.constant 42 : index
      %589 = memref.load %arg3[%c42_309] : memref<98xf32, #tpu.memory_space<smem>>
      %c6_310 = arith.constant 6 : index
      %c0_311 = arith.constant 0 : index
      %590 = vector.load %arg7[%c6_310, %c0_311] : memref<22x16xf32, #tpu.memory_space<vmem>>, vector<16x16xf32>
      %591 = vector.broadcast %589 : f32 to vector<16x16xf32>
      %592 = arith.mulf %591, %590 : vector<16x16xf32>
      %593 = arith.addf %588, %592 : vector<16x16xf32>
      %594 = arith.addf %556, %593 : vector<16x16xf32>
      %c1_312 = arith.constant 1 : index
      %c5_313 = arith.constant 5 : index
      %c126_314 = arith.constant 126 : index
      %595 = vector.load %arg5[%c1_312, %c5_313, %c126_314] : memref<2x32x256xf32, #tpu.memory_space<vmem>>, vector<1x22x16xf32>
      %596 = vector.shape_cast %595 : vector<1x22x16xf32> to vector<22x16xf32>
      %c0_315 = arith.constant 0 : index
      %c0_316 = arith.constant 0 : index
      %597 = vector.load %arg7[%c0_315, %c0_316] : memref<22x16xf32, #tpu.memory_space<vmem>>, vector<22x16xf32>
      tpu.vector_store %arg7[%c0_315, %c0_316], %596 {strides = array<i32>} : memref<22x16xf32, #tpu.memory_space<vmem>>, vector<22x16xf32>,
      %c1_317 = arith.constant 1 : index
      %598 = memref.load %arg3[%c1_317] : memref<98xf32, #tpu.memory_space<smem>>
      %c0_318 = arith.constant 0 : index
      %c0_319 = arith.constant 0 : index
      %599 = vector.load %arg7[%c0_318, %c0_319] : memref<22x16xf32, #tpu.memory_space<vmem>>, vector<16x16xf32>
      %600 = vector.broadcast %598 : f32 to vector<16x16xf32>
      %601 = arith.mulf %600, %599 : vector<16x16xf32>
      %c8_320 = arith.constant 8 : index
      %602 = memref.load %arg3[%c8_320] : memref<98xf32, #tpu.memory_space<smem>>
      %c1_321 = arith.constant 1 : index
      %c0_322 = arith.constant 0 : index
      %603 = vector.load %arg7[%c1_321, %c0_322] : memref<22x16xf32, #tpu.memory_space<vmem>>, vector<16x16xf32>
      %604 = vector.broadcast %602 : f32 to vector<16x16xf32>
      %605 = arith.mulf %604, %603 : vector<16x16xf32>
      %606 = arith.addf %601, %605 : vector<16x16xf32>
      %c15_323 = arith.constant 15 : index
      %607 = memref.load %arg3[%c15_323] : memref<98xf32, #tpu.memory_space<smem>>
      %c2_324 = arith.constant 2 : index
      %c0_325 = arith.constant 0 : index
      %608 = vector.load %arg7[%c2_324, %c0_325] : memref<22x16xf32, #tpu.memory_space<vmem>>, vector<16x16xf32>
      %609 = vector.broadcast %607 : f32 to vector<16x16xf32>
      %610 = arith.mulf %609, %608 : vector<16x16xf32>
      %611 = arith.addf %606, %610 : vector<16x16xf32>
      %c22_326 = arith.constant 22 : index
      %612 = memref.load %arg3[%c22_326] : memref<98xf32, #tpu.memory_space<smem>>
      %c3_327 = arith.constant 3 : index
      %c0_328 = arith.constant 0 : index
      %613 = vector.load %arg7[%c3_327, %c0_328] : memref<22x16xf32, #tpu.memory_space<vmem>>, vector<16x16xf32>
      %614 = vector.broadcast %612 : f32 to vector<16x16xf32>
      %615 = arith.mulf %614, %613 : vector<16x16xf32>
      %616 = arith.addf %611, %615 : vector<16x16xf32>
      %c29_329 = arith.constant 29 : index
      %617 = memref.load %arg3[%c29_329] : memref<98xf32, #tpu.memory_space<smem>>
      %c4_330 = arith.constant 4 : index
      %c0_331 = arith.constant 0 : index
      %618 = vector.load %arg7[%c4_330, %c0_331] : memref<22x16xf32, #tpu.memory_space<vmem>>, vector<16x16xf32>
      %619 = vector.broadcast %617 : f32 to vector<16x16xf32>
      %620 = arith.mulf %619, %618 : vector<16x16xf32>
      %621 = arith.addf %616, %620 : vector<16x16xf32>
      %c36_332 = arith.constant 36 : index
      %622 = memref.load %arg3[%c36_332] : memref<98xf32, #tpu.memory_space<smem>>
      %c5_333 = arith.constant 5 : index
      %c0_334 = arith.constant 0 : index
      %623 = vector.load %arg7[%c5_333, %c0_334] : memref<22x16xf32, #tpu.memory_space<vmem>>, vector<16x16xf32>
      %624 = vector.broadcast %622 : f32 to vector<16x16xf32>
      %625 = arith.mulf %624, %623 : vector<16x16xf32>
      %626 = arith.addf %621, %625 : vector<16x16xf32>
      %c43_335 = arith.constant 43 : index
      %627 = memref.load %arg3[%c43_335] : memref<98xf32, #tpu.memory_space<smem>>
      %c6_336 = arith.constant 6 : index
      %c0_337 = arith.constant 0 : index
      %628 = vector.load %arg7[%c6_336, %c0_337] : memref<22x16xf32, #tpu.memory_space<vmem>>, vector<16x16xf32>
      %629 = vector.broadcast %627 : f32 to vector<16x16xf32>
      %630 = arith.mulf %629, %628 : vector<16x16xf32>
      %631 = arith.addf %626, %630 : vector<16x16xf32>
      %632 = arith.addf %594, %631 : vector<16x16xf32>
      %c1_338 = arith.constant 1 : index
      %c5_339 = arith.constant 5 : index
      %c127_340 = arith.constant 127 : index
      %633 = vector.load %arg5[%c1_338, %c5_339, %c127_340] : memref<2x32x256xf32, #tpu.memory_space<vmem>>, vector<1x22x16xf32>
      %634 = vector.shape_cast %633 : vector<1x22x16xf32> to vector<22x16xf32>
      %c0_341 = arith.constant 0 : index
      %c0_342 = arith.constant 0 : index
      %635 = vector.load %arg7[%c0_341, %c0_342] : memref<22x16xf32, #tpu.memory_space<vmem>>, vector<22x16xf32>
      tpu.vector_store %arg7[%c0_341, %c0_342], %634 {strides = array<i32>} : memref<22x16xf32, #tpu.memory_space<vmem>>, vector<22x16xf32>,
      %c2_343 = arith.constant 2 : index
      %636 = memref.load %arg3[%c2_343] : memref<98xf32, #tpu.memory_space<smem>>
      %c0_344 = arith.constant 0 : index
      %c0_345 = arith.constant 0 : index
      %637 = vector.load %arg7[%c0_344, %c0_345] : memref<22x16xf32, #tpu.memory_space<vmem>>, vector<16x16xf32>
      %638 = vector.broadcast %636 : f32 to vector<16x16xf32>
      %639 = arith.mulf %638, %637 : vector<16x16xf32>
      %c9_346 = arith.constant 9 : index
      %640 = memref.load %arg3[%c9_346] : memref<98xf32, #tpu.memory_space<smem>>
      %c1_347 = arith.constant 1 : index
      %c0_348 = arith.constant 0 : index
      %641 = vector.load %arg7[%c1_347, %c0_348] : memref<22x16xf32, #tpu.memory_space<vmem>>, vector<16x16xf32>
      %642 = vector.broadcast %640 : f32 to vector<16x16xf32>
      %643 = arith.mulf %642, %641 : vector<16x16xf32>
      %644 = arith.addf %639, %643 : vector<16x16xf32>
      %c16_349 = arith.constant 16 : index
      %645 = memref.load %arg3[%c16_349] : memref<98xf32, #tpu.memory_space<smem>>
      %c2_350 = arith.constant 2 : index
      %c0_351 = arith.constant 0 : index
      %646 = vector.load %arg7[%c2_350, %c0_351] : memref<22x16xf32, #tpu.memory_space<vmem>>, vector<16x16xf32>
      %647 = vector.broadcast %645 : f32 to vector<16x16xf32>
      %648 = arith.mulf %647, %646 : vector<16x16xf32>
      %649 = arith.addf %644, %648 : vector<16x16xf32>
      %c23_352 = arith.constant 23 : index
      %650 = memref.load %arg3[%c23_352] : memref<98xf32, #tpu.memory_space<smem>>
      %c3_353 = arith.constant 3 : index
      %c0_354 = arith.constant 0 : index
      %651 = vector.load %arg7[%c3_353, %c0_354] : memref<22x16xf32, #tpu.memory_space<vmem>>, vector<16x16xf32>
      %652 = vector.broadcast %650 : f32 to vector<16x16xf32>
      %653 = arith.mulf %652, %651 : vector<16x16xf32>
      %654 = arith.addf %649, %653 : vector<16x16xf32>
      %c30_355 = arith.constant 30 : index
      %655 = memref.load %arg3[%c30_355] : memref<98xf32, #tpu.memory_space<smem>>
      %c4_356 = arith.constant 4 : index
      %c0_357 = arith.constant 0 : index
      %656 = vector.load %arg7[%c4_356, %c0_357] : memref<22x16xf32, #tpu.memory_space<vmem>>, vector<16x16xf32>
      %657 = vector.broadcast %655 : f32 to vector<16x16xf32>
      %658 = arith.mulf %657, %656 : vector<16x16xf32>
      %659 = arith.addf %654, %658 : vector<16x16xf32>
      %c37_358 = arith.constant 37 : index
      %660 = memref.load %arg3[%c37_358] : memref<98xf32, #tpu.memory_space<smem>>
      %c5_359 = arith.constant 5 : index
      %c0_360 = arith.constant 0 : index
      %661 = vector.load %arg7[%c5_359, %c0_360] : memref<22x16xf32, #tpu.memory_space<vmem>>, vector<16x16xf32>
      %662 = vector.broadcast %660 : f32 to vector<16x16xf32>
      %663 = arith.mulf %662, %661 : vector<16x16xf32>
      %664 = arith.addf %659, %663 : vector<16x16xf32>
      %c44_361 = arith.constant 44 : index
      %665 = memref.load %arg3[%c44_361] : memref<98xf32, #tpu.memory_space<smem>>
      %c6_362 = arith.constant 6 : index
      %c0_363 = arith.constant 0 : index
      %666 = vector.load %arg7[%c6_362, %c0_363] : memref<22x16xf32, #tpu.memory_space<vmem>>, vector<16x16xf32>
      %667 = vector.broadcast %665 : f32 to vector<16x16xf32>
      %668 = arith.mulf %667, %666 : vector<16x16xf32>
      %669 = arith.addf %664, %668 : vector<16x16xf32>
      %670 = arith.addf %632, %669 : vector<16x16xf32>
      %c1_364 = arith.constant 1 : index
      %c5_365 = arith.constant 5 : index
      %c128_366 = arith.constant 128 : index
      %671 = vector.load %arg5[%c1_364, %c5_365, %c128_366] : memref<2x32x256xf32, #tpu.memory_space<vmem>>, vector<1x22x16xf32>
      %672 = vector.shape_cast %671 : vector<1x22x16xf32> to vector<22x16xf32>
      %c0_367 = arith.constant 0 : index
      %c0_368 = arith.constant 0 : index
      %673 = vector.load %arg7[%c0_367, %c0_368] : memref<22x16xf32, #tpu.memory_space<vmem>>, vector<22x16xf32>
      tpu.vector_store %arg7[%c0_367, %c0_368], %672 {strides = array<i32>} : memref<22x16xf32, #tpu.memory_space<vmem>>, vector<22x16xf32>,
      %c3_369 = arith.constant 3 : index
      %674 = memref.load %arg3[%c3_369] : memref<98xf32, #tpu.memory_space<smem>>
      %c0_370 = arith.constant 0 : index
      %c0_371 = arith.constant 0 : index
      %675 = vector.load %arg7[%c0_370, %c0_371] : memref<22x16xf32, #tpu.memory_space<vmem>>, vector<16x16xf32>
      %676 = vector.broadcast %674 : f32 to vector<16x16xf32>
      %677 = arith.mulf %676, %675 : vector<16x16xf32>
      %c10_372 = arith.constant 10 : index
      %678 = memref.load %arg3[%c10_372] : memref<98xf32, #tpu.memory_space<smem>>
      %c1_373 = arith.constant 1 : index
      %c0_374 = arith.constant 0 : index
      %679 = vector.load %arg7[%c1_373, %c0_374] : memref<22x16xf32, #tpu.memory_space<vmem>>, vector<16x16xf32>
      %680 = vector.broadcast %678 : f32 to vector<16x16xf32>
      %681 = arith.mulf %680, %679 : vector<16x16xf32>
      %682 = arith.addf %677, %681 : vector<16x16xf32>
      %c17_375 = arith.constant 17 : index
      %683 = memref.load %arg3[%c17_375] : memref<98xf32, #tpu.memory_space<smem>>
      %c2_376 = arith.constant 2 : index
      %c0_377 = arith.constant 0 : index
      %684 = vector.load %arg7[%c2_376, %c0_377] : memref<22x16xf32, #tpu.memory_space<vmem>>, vector<16x16xf32>
      %685 = vector.broadcast %683 : f32 to vector<16x16xf32>
      %686 = arith.mulf %685, %684 : vector<16x16xf32>
      %687 = arith.addf %682, %686 : vector<16x16xf32>
      %c24_378 = arith.constant 24 : index
      %688 = memref.load %arg3[%c24_378] : memref<98xf32, #tpu.memory_space<smem>>
      %c3_379 = arith.constant 3 : index
      %c0_380 = arith.constant 0 : index
      %689 = vector.load %arg7[%c3_379, %c0_380] : memref<22x16xf32, #tpu.memory_space<vmem>>, vector<16x16xf32>
      %690 = vector.broadcast %688 : f32 to vector<16x16xf32>
      %691 = arith.mulf %690, %689 : vector<16x16xf32>
      %692 = arith.addf %687, %691 : vector<16x16xf32>
      %c31_381 = arith.constant 31 : index
      %693 = memref.load %arg3[%c31_381] : memref<98xf32, #tpu.memory_space<smem>>
      %c4_382 = arith.constant 4 : index
      %c0_383 = arith.constant 0 : index
      %694 = vector.load %arg7[%c4_382, %c0_383] : memref<22x16xf32, #tpu.memory_space<vmem>>, vector<16x16xf32>
      %695 = vector.broadcast %693 : f32 to vector<16x16xf32>
      %696 = arith.mulf %695, %694 : vector<16x16xf32>
      %697 = arith.addf %692, %696 : vector<16x16xf32>
      %c38_384 = arith.constant 38 : index
      %698 = memref.load %arg3[%c38_384] : memref<98xf32, #tpu.memory_space<smem>>
      %c5_385 = arith.constant 5 : index
      %c0_386 = arith.constant 0 : index
      %699 = vector.load %arg7[%c5_385, %c0_386] : memref<22x16xf32, #tpu.memory_space<vmem>>, vector<16x16xf32>
      %700 = vector.broadcast %698 : f32 to vector<16x16xf32>
      %701 = arith.mulf %700, %699 : vector<16x16xf32>
      %702 = arith.addf %697, %701 : vector<16x16xf32>
      %c45_387 = arith.constant 45 : index
      %703 = memref.load %arg3[%c45_387] : memref<98xf32, #tpu.memory_space<smem>>
      %c6_388 = arith.constant 6 : index
      %c0_389 = arith.constant 0 : index
      %704 = vector.load %arg7[%c6_388, %c0_389] : memref<22x16xf32, #tpu.memory_space<vmem>>, vector<16x16xf32>
      %705 = vector.broadcast %703 : f32 to vector<16x16xf32>
      %706 = arith.mulf %705, %704 : vector<16x16xf32>
      %707 = arith.addf %702, %706 : vector<16x16xf32>
      %708 = arith.addf %670, %707 : vector<16x16xf32>
      %c1_390 = arith.constant 1 : index
      %c5_391 = arith.constant 5 : index
      %c129_392 = arith.constant 129 : index
      %709 = vector.load %arg5[%c1_390, %c5_391, %c129_392] : memref<2x32x256xf32, #tpu.memory_space<vmem>>, vector<1x22x16xf32>
      %710 = vector.shape_cast %709 : vector<1x22x16xf32> to vector<22x16xf32>
      %c0_393 = arith.constant 0 : index
      %c0_394 = arith.constant 0 : index
      %711 = vector.load %arg7[%c0_393, %c0_394] : memref<22x16xf32, #tpu.memory_space<vmem>>, vector<22x16xf32>
      tpu.vector_store %arg7[%c0_393, %c0_394], %710 {strides = array<i32>} : memref<22x16xf32, #tpu.memory_space<vmem>>, vector<22x16xf32>,
      %c4_395 = arith.constant 4 : index
      %712 = memref.load %arg3[%c4_395] : memref<98xf32, #tpu.memory_space<smem>>
      %c0_396 = arith.constant 0 : index
      %c0_397 = arith.constant 0 : index
      %713 = vector.load %arg7[%c0_396, %c0_397] : memref<22x16xf32, #tpu.memory_space<vmem>>, vector<16x16xf32>
      %714 = vector.broadcast %712 : f32 to vector<16x16xf32>
      %715 = arith.mulf %714, %713 : vector<16x16xf32>
      %c11_398 = arith.constant 11 : index
      %716 = memref.load %arg3[%c11_398] : memref<98xf32, #tpu.memory_space<smem>>
      %c1_399 = arith.constant 1 : index
      %c0_400 = arith.constant 0 : index
      %717 = vector.load %arg7[%c1_399, %c0_400] : memref<22x16xf32, #tpu.memory_space<vmem>>, vector<16x16xf32>
      %718 = vector.broadcast %716 : f32 to vector<16x16xf32>
      %719 = arith.mulf %718, %717 : vector<16x16xf32>
      %720 = arith.addf %715, %719 : vector<16x16xf32>
      %c18_401 = arith.constant 18 : index
      %721 = memref.load %arg3[%c18_401] : memref<98xf32, #tpu.memory_space<smem>>
      %c2_402 = arith.constant 2 : index
      %c0_403 = arith.constant 0 : index
      %722 = vector.load %arg7[%c2_402, %c0_403] : memref<22x16xf32, #tpu.memory_space<vmem>>, vector<16x16xf32>
      %723 = vector.broadcast %721 : f32 to vector<16x16xf32>
      %724 = arith.mulf %723, %722 : vector<16x16xf32>
      %725 = arith.addf %720, %724 : vector<16x16xf32>
      %c25_404 = arith.constant 25 : index
      %726 = memref.load %arg3[%c25_404] : memref<98xf32, #tpu.memory_space<smem>>
      %c3_405 = arith.constant 3 : index
      %c0_406 = arith.constant 0 : index
      %727 = vector.load %arg7[%c3_405, %c0_406] : memref<22x16xf32, #tpu.memory_space<vmem>>, vector<16x16xf32>
      %728 = vector.broadcast %726 : f32 to vector<16x16xf32>
      %729 = arith.mulf %728, %727 : vector<16x16xf32>
      %730 = arith.addf %725, %729 : vector<16x16xf32>
      %c32_407 = arith.constant 32 : index
      %731 = memref.load %arg3[%c32_407] : memref<98xf32, #tpu.memory_space<smem>>
      %c4_408 = arith.constant 4 : index
      %c0_409 = arith.constant 0 : index
      %732 = vector.load %arg7[%c4_408, %c0_409] : memref<22x16xf32, #tpu.memory_space<vmem>>, vector<16x16xf32>
      %733 = vector.broadcast %731 : f32 to vector<16x16xf32>
      %734 = arith.mulf %733, %732 : vector<16x16xf32>
      %735 = arith.addf %730, %734 : vector<16x16xf32>
      %c39_410 = arith.constant 39 : index
      %736 = memref.load %arg3[%c39_410] : memref<98xf32, #tpu.memory_space<smem>>
      %c5_411 = arith.constant 5 : index
      %c0_412 = arith.constant 0 : index
      %737 = vector.load %arg7[%c5_411, %c0_412] : memref<22x16xf32, #tpu.memory_space<vmem>>, vector<16x16xf32>
      %738 = vector.broadcast %736 : f32 to vector<16x16xf32>
      %739 = arith.mulf %738, %737 : vector<16x16xf32>
      %740 = arith.addf %735, %739 : vector<16x16xf32>
      %c46_413 = arith.constant 46 : index
      %741 = memref.load %arg3[%c46_413] : memref<98xf32, #tpu.memory_space<smem>>
      %c6_414 = arith.constant 6 : index
      %c0_415 = arith.constant 0 : index
      %742 = vector.load %arg7[%c6_414, %c0_415] : memref<22x16xf32, #tpu.memory_space<vmem>>, vector<16x16xf32>
      %743 = vector.broadcast %741 : f32 to vector<16x16xf32>
      %744 = arith.mulf %743, %742 : vector<16x16xf32>
      %745 = arith.addf %740, %744 : vector<16x16xf32>
      %746 = arith.addf %708, %745 : vector<16x16xf32>
      %c1_416 = arith.constant 1 : index
      %c5_417 = arith.constant 5 : index
      %c130_418 = arith.constant 130 : index
      %747 = vector.load %arg5[%c1_416, %c5_417, %c130_418] : memref<2x32x256xf32, #tpu.memory_space<vmem>>, vector<1x22x16xf32>
      %748 = vector.shape_cast %747 : vector<1x22x16xf32> to vector<22x16xf32>
      %c0_419 = arith.constant 0 : index
      %c0_420 = arith.constant 0 : index
      %749 = vector.load %arg7[%c0_419, %c0_420] : memref<22x16xf32, #tpu.memory_space<vmem>>, vector<22x16xf32>
      tpu.vector_store %arg7[%c0_419, %c0_420], %748 {strides = array<i32>} : memref<22x16xf32, #tpu.memory_space<vmem>>, vector<22x16xf32>,
      %c5_421 = arith.constant 5 : index
      %750 = memref.load %arg3[%c5_421] : memref<98xf32, #tpu.memory_space<smem>>
      %c0_422 = arith.constant 0 : index
      %c0_423 = arith.constant 0 : index
      %751 = vector.load %arg7[%c0_422, %c0_423] : memref<22x16xf32, #tpu.memory_space<vmem>>, vector<16x16xf32>
      %752 = vector.broadcast %750 : f32 to vector<16x16xf32>
      %753 = arith.mulf %752, %751 : vector<16x16xf32>
      %c12_424 = arith.constant 12 : index
      %754 = memref.load %arg3[%c12_424] : memref<98xf32, #tpu.memory_space<smem>>
      %c1_425 = arith.constant 1 : index
      %c0_426 = arith.constant 0 : index
      %755 = vector.load %arg7[%c1_425, %c0_426] : memref<22x16xf32, #tpu.memory_space<vmem>>, vector<16x16xf32>
      %756 = vector.broadcast %754 : f32 to vector<16x16xf32>
      %757 = arith.mulf %756, %755 : vector<16x16xf32>
      %758 = arith.addf %753, %757 : vector<16x16xf32>
      %c19_427 = arith.constant 19 : index
      %759 = memref.load %arg3[%c19_427] : memref<98xf32, #tpu.memory_space<smem>>
      %c2_428 = arith.constant 2 : index
      %c0_429 = arith.constant 0 : index
      %760 = vector.load %arg7[%c2_428, %c0_429] : memref<22x16xf32, #tpu.memory_space<vmem>>, vector<16x16xf32>
      %761 = vector.broadcast %759 : f32 to vector<16x16xf32>
      %762 = arith.mulf %761, %760 : vector<16x16xf32>
      %763 = arith.addf %758, %762 : vector<16x16xf32>
      %c26_430 = arith.constant 26 : index
      %764 = memref.load %arg3[%c26_430] : memref<98xf32, #tpu.memory_space<smem>>
      %c3_431 = arith.constant 3 : index
      %c0_432 = arith.constant 0 : index
      %765 = vector.load %arg7[%c3_431, %c0_432] : memref<22x16xf32, #tpu.memory_space<vmem>>, vector<16x16xf32>
      %766 = vector.broadcast %764 : f32 to vector<16x16xf32>
      %767 = arith.mulf %766, %765 : vector<16x16xf32>
      %768 = arith.addf %763, %767 : vector<16x16xf32>
      %c33_433 = arith.constant 33 : index
      %769 = memref.load %arg3[%c33_433] : memref<98xf32, #tpu.memory_space<smem>>
      %c4_434 = arith.constant 4 : index
      %c0_435 = arith.constant 0 : index
      %770 = vector.load %arg7[%c4_434, %c0_435] : memref<22x16xf32, #tpu.memory_space<vmem>>, vector<16x16xf32>
      %771 = vector.broadcast %769 : f32 to vector<16x16xf32>
      %772 = arith.mulf %771, %770 : vector<16x16xf32>
      %773 = arith.addf %768, %772 : vector<16x16xf32>
      %c40_436 = arith.constant 40 : index
      %774 = memref.load %arg3[%c40_436] : memref<98xf32, #tpu.memory_space<smem>>
      %c5_437 = arith.constant 5 : index
      %c0_438 = arith.constant 0 : index
      %775 = vector.load %arg7[%c5_437, %c0_438] : memref<22x16xf32, #tpu.memory_space<vmem>>, vector<16x16xf32>
      %776 = vector.broadcast %774 : f32 to vector<16x16xf32>
      %777 = arith.mulf %776, %775 : vector<16x16xf32>
      %778 = arith.addf %773, %777 : vector<16x16xf32>
      %c47_439 = arith.constant 47 : index
      %779 = memref.load %arg3[%c47_439] : memref<98xf32, #tpu.memory_space<smem>>
      %c6_440 = arith.constant 6 : index
      %c0_441 = arith.constant 0 : index
      %780 = vector.load %arg7[%c6_440, %c0_441] : memref<22x16xf32, #tpu.memory_space<vmem>>, vector<16x16xf32>
      %781 = vector.broadcast %779 : f32 to vector<16x16xf32>
      %782 = arith.mulf %781, %780 : vector<16x16xf32>
      %783 = arith.addf %778, %782 : vector<16x16xf32>
      %784 = arith.addf %746, %783 : vector<16x16xf32>
      %c1_442 = arith.constant 1 : index
      %c5_443 = arith.constant 5 : index
      %c131_444 = arith.constant 131 : index
      %785 = vector.load %arg5[%c1_442, %c5_443, %c131_444] : memref<2x32x256xf32, #tpu.memory_space<vmem>>, vector<1x22x16xf32>
      %786 = vector.shape_cast %785 : vector<1x22x16xf32> to vector<22x16xf32>
      %c0_445 = arith.constant 0 : index
      %c0_446 = arith.constant 0 : index
      %787 = vector.load %arg7[%c0_445, %c0_446] : memref<22x16xf32, #tpu.memory_space<vmem>>, vector<22x16xf32>
      tpu.vector_store %arg7[%c0_445, %c0_446], %786 {strides = array<i32>} : memref<22x16xf32, #tpu.memory_space<vmem>>, vector<22x16xf32>,
      %c6_447 = arith.constant 6 : index
      %788 = memref.load %arg3[%c6_447] : memref<98xf32, #tpu.memory_space<smem>>
      %c0_448 = arith.constant 0 : index
      %c0_449 = arith.constant 0 : index
      %789 = vector.load %arg7[%c0_448, %c0_449] : memref<22x16xf32, #tpu.memory_space<vmem>>, vector<16x16xf32>
      %790 = vector.broadcast %788 : f32 to vector<16x16xf32>
      %791 = arith.mulf %790, %789 : vector<16x16xf32>
      %c13_450 = arith.constant 13 : index
      %792 = memref.load %arg3[%c13_450] : memref<98xf32, #tpu.memory_space<smem>>
      %c1_451 = arith.constant 1 : index
      %c0_452 = arith.constant 0 : index
      %793 = vector.load %arg7[%c1_451, %c0_452] : memref<22x16xf32, #tpu.memory_space<vmem>>, vector<16x16xf32>
      %794 = vector.broadcast %792 : f32 to vector<16x16xf32>
      %795 = arith.mulf %794, %793 : vector<16x16xf32>
      %796 = arith.addf %791, %795 : vector<16x16xf32>
      %c20_453 = arith.constant 20 : index
      %797 = memref.load %arg3[%c20_453] : memref<98xf32, #tpu.memory_space<smem>>
      %c2_454 = arith.constant 2 : index
      %c0_455 = arith.constant 0 : index
      %798 = vector.load %arg7[%c2_454, %c0_455] : memref<22x16xf32, #tpu.memory_space<vmem>>, vector<16x16xf32>
      %799 = vector.broadcast %797 : f32 to vector<16x16xf32>
      %800 = arith.mulf %799, %798 : vector<16x16xf32>
      %801 = arith.addf %796, %800 : vector<16x16xf32>
      %c27_456 = arith.constant 27 : index
      %802 = memref.load %arg3[%c27_456] : memref<98xf32, #tpu.memory_space<smem>>
      %c3_457 = arith.constant 3 : index
      %c0_458 = arith.constant 0 : index
      %803 = vector.load %arg7[%c3_457, %c0_458] : memref<22x16xf32, #tpu.memory_space<vmem>>, vector<16x16xf32>
      %804 = vector.broadcast %802 : f32 to vector<16x16xf32>
      %805 = arith.mulf %804, %803 : vector<16x16xf32>
      %806 = arith.addf %801, %805 : vector<16x16xf32>
      %c34_459 = arith.constant 34 : index
      %807 = memref.load %arg3[%c34_459] : memref<98xf32, #tpu.memory_space<smem>>
      %c4_460 = arith.constant 4 : index
      %c0_461 = arith.constant 0 : index
      %808 = vector.load %arg7[%c4_460, %c0_461] : memref<22x16xf32, #tpu.memory_space<vmem>>, vector<16x16xf32>
      %809 = vector.broadcast %807 : f32 to vector<16x16xf32>
      %810 = arith.mulf %809, %808 : vector<16x16xf32>
      %811 = arith.addf %806, %810 : vector<16x16xf32>
      %c41_462 = arith.constant 41 : index
      %812 = memref.load %arg3[%c41_462] : memref<98xf32, #tpu.memory_space<smem>>
      %c5_463 = arith.constant 5 : index
      %c0_464 = arith.constant 0 : index
      %813 = vector.load %arg7[%c5_463, %c0_464] : memref<22x16xf32, #tpu.memory_space<vmem>>, vector<16x16xf32>
      %814 = vector.broadcast %812 : f32 to vector<16x16xf32>
      %815 = arith.mulf %814, %813 : vector<16x16xf32>
      %816 = arith.addf %811, %815 : vector<16x16xf32>
      %c48_465 = arith.constant 48 : index
      %817 = memref.load %arg3[%c48_465] : memref<98xf32, #tpu.memory_space<smem>>
      %c6_466 = arith.constant 6 : index
      %c0_467 = arith.constant 0 : index
      %818 = vector.load %arg7[%c6_466, %c0_467] : memref<22x16xf32, #tpu.memory_space<vmem>>, vector<16x16xf32>
      %819 = vector.broadcast %817 : f32 to vector<16x16xf32>
      %820 = arith.mulf %819, %818 : vector<16x16xf32>
      %821 = arith.addf %816, %820 : vector<16x16xf32>
      %822 = arith.addf %784, %821 : vector<16x16xf32>
      %c1_468 = arith.constant 1 : index
      %c5_469 = arith.constant 5 : index
      %c125_470 = arith.constant 125 : index
      %823 = vector.load %arg6[%c1_468, %c5_469, %c125_470] : memref<2x32x256xf32, #tpu.memory_space<vmem>>, vector<1x22x16xf32>
      %824 = vector.shape_cast %823 : vector<1x22x16xf32> to vector<22x16xf32>
      %c0_471 = arith.constant 0 : index
      %c0_472 = arith.constant 0 : index
      %825 = vector.load %arg7[%c0_471, %c0_472] : memref<22x16xf32, #tpu.memory_space<vmem>>, vector<22x16xf32>
      tpu.vector_store %arg7[%c0_471, %c0_472], %824 {strides = array<i32>} : memref<22x16xf32, #tpu.memory_space<vmem>>, vector<22x16xf32>,
      %c49_473 = arith.constant 49 : index
      %826 = memref.load %arg3[%c49_473] : memref<98xf32, #tpu.memory_space<smem>>
      %c0_474 = arith.constant 0 : index
      %c0_475 = arith.constant 0 : index
      %827 = vector.load %arg7[%c0_474, %c0_475] : memref<22x16xf32, #tpu.memory_space<vmem>>, vector<16x16xf32>
      %828 = vector.broadcast %826 : f32 to vector<16x16xf32>
      %829 = arith.mulf %828, %827 : vector<16x16xf32>
      %c56_476 = arith.constant 56 : index
      %830 = memref.load %arg3[%c56_476] : memref<98xf32, #tpu.memory_space<smem>>
      %c1_477 = arith.constant 1 : index
      %c0_478 = arith.constant 0 : index
      %831 = vector.load %arg7[%c1_477, %c0_478] : memref<22x16xf32, #tpu.memory_space<vmem>>, vector<16x16xf32>
      %832 = vector.broadcast %830 : f32 to vector<16x16xf32>
      %833 = arith.mulf %832, %831 : vector<16x16xf32>
      %834 = arith.addf %829, %833 : vector<16x16xf32>
      %c63_479 = arith.constant 63 : index
      %835 = memref.load %arg3[%c63_479] : memref<98xf32, #tpu.memory_space<smem>>
      %c2_480 = arith.constant 2 : index
      %c0_481 = arith.constant 0 : index
      %836 = vector.load %arg7[%c2_480, %c0_481] : memref<22x16xf32, #tpu.memory_space<vmem>>, vector<16x16xf32>
      %837 = vector.broadcast %835 : f32 to vector<16x16xf32>
      %838 = arith.mulf %837, %836 : vector<16x16xf32>
      %839 = arith.addf %834, %838 : vector<16x16xf32>
      %c70_482 = arith.constant 70 : index
      %840 = memref.load %arg3[%c70_482] : memref<98xf32, #tpu.memory_space<smem>>
      %c3_483 = arith.constant 3 : index
      %c0_484 = arith.constant 0 : index
      %841 = vector.load %arg7[%c3_483, %c0_484] : memref<22x16xf32, #tpu.memory_space<vmem>>, vector<16x16xf32>
      %842 = vector.broadcast %840 : f32 to vector<16x16xf32>
      %843 = arith.mulf %842, %841 : vector<16x16xf32>
      %844 = arith.addf %839, %843 : vector<16x16xf32>
      %c77_485 = arith.constant 77 : index
      %845 = memref.load %arg3[%c77_485] : memref<98xf32, #tpu.memory_space<smem>>
      %c4_486 = arith.constant 4 : index
      %c0_487 = arith.constant 0 : index
      %846 = vector.load %arg7[%c4_486, %c0_487] : memref<22x16xf32, #tpu.memory_space<vmem>>, vector<16x16xf32>
      %847 = vector.broadcast %845 : f32 to vector<16x16xf32>
      %848 = arith.mulf %847, %846 : vector<16x16xf32>
      %849 = arith.addf %844, %848 : vector<16x16xf32>
      %c84_488 = arith.constant 84 : index
      %850 = memref.load %arg3[%c84_488] : memref<98xf32, #tpu.memory_space<smem>>
      %c5_489 = arith.constant 5 : index
      %c0_490 = arith.constant 0 : index
      %851 = vector.load %arg7[%c5_489, %c0_490] : memref<22x16xf32, #tpu.memory_space<vmem>>, vector<16x16xf32>
      %852 = vector.broadcast %850 : f32 to vector<16x16xf32>
      %853 = arith.mulf %852, %851 : vector<16x16xf32>
      %854 = arith.addf %849, %853 : vector<16x16xf32>
      %c91_491 = arith.constant 91 : index
      %855 = memref.load %arg3[%c91_491] : memref<98xf32, #tpu.memory_space<smem>>
      %c6_492 = arith.constant 6 : index
      %c0_493 = arith.constant 0 : index
      %856 = vector.load %arg7[%c6_492, %c0_493] : memref<22x16xf32, #tpu.memory_space<vmem>>, vector<16x16xf32>
      %857 = vector.broadcast %855 : f32 to vector<16x16xf32>
      %858 = arith.mulf %857, %856 : vector<16x16xf32>
      %859 = arith.addf %854, %858 : vector<16x16xf32>
      %860 = arith.addf %822, %859 : vector<16x16xf32>
      %c1_494 = arith.constant 1 : index
      %c5_495 = arith.constant 5 : index
      %c126_496 = arith.constant 126 : index
      %861 = vector.load %arg6[%c1_494, %c5_495, %c126_496] : memref<2x32x256xf32, #tpu.memory_space<vmem>>, vector<1x22x16xf32>
      %862 = vector.shape_cast %861 : vector<1x22x16xf32> to vector<22x16xf32>
      %c0_497 = arith.constant 0 : index
      %c0_498 = arith.constant 0 : index
      %863 = vector.load %arg7[%c0_497, %c0_498] : memref<22x16xf32, #tpu.memory_space<vmem>>, vector<22x16xf32>
      tpu.vector_store %arg7[%c0_497, %c0_498], %862 {strides = array<i32>} : memref<22x16xf32, #tpu.memory_space<vmem>>, vector<22x16xf32>,
      %c50_499 = arith.constant 50 : index
      %864 = memref.load %arg3[%c50_499] : memref<98xf32, #tpu.memory_space<smem>>
      %c0_500 = arith.constant 0 : index
      %c0_501 = arith.constant 0 : index
      %865 = vector.load %arg7[%c0_500, %c0_501] : memref<22x16xf32, #tpu.memory_space<vmem>>, vector<16x16xf32>
      %866 = vector.broadcast %864 : f32 to vector<16x16xf32>
      %867 = arith.mulf %866, %865 : vector<16x16xf32>
      %c57_502 = arith.constant 57 : index
      %868 = memref.load %arg3[%c57_502] : memref<98xf32, #tpu.memory_space<smem>>
      %c1_503 = arith.constant 1 : index
      %c0_504 = arith.constant 0 : index
      %869 = vector.load %arg7[%c1_503, %c0_504] : memref<22x16xf32, #tpu.memory_space<vmem>>, vector<16x16xf32>
      %870 = vector.broadcast %868 : f32 to vector<16x16xf32>
      %871 = arith.mulf %870, %869 : vector<16x16xf32>
      %872 = arith.addf %867, %871 : vector<16x16xf32>
      %c64_505 = arith.constant 64 : index
      %873 = memref.load %arg3[%c64_505] : memref<98xf32, #tpu.memory_space<smem>>
      %c2_506 = arith.constant 2 : index
      %c0_507 = arith.constant 0 : index
      %874 = vector.load %arg7[%c2_506, %c0_507] : memref<22x16xf32, #tpu.memory_space<vmem>>, vector<16x16xf32>
      %875 = vector.broadcast %873 : f32 to vector<16x16xf32>
      %876 = arith.mulf %875, %874 : vector<16x16xf32>
      %877 = arith.addf %872, %876 : vector<16x16xf32>
      %c71_508 = arith.constant 71 : index
      %878 = memref.load %arg3[%c71_508] : memref<98xf32, #tpu.memory_space<smem>>
      %c3_509 = arith.constant 3 : index
      %c0_510 = arith.constant 0 : index
      %879 = vector.load %arg7[%c3_509, %c0_510] : memref<22x16xf32, #tpu.memory_space<vmem>>, vector<16x16xf32>
      %880 = vector.broadcast %878 : f32 to vector<16x16xf32>
      %881 = arith.mulf %880, %879 : vector<16x16xf32>
      %882 = arith.addf %877, %881 : vector<16x16xf32>
      %c78_511 = arith.constant 78 : index
      %883 = memref.load %arg3[%c78_511] : memref<98xf32, #tpu.memory_space<smem>>
      %c4_512 = arith.constant 4 : index
      %c0_513 = arith.constant 0 : index
      %884 = vector.load %arg7[%c4_512, %c0_513] : memref<22x16xf32, #tpu.memory_space<vmem>>, vector<16x16xf32>
      %885 = vector.broadcast %883 : f32 to vector<16x16xf32>
      %886 = arith.mulf %885, %884 : vector<16x16xf32>
      %887 = arith.addf %882, %886 : vector<16x16xf32>
      %c85_514 = arith.constant 85 : index
      %888 = memref.load %arg3[%c85_514] : memref<98xf32, #tpu.memory_space<smem>>
      %c5_515 = arith.constant 5 : index
      %c0_516 = arith.constant 0 : index
      %889 = vector.load %arg7[%c5_515, %c0_516] : memref<22x16xf32, #tpu.memory_space<vmem>>, vector<16x16xf32>
      %890 = vector.broadcast %888 : f32 to vector<16x16xf32>
      %891 = arith.mulf %890, %889 : vector<16x16xf32>
      %892 = arith.addf %887, %891 : vector<16x16xf32>
      %c92_517 = arith.constant 92 : index
      %893 = memref.load %arg3[%c92_517] : memref<98xf32, #tpu.memory_space<smem>>
      %c6_518 = arith.constant 6 : index
      %c0_519 = arith.constant 0 : index
      %894 = vector.load %arg7[%c6_518, %c0_519] : memref<22x16xf32, #tpu.memory_space<vmem>>, vector<16x16xf32>
      %895 = vector.broadcast %893 : f32 to vector<16x16xf32>
      %896 = arith.mulf %895, %894 : vector<16x16xf32>
      %897 = arith.addf %892, %896 : vector<16x16xf32>
      %898 = arith.addf %860, %897 : vector<16x16xf32>
      %c1_520 = arith.constant 1 : index
      %c5_521 = arith.constant 5 : index
      %c127_522 = arith.constant 127 : index
      %899 = vector.load %arg6[%c1_520, %c5_521, %c127_522] : memref<2x32x256xf32, #tpu.memory_space<vmem>>, vector<1x22x16xf32>
      %900 = vector.shape_cast %899 : vector<1x22x16xf32> to vector<22x16xf32>
      %c0_523 = arith.constant 0 : index
      %c0_524 = arith.constant 0 : index
      %901 = vector.load %arg7[%c0_523, %c0_524] : memref<22x16xf32, #tpu.memory_space<vmem>>, vector<22x16xf32>
      tpu.vector_store %arg7[%c0_523, %c0_524], %900 {strides = array<i32>} : memref<22x16xf32, #tpu.memory_space<vmem>>, vector<22x16xf32>,
      %c51_525 = arith.constant 51 : index
      %902 = memref.load %arg3[%c51_525] : memref<98xf32, #tpu.memory_space<smem>>
      %c0_526 = arith.constant 0 : index
      %c0_527 = arith.constant 0 : index
      %903 = vector.load %arg7[%c0_526, %c0_527] : memref<22x16xf32, #tpu.memory_space<vmem>>, vector<16x16xf32>
      %904 = vector.broadcast %902 : f32 to vector<16x16xf32>
      %905 = arith.mulf %904, %903 : vector<16x16xf32>
      %c58_528 = arith.constant 58 : index
      %906 = memref.load %arg3[%c58_528] : memref<98xf32, #tpu.memory_space<smem>>
      %c1_529 = arith.constant 1 : index
      %c0_530 = arith.constant 0 : index
      %907 = vector.load %arg7[%c1_529, %c0_530] : memref<22x16xf32, #tpu.memory_space<vmem>>, vector<16x16xf32>
      %908 = vector.broadcast %906 : f32 to vector<16x16xf32>
      %909 = arith.mulf %908, %907 : vector<16x16xf32>
      %910 = arith.addf %905, %909 : vector<16x16xf32>
      %c65_531 = arith.constant 65 : index
      %911 = memref.load %arg3[%c65_531] : memref<98xf32, #tpu.memory_space<smem>>
      %c2_532 = arith.constant 2 : index
      %c0_533 = arith.constant 0 : index
      %912 = vector.load %arg7[%c2_532, %c0_533] : memref<22x16xf32, #tpu.memory_space<vmem>>, vector<16x16xf32>
      %913 = vector.broadcast %911 : f32 to vector<16x16xf32>
      %914 = arith.mulf %913, %912 : vector<16x16xf32>
      %915 = arith.addf %910, %914 : vector<16x16xf32>
      %c72_534 = arith.constant 72 : index
      %916 = memref.load %arg3[%c72_534] : memref<98xf32, #tpu.memory_space<smem>>
      %c3_535 = arith.constant 3 : index
      %c0_536 = arith.constant 0 : index
      %917 = vector.load %arg7[%c3_535, %c0_536] : memref<22x16xf32, #tpu.memory_space<vmem>>, vector<16x16xf32>
      %918 = vector.broadcast %916 : f32 to vector<16x16xf32>
      %919 = arith.mulf %918, %917 : vector<16x16xf32>
      %920 = arith.addf %915, %919 : vector<16x16xf32>
      %c79_537 = arith.constant 79 : index
      %921 = memref.load %arg3[%c79_537] : memref<98xf32, #tpu.memory_space<smem>>
      %c4_538 = arith.constant 4 : index
      %c0_539 = arith.constant 0 : index
      %922 = vector.load %arg7[%c4_538, %c0_539] : memref<22x16xf32, #tpu.memory_space<vmem>>, vector<16x16xf32>
      %923 = vector.broadcast %921 : f32 to vector<16x16xf32>
      %924 = arith.mulf %923, %922 : vector<16x16xf32>
      %925 = arith.addf %920, %924 : vector<16x16xf32>
      %c86_540 = arith.constant 86 : index
      %926 = memref.load %arg3[%c86_540] : memref<98xf32, #tpu.memory_space<smem>>
      %c5_541 = arith.constant 5 : index
      %c0_542 = arith.constant 0 : index
      %927 = vector.load %arg7[%c5_541, %c0_542] : memref<22x16xf32, #tpu.memory_space<vmem>>, vector<16x16xf32>
      %928 = vector.broadcast %926 : f32 to vector<16x16xf32>
      %929 = arith.mulf %928, %927 : vector<16x16xf32>
      %930 = arith.addf %925, %929 : vector<16x16xf32>
      %c93_543 = arith.constant 93 : index
      %931 = memref.load %arg3[%c93_543] : memref<98xf32, #tpu.memory_space<smem>>
      %c6_544 = arith.constant 6 : index
      %c0_545 = arith.constant 0 : index
      %932 = vector.load %arg7[%c6_544, %c0_545] : memref<22x16xf32, #tpu.memory_space<vmem>>, vector<16x16xf32>
      %933 = vector.broadcast %931 : f32 to vector<16x16xf32>
      %934 = arith.mulf %933, %932 : vector<16x16xf32>
      %935 = arith.addf %930, %934 : vector<16x16xf32>
      %936 = arith.addf %898, %935 : vector<16x16xf32>
      %c1_546 = arith.constant 1 : index
      %c5_547 = arith.constant 5 : index
      %c128_548 = arith.constant 128 : index
      %937 = vector.load %arg6[%c1_546, %c5_547, %c128_548] : memref<2x32x256xf32, #tpu.memory_space<vmem>>, vector<1x22x16xf32>
      %938 = vector.shape_cast %937 : vector<1x22x16xf32> to vector<22x16xf32>
      %c0_549 = arith.constant 0 : index
      %c0_550 = arith.constant 0 : index
      %939 = vector.load %arg7[%c0_549, %c0_550] : memref<22x16xf32, #tpu.memory_space<vmem>>, vector<22x16xf32>
      tpu.vector_store %arg7[%c0_549, %c0_550], %938 {strides = array<i32>} : memref<22x16xf32, #tpu.memory_space<vmem>>, vector<22x16xf32>,
      %c52_551 = arith.constant 52 : index
      %940 = memref.load %arg3[%c52_551] : memref<98xf32, #tpu.memory_space<smem>>
      %c0_552 = arith.constant 0 : index
      %c0_553 = arith.constant 0 : index
      %941 = vector.load %arg7[%c0_552, %c0_553] : memref<22x16xf32, #tpu.memory_space<vmem>>, vector<16x16xf32>
      %942 = vector.broadcast %940 : f32 to vector<16x16xf32>
      %943 = arith.mulf %942, %941 : vector<16x16xf32>
      %c59_554 = arith.constant 59 : index
      %944 = memref.load %arg3[%c59_554] : memref<98xf32, #tpu.memory_space<smem>>
      %c1_555 = arith.constant 1 : index
      %c0_556 = arith.constant 0 : index
      %945 = vector.load %arg7[%c1_555, %c0_556] : memref<22x16xf32, #tpu.memory_space<vmem>>, vector<16x16xf32>
      %946 = vector.broadcast %944 : f32 to vector<16x16xf32>
      %947 = arith.mulf %946, %945 : vector<16x16xf32>
      %948 = arith.addf %943, %947 : vector<16x16xf32>
      %c66_557 = arith.constant 66 : index
      %949 = memref.load %arg3[%c66_557] : memref<98xf32, #tpu.memory_space<smem>>
      %c2_558 = arith.constant 2 : index
      %c0_559 = arith.constant 0 : index
      %950 = vector.load %arg7[%c2_558, %c0_559] : memref<22x16xf32, #tpu.memory_space<vmem>>, vector<16x16xf32>
      %951 = vector.broadcast %949 : f32 to vector<16x16xf32>
      %952 = arith.mulf %951, %950 : vector<16x16xf32>
      %953 = arith.addf %948, %952 : vector<16x16xf32>
      %c73_560 = arith.constant 73 : index
      %954 = memref.load %arg3[%c73_560] : memref<98xf32, #tpu.memory_space<smem>>
      %c3_561 = arith.constant 3 : index
      %c0_562 = arith.constant 0 : index
      %955 = vector.load %arg7[%c3_561, %c0_562] : memref<22x16xf32, #tpu.memory_space<vmem>>, vector<16x16xf32>
      %956 = vector.broadcast %954 : f32 to vector<16x16xf32>
      %957 = arith.mulf %956, %955 : vector<16x16xf32>
      %958 = arith.addf %953, %957 : vector<16x16xf32>
      %c80_563 = arith.constant 80 : index
      %959 = memref.load %arg3[%c80_563] : memref<98xf32, #tpu.memory_space<smem>>
      %c4_564 = arith.constant 4 : index
      %c0_565 = arith.constant 0 : index
      %960 = vector.load %arg7[%c4_564, %c0_565] : memref<22x16xf32, #tpu.memory_space<vmem>>, vector<16x16xf32>
      %961 = vector.broadcast %959 : f32 to vector<16x16xf32>
      %962 = arith.mulf %961, %960 : vector<16x16xf32>
      %963 = arith.addf %958, %962 : vector<16x16xf32>
      %c87_566 = arith.constant 87 : index
      %964 = memref.load %arg3[%c87_566] : memref<98xf32, #tpu.memory_space<smem>>
      %c5_567 = arith.constant 5 : index
      %c0_568 = arith.constant 0 : index
      %965 = vector.load %arg7[%c5_567, %c0_568] : memref<22x16xf32, #tpu.memory_space<vmem>>, vector<16x16xf32>
      %966 = vector.broadcast %964 : f32 to vector<16x16xf32>
      %967 = arith.mulf %966, %965 : vector<16x16xf32>
      %968 = arith.addf %963, %967 : vector<16x16xf32>
      %c94_569 = arith.constant 94 : index
      %969 = memref.load %arg3[%c94_569] : memref<98xf32, #tpu.memory_space<smem>>
      %c6_570 = arith.constant 6 : index
      %c0_571 = arith.constant 0 : index
      %970 = vector.load %arg7[%c6_570, %c0_571] : memref<22x16xf32, #tpu.memory_space<vmem>>, vector<16x16xf32>
      %971 = vector.broadcast %969 : f32 to vector<16x16xf32>
      %972 = arith.mulf %971, %970 : vector<16x16xf32>
      %973 = arith.addf %968, %972 : vector<16x16xf32>
      %974 = arith.addf %936, %973 : vector<16x16xf32>
      %c1_572 = arith.constant 1 : index
      %c5_573 = arith.constant 5 : index
      %c129_574 = arith.constant 129 : index
      %975 = vector.load %arg6[%c1_572, %c5_573, %c129_574] : memref<2x32x256xf32, #tpu.memory_space<vmem>>, vector<1x22x16xf32>
      %976 = vector.shape_cast %975 : vector<1x22x16xf32> to vector<22x16xf32>
      %c0_575 = arith.constant 0 : index
      %c0_576 = arith.constant 0 : index
      %977 = vector.load %arg7[%c0_575, %c0_576] : memref<22x16xf32, #tpu.memory_space<vmem>>, vector<22x16xf32>
      tpu.vector_store %arg7[%c0_575, %c0_576], %976 {strides = array<i32>} : memref<22x16xf32, #tpu.memory_space<vmem>>, vector<22x16xf32>,
      %c53_577 = arith.constant 53 : index
      %978 = memref.load %arg3[%c53_577] : memref<98xf32, #tpu.memory_space<smem>>
      %c0_578 = arith.constant 0 : index
      %c0_579 = arith.constant 0 : index
      %979 = vector.load %arg7[%c0_578, %c0_579] : memref<22x16xf32, #tpu.memory_space<vmem>>, vector<16x16xf32>
      %980 = vector.broadcast %978 : f32 to vector<16x16xf32>
      %981 = arith.mulf %980, %979 : vector<16x16xf32>
      %c60_580 = arith.constant 60 : index
      %982 = memref.load %arg3[%c60_580] : memref<98xf32, #tpu.memory_space<smem>>
      %c1_581 = arith.constant 1 : index
      %c0_582 = arith.constant 0 : index
      %983 = vector.load %arg7[%c1_581, %c0_582] : memref<22x16xf32, #tpu.memory_space<vmem>>, vector<16x16xf32>
      %984 = vector.broadcast %982 : f32 to vector<16x16xf32>
      %985 = arith.mulf %984, %983 : vector<16x16xf32>
      %986 = arith.addf %981, %985 : vector<16x16xf32>
      %c67_583 = arith.constant 67 : index
      %987 = memref.load %arg3[%c67_583] : memref<98xf32, #tpu.memory_space<smem>>
      %c2_584 = arith.constant 2 : index
      %c0_585 = arith.constant 0 : index
      %988 = vector.load %arg7[%c2_584, %c0_585] : memref<22x16xf32, #tpu.memory_space<vmem>>, vector<16x16xf32>
      %989 = vector.broadcast %987 : f32 to vector<16x16xf32>
      %990 = arith.mulf %989, %988 : vector<16x16xf32>
      %991 = arith.addf %986, %990 : vector<16x16xf32>
      %c74_586 = arith.constant 74 : index
      %992 = memref.load %arg3[%c74_586] : memref<98xf32, #tpu.memory_space<smem>>
      %c3_587 = arith.constant 3 : index
      %c0_588 = arith.constant 0 : index
      %993 = vector.load %arg7[%c3_587, %c0_588] : memref<22x16xf32, #tpu.memory_space<vmem>>, vector<16x16xf32>
      %994 = vector.broadcast %992 : f32 to vector<16x16xf32>
      %995 = arith.mulf %994, %993 : vector<16x16xf32>
      %996 = arith.addf %991, %995 : vector<16x16xf32>
      %c81_589 = arith.constant 81 : index
      %997 = memref.load %arg3[%c81_589] : memref<98xf32, #tpu.memory_space<smem>>
      %c4_590 = arith.constant 4 : index
      %c0_591 = arith.constant 0 : index
      %998 = vector.load %arg7[%c4_590, %c0_591] : memref<22x16xf32, #tpu.memory_space<vmem>>, vector<16x16xf32>
      %999 = vector.broadcast %997 : f32 to vector<16x16xf32>
      %1000 = arith.mulf %999, %998 : vector<16x16xf32>
      %1001 = arith.addf %996, %1000 : vector<16x16xf32>
      %c88_592 = arith.constant 88 : index
      %1002 = memref.load %arg3[%c88_592] : memref<98xf32, #tpu.memory_space<smem>>
      %c5_593 = arith.constant 5 : index
      %c0_594 = arith.constant 0 : index
      %1003 = vector.load %arg7[%c5_593, %c0_594] : memref<22x16xf32, #tpu.memory_space<vmem>>, vector<16x16xf32>
      %1004 = vector.broadcast %1002 : f32 to vector<16x16xf32>
      %1005 = arith.mulf %1004, %1003 : vector<16x16xf32>
      %1006 = arith.addf %1001, %1005 : vector<16x16xf32>
      %c95_595 = arith.constant 95 : index
      %1007 = memref.load %arg3[%c95_595] : memref<98xf32, #tpu.memory_space<smem>>
      %c6_596 = arith.constant 6 : index
      %c0_597 = arith.constant 0 : index
      %1008 = vector.load %arg7[%c6_596, %c0_597] : memref<22x16xf32, #tpu.memory_space<vmem>>, vector<16x16xf32>
      %1009 = vector.broadcast %1007 : f32 to vector<16x16xf32>
      %1010 = arith.mulf %1009, %1008 : vector<16x16xf32>
      %1011 = arith.addf %1006, %1010 : vector<16x16xf32>
      %1012 = arith.addf %974, %1011 : vector<16x16xf32>
      %c1_598 = arith.constant 1 : index
      %c5_599 = arith.constant 5 : index
      %c130_600 = arith.constant 130 : index
      %1013 = vector.load %arg6[%c1_598, %c5_599, %c130_600] : memref<2x32x256xf32, #tpu.memory_space<vmem>>, vector<1x22x16xf32>
      %1014 = vector.shape_cast %1013 : vector<1x22x16xf32> to vector<22x16xf32>
      %c0_601 = arith.constant 0 : index
      %c0_602 = arith.constant 0 : index
      %1015 = vector.load %arg7[%c0_601, %c0_602] : memref<22x16xf32, #tpu.memory_space<vmem>>, vector<22x16xf32>
      tpu.vector_store %arg7[%c0_601, %c0_602], %1014 {strides = array<i32>} : memref<22x16xf32, #tpu.memory_space<vmem>>, vector<22x16xf32>,
      %c54_603 = arith.constant 54 : index
      %1016 = memref.load %arg3[%c54_603] : memref<98xf32, #tpu.memory_space<smem>>
      %c0_604 = arith.constant 0 : index
      %c0_605 = arith.constant 0 : index
      %1017 = vector.load %arg7[%c0_604, %c0_605] : memref<22x16xf32, #tpu.memory_space<vmem>>, vector<16x16xf32>
      %1018 = vector.broadcast %1016 : f32 to vector<16x16xf32>
      %1019 = arith.mulf %1018, %1017 : vector<16x16xf32>
      %c61_606 = arith.constant 61 : index
      %1020 = memref.load %arg3[%c61_606] : memref<98xf32, #tpu.memory_space<smem>>
      %c1_607 = arith.constant 1 : index
      %c0_608 = arith.constant 0 : index
      %1021 = vector.load %arg7[%c1_607, %c0_608] : memref<22x16xf32, #tpu.memory_space<vmem>>, vector<16x16xf32>
      %1022 = vector.broadcast %1020 : f32 to vector<16x16xf32>
      %1023 = arith.mulf %1022, %1021 : vector<16x16xf32>
      %1024 = arith.addf %1019, %1023 : vector<16x16xf32>
      %c68_609 = arith.constant 68 : index
      %1025 = memref.load %arg3[%c68_609] : memref<98xf32, #tpu.memory_space<smem>>
      %c2_610 = arith.constant 2 : index
      %c0_611 = arith.constant 0 : index
      %1026 = vector.load %arg7[%c2_610, %c0_611] : memref<22x16xf32, #tpu.memory_space<vmem>>, vector<16x16xf32>
      %1027 = vector.broadcast %1025 : f32 to vector<16x16xf32>
      %1028 = arith.mulf %1027, %1026 : vector<16x16xf32>
      %1029 = arith.addf %1024, %1028 : vector<16x16xf32>
      %c75_612 = arith.constant 75 : index
      %1030 = memref.load %arg3[%c75_612] : memref<98xf32, #tpu.memory_space<smem>>
      %c3_613 = arith.constant 3 : index
      %c0_614 = arith.constant 0 : index
      %1031 = vector.load %arg7[%c3_613, %c0_614] : memref<22x16xf32, #tpu.memory_space<vmem>>, vector<16x16xf32>
      %1032 = vector.broadcast %1030 : f32 to vector<16x16xf32>
      %1033 = arith.mulf %1032, %1031 : vector<16x16xf32>
      %1034 = arith.addf %1029, %1033 : vector<16x16xf32>
      %c82_615 = arith.constant 82 : index
      %1035 = memref.load %arg3[%c82_615] : memref<98xf32, #tpu.memory_space<smem>>
      %c4_616 = arith.constant 4 : index
      %c0_617 = arith.constant 0 : index
      %1036 = vector.load %arg7[%c4_616, %c0_617] : memref<22x16xf32, #tpu.memory_space<vmem>>, vector<16x16xf32>
      %1037 = vector.broadcast %1035 : f32 to vector<16x16xf32>
      %1038 = arith.mulf %1037, %1036 : vector<16x16xf32>
      %1039 = arith.addf %1034, %1038 : vector<16x16xf32>
      %c89_618 = arith.constant 89 : index
      %1040 = memref.load %arg3[%c89_618] : memref<98xf32, #tpu.memory_space<smem>>
      %c5_619 = arith.constant 5 : index
      %c0_620 = arith.constant 0 : index
      %1041 = vector.load %arg7[%c5_619, %c0_620] : memref<22x16xf32, #tpu.memory_space<vmem>>, vector<16x16xf32>
      %1042 = vector.broadcast %1040 : f32 to vector<16x16xf32>
      %1043 = arith.mulf %1042, %1041 : vector<16x16xf32>
      %1044 = arith.addf %1039, %1043 : vector<16x16xf32>
      %c96_621 = arith.constant 96 : index
      %1045 = memref.load %arg3[%c96_621] : memref<98xf32, #tpu.memory_space<smem>>
      %c6_622 = arith.constant 6 : index
      %c0_623 = arith.constant 0 : index
      %1046 = vector.load %arg7[%c6_622, %c0_623] : memref<22x16xf32, #tpu.memory_space<vmem>>, vector<16x16xf32>
      %1047 = vector.broadcast %1045 : f32 to vector<16x16xf32>
      %1048 = arith.mulf %1047, %1046 : vector<16x16xf32>
      %1049 = arith.addf %1044, %1048 : vector<16x16xf32>
      %1050 = arith.addf %1012, %1049 : vector<16x16xf32>
      %c1_624 = arith.constant 1 : index
      %c5_625 = arith.constant 5 : index
      %c131_626 = arith.constant 131 : index
      %1051 = vector.load %arg6[%c1_624, %c5_625, %c131_626] : memref<2x32x256xf32, #tpu.memory_space<vmem>>, vector<1x22x16xf32>
      %1052 = vector.shape_cast %1051 : vector<1x22x16xf32> to vector<22x16xf32>
      %c0_627 = arith.constant 0 : index
      %c0_628 = arith.constant 0 : index
      %1053 = vector.load %arg7[%c0_627, %c0_628] : memref<22x16xf32, #tpu.memory_space<vmem>>, vector<22x16xf32>
      tpu.vector_store %arg7[%c0_627, %c0_628], %1052 {strides = array<i32>} : memref<22x16xf32, #tpu.memory_space<vmem>>, vector<22x16xf32>,
      %c55_629 = arith.constant 55 : index
      %1054 = memref.load %arg3[%c55_629] : memref<98xf32, #tpu.memory_space<smem>>
      %c0_630 = arith.constant 0 : index
      %c0_631 = arith.constant 0 : index
      %1055 = vector.load %arg7[%c0_630, %c0_631] : memref<22x16xf32, #tpu.memory_space<vmem>>, vector<16x16xf32>
      %1056 = vector.broadcast %1054 : f32 to vector<16x16xf32>
      %1057 = arith.mulf %1056, %1055 : vector<16x16xf32>
      %c62_632 = arith.constant 62 : index
      %1058 = memref.load %arg3[%c62_632] : memref<98xf32, #tpu.memory_space<smem>>
      %c1_633 = arith.constant 1 : index
      %c0_634 = arith.constant 0 : index
      %1059 = vector.load %arg7[%c1_633, %c0_634] : memref<22x16xf32, #tpu.memory_space<vmem>>, vector<16x16xf32>
      %1060 = vector.broadcast %1058 : f32 to vector<16x16xf32>
      %1061 = arith.mulf %1060, %1059 : vector<16x16xf32>
      %1062 = arith.addf %1057, %1061 : vector<16x16xf32>
      %c69_635 = arith.constant 69 : index
      %1063 = memref.load %arg3[%c69_635] : memref<98xf32, #tpu.memory_space<smem>>
      %c2_636 = arith.constant 2 : index
      %c0_637 = arith.constant 0 : index
      %1064 = vector.load %arg7[%c2_636, %c0_637] : memref<22x16xf32, #tpu.memory_space<vmem>>, vector<16x16xf32>
      %1065 = vector.broadcast %1063 : f32 to vector<16x16xf32>
      %1066 = arith.mulf %1065, %1064 : vector<16x16xf32>
      %1067 = arith.addf %1062, %1066 : vector<16x16xf32>
      %c76_638 = arith.constant 76 : index
      %1068 = memref.load %arg3[%c76_638] : memref<98xf32, #tpu.memory_space<smem>>
      %c3_639 = arith.constant 3 : index
      %c0_640 = arith.constant 0 : index
      %1069 = vector.load %arg7[%c3_639, %c0_640] : memref<22x16xf32, #tpu.memory_space<vmem>>, vector<16x16xf32>
      %1070 = vector.broadcast %1068 : f32 to vector<16x16xf32>
      %1071 = arith.mulf %1070, %1069 : vector<16x16xf32>
      %1072 = arith.addf %1067, %1071 : vector<16x16xf32>
      %c83_641 = arith.constant 83 : index
      %1073 = memref.load %arg3[%c83_641] : memref<98xf32, #tpu.memory_space<smem>>
      %c4_642 = arith.constant 4 : index
      %c0_643 = arith.constant 0 : index
      %1074 = vector.load %arg7[%c4_642, %c0_643] : memref<22x16xf32, #tpu.memory_space<vmem>>, vector<16x16xf32>
      %1075 = vector.broadcast %1073 : f32 to vector<16x16xf32>
      %1076 = arith.mulf %1075, %1074 : vector<16x16xf32>
      %1077 = arith.addf %1072, %1076 : vector<16x16xf32>
      %c90_644 = arith.constant 90 : index
      %1078 = memref.load %arg3[%c90_644] : memref<98xf32, #tpu.memory_space<smem>>
      %c5_645 = arith.constant 5 : index
      %c0_646 = arith.constant 0 : index
      %1079 = vector.load %arg7[%c5_645, %c0_646] : memref<22x16xf32, #tpu.memory_space<vmem>>, vector<16x16xf32>
      %1080 = vector.broadcast %1078 : f32 to vector<16x16xf32>
      %1081 = arith.mulf %1080, %1079 : vector<16x16xf32>
      %1082 = arith.addf %1077, %1081 : vector<16x16xf32>
      %c97_647 = arith.constant 97 : index
      %1083 = memref.load %arg3[%c97_647] : memref<98xf32, #tpu.memory_space<smem>>
      %c6_648 = arith.constant 6 : index
      %c0_649 = arith.constant 0 : index
      %1084 = vector.load %arg7[%c6_648, %c0_649] : memref<22x16xf32, #tpu.memory_space<vmem>>, vector<16x16xf32>
      %1085 = vector.broadcast %1083 : f32 to vector<16x16xf32>
      %1086 = arith.mulf %1085, %1084 : vector<16x16xf32>
      %1087 = arith.addf %1082, %1086 : vector<16x16xf32>
      %1088 = arith.addf %1050, %1087 : vector<16x16xf32>
      %1089 = arith.negf %1088 : vector<16x16xf32>
      %1090 = math.exp %1089 : vector<16x16xf32>
      %cst_650 = arith.constant 1.000000e+00 : f32
      %1091 = vector.broadcast %cst_650 : f32 to vector<16x16xf32>
      %1092 = arith.addf %1091, %1090 : vector<16x16xf32>
      %1093 = arith.divf %1091, %1092 : vector<16x16xf32>
      %c1_651 = arith.constant 1 : index
      %c0_652 = arith.constant 0 : index
      %c0_653 = arith.constant 0 : index
      %c0_654 = arith.constant 0 : index
      %1094 = vector.load %arg4[%c1_651, %c0_652, %c0_653, %c0_654] : memref<2x1x16x16xf32, #tpu.memory_space<vmem>>, vector<1x1x16x16xf32>
      %1095 = vector.shape_cast %1094 : vector<1x1x16x16xf32> to vector<16x16xf32>
      %1096 = vector.shape_cast %1093 : vector<16x16xf32> to vector<1x1x16x16xf32>
      tpu.vector_store %arg4[%c1_651, %c0_652, %c0_653, %c0_654], %1096 {strides = array<i32>} : memref<2x1x16x16xf32, #tpu.memory_space<vmem>>, vector<1x1x16x16xf32>,
    } else {
    }
    return
  }
  func.func @transform_0(%arg0: i32, %arg1: i32) -> (i32, i32, i32, i32) {
    %c0_i32 = arith.constant 0 : i32
    %c0_i32_0 = arith.constant 0 : i32
    %c0_i32_1 = arith.constant 0 : i32
    return %arg0, %arg1, %c0_i32, %c0_i32_0 : i32, i32, i32, i32
  }
  func.func @transform_1(%arg0: i32, %arg1: i32) -> i32 {
    %c0_i32 = arith.constant 0 : i32
    %c0_i32_0 = arith.constant 0 : i32
    return %c0_i32 : i32
  }
  func.func @transform_2(%arg0: i32, %arg1: i32) -> (i32, i32, i32, i32) {
    %c0_i32 = arith.constant 0 : i32
    %c0_i32_0 = arith.constant 0 : i32
    %c0_i32_1 = arith.constant 0 : i32
    %c0_i32_2 = arith.constant 0 : i32
    return %arg0, %c0_i32, %c0_i32_0, %c0_i32_1 : i32, i32, i32, i32
  }
}

</mosaic_0001>

<llo_original>
// kernel: tpu_custom_call.1
$region0: #{tpu_custom_call.1}
  #allocation0 [shape = 'u32[]', space=smem, size = 0x4, offset = 0x4, fixed_abs, tag = 'smem constant byte address 0x4 - core index']
  #allocation1 [shape = 'u32[72,128]{1,0:T(1,128)}', space=vmem, size = 0x9000, scoped, tag = 'internal scratch']
  #allocation2 [shape = 'f32[2,32,256]{2,1,0:T(8,128)}', space=vmem, size = 0x10000, scoped, tag = 'scratch operand']
  #allocation3 [shape = 'f32[2,32,256]{2,1,0:T(8,128)}', space=vmem, size = 0x10000, scoped, tag = 'scratch operand']
  #allocation4 [shape = 'f32[22,16]{1,0:T(8,128)}', space=vmem, size = 0x3000, scoped, tag = 'scratch operand']
  %s0 = inlined_call_operand.hbm [shape: f32[2,4,16,16], index: 0, kind: input, shape index: {}]
  %s1 = inlined_call_operand.hbm [shape: f32[98], index: 1, kind: input, shape index: {}]
  %s2 = inlined_call_operand.hbm [shape: f32[2,1,16,16], index: 2, kind: output, shape index: {}]
  %s3 = sld [smem:[#allocation0]]
  $region34: #{tpu_custom_call.1} parent=0
    _
  %s5 = ssub.s32 1, %s3
  %s6 = scalar_select 0, %s5, %s3
  $region1: #{tpu_custom_call.1} parent=0
    #allocation5 [shape = 'u8[65536]{0}', space=vmem, size = 0x10000, scoped, tag = 'input window, operand 0, single buffered']
    #allocation6 [shape = 's32[1]{0}', space=sflag, size = 0x4, scoped, tag = 'scoped memory for tpu_custom_call.1']
    #allocation7 [shape = 's32[1]{0}', space=sflag, size = 0x4, scoped, tag = 'scoped memory for tpu_custom_call.1']
    #allocation8 [shape = 's32[1]{0}', space=sflag, size = 0x4, scoped, tag = 'scoped memory for tpu_custom_call.1']
    #allocation9 [shape = 'u8[512]{0}', space=smem, size = 0x200, scoped, tag = 'input window, operand 1, single buffered']
    #allocation10 [shape = 'u8[16384]{0}', space=vmem, size = 0x4000, scoped, tag = 'output window, operand 0, single buffered']
    %7 = vsyncpa [#allocation6], 0
    %8 = vsyncpa [#allocation8], 0
    %9 = vsyncpa [#allocation7], 0
    // Predicated region
    $region2: #{tpu_custom_call.1} parent=1 // pred_check
      _
    $region3: #{tpu_custom_call.1} parent=1 // pred_check_branch
      %11 = sbr.rel (0) target = $region5
    $region4: #{tpu_custom_call.1} parent=1 // pred_region
      %13 = vsyncadd [#allocation6], 0
      %s14 = sshll.u32 %s0, 4
      %s15 = int_to_ptr.hbm [resolvable:$true] %s14
      %s16 = sshll.u32 [#allocation5], 4
      %s17 = int_to_ptr.vmem [resolvable:$true] %s16
      %22 = dma.hbm_to_vmem [thread:$0]  %s15, 2048, %s17, [#allocation6], 128, 128, 8
    $region5: #{tpu_custom_call.1} parent=1 // pred_fallthru
      _
    // Predicated region
    $region6: #{tpu_custom_call.1} parent=1 // pred_check
      _
    $region7: #{tpu_custom_call.1} parent=1 // pred_check_branch
      %24 = sbr.rel (0) target = $region9
    $region8: #{tpu_custom_call.1} parent=1 // pred_region
      %26 = vsyncadd [#allocation8], 0
      %s28 = sshll.u32 %s1, 4
      %s29 = int_to_ptr.hbm [resolvable:$true] %s28
      %31 = dma.hbm_to_smem %s29, 16, [#allocation9], [#allocation8]
    $region9: #{tpu_custom_call.1} parent=1 // pred_fallthru
      _
    // Predicated region
    $region10: #{tpu_custom_call.1} parent=1 // pred_check
      _
    $region11: #{tpu_custom_call.1} parent=1 // pred_check_branch
      %33 = sbr.rel (0) target = $region13
    $region12: #{tpu_custom_call.1} parent=1 // pred_region
      %35 = dma.done [#allocation6], 2048
    $region13: #{tpu_custom_call.1} parent=1 // pred_fallthru
      _
    // Predicated region
    $region14: #{tpu_custom_call.1} parent=1 // pred_check
      _
    $region15: #{tpu_custom_call.1} parent=1 // pred_check_branch
      %37 = sbr.rel (0) target = $region17
    $region16: #{tpu_custom_call.1} parent=1 // pred_region
      %39 = dma.done [#allocation8], 16
    $region17: #{tpu_custom_call.1} parent=1 // pred_fallthru
      _
    %40 = sfence
    %p41 = scmp.eq.s32.totalorder 0, 0
    // Predicated region
    $region18: #{tpu_custom_call.1} parent=1 // pred_check
      %p42 = pneg %p41
    $region19: #{tpu_custom_call.1} parent=1 // pred_check_branch
      %44 = sbr.rel (%p42) target = $region21
    $region20: #{tpu_custom_call.1} parent=1 // pred_region
      %45 = vst [vmem:[#allocation2] sm:$0xff] 0.0
      %46 = vst [vmem:[#allocation2 + $0x8] sm:$0xff] 0.0
      %47 = vst [vmem:[#allocation2 + $0x10] sm:$0xff] 0.0
      %48 = vst [vmem:[#allocation2 + $0x18] sm:$0xff] 0.0
      %49 = vst [vmem:[#allocation2 + $0x20] sm:$0xff] 0.0
      %50 = vst [vmem:[#allocation2 + $0x28] sm:$0xff] 0.0
      %51 = vst [vmem:[#allocation2 + $0x30] sm:$0xff] 0.0
      %52 = vst [vmem:[#allocation2 + $0x38] sm:$0xff] 0.0
      %53 = vst [vmem:[#allocation2 + $0x40] sm:$0xff] 0.0
      %54 = vst [vmem:[#allocation2 + $0x48] sm:$0xff] 0.0
      %55 = vst [vmem:[#allocation2 + $0x50] sm:$0xff] 0.0
      %56 = vst [vmem:[#allocation2 + $0x58] sm:$0xff] 0.0
      %57 = vst [vmem:[#allocation2 + $0x60] sm:$0xff] 0.0
      %58 = vst [vmem:[#allocation2 + $0x68] sm:$0xff] 0.0
      %59 = vst [vmem:[#allocation2 + $0x70] sm:$0xff] 0.0
      %60 = vst [vmem:[#allocation2 + $0x78] sm:$0xff] 0.0
      %61 = vst [vmem:[#allocation3] sm:$0xff] 0.0
      %62 = vst [vmem:[#allocation3 + $0x8] sm:$0xff] 0.0
      %63 = vst [vmem:[#allocation3 + $0x10] sm:$0xff] 0.0
      %64 = vst [vmem:[#allocation3 + $0x18] sm:$0xff] 0.0
      %65 = vst [vmem:[#allocation3 + $0x20] sm:$0xff] 0.0
      %66 = vst [vmem:[#allocation3 + $0x28] sm:$0xff] 0.0
      %67 = vst [vmem:[#allocation3 + $0x30] sm:$0xff] 0.0
      %68 = vst [vmem:[#allocation3 + $0x38] sm:$0xff] 0.0
      %69 = vst [vmem:[#allocation3 + $0x40] sm:$0xff] 0.0
      %70 = vst [vmem:[#allocation3 + $0x48] sm:$0xff] 0.0
      %71 = vst [vmem:[#allocation3 + $0x50] sm:$0xff] 0.0
      %72 = vst [vmem:[#allocation3 + $0x58] sm:$0xff] 0.0
      %73 = vst [vmem:[#allocation3 + $0x60] sm:$0xff] 0.0
      %74 = vst [vmem:[#allocation3 + $0x68] sm:$0xff] 0.0
      %75 = vst [vmem:[#allocation3 + $0x70] sm:$0xff] 0.0
      %76 = vst [vmem:[#allocation3 + $0x78] sm:$0xff] 0.0
      %vm77 = vcmask 130048
      %78 = vst.msk [vmem:[#allocation3 + $0x18] sm:$0xff] %vm77, -inf
      %79 = vst.msk [vmem:[#allocation3 + $0x28] sm:$0xff] %vm77, -inf
      %80 = vst.msk [vmem:[#allocation3 + $0x58] sm:$0xff] %vm77, -inf
      %81 = vst.msk [vmem:[#allocation3 + $0x68] sm:$0xff] %vm77, -inf
    $region21: #{tpu_custom_call.1} parent=1 // pred_fallthru
      _
    %v82 = vld [vmem:[#allocation5] sm:$0xff]
    %v83 = vld [vmem:[#allocation5 + $0x8] sm:$0xff]
    %v84 = vld [vmem:[#allocation5 + $0x10] sm:$0xff]
    %v85 = vld [vmem:[#allocation5 + $0x18] sm:$0xff]
    %v86 = vld [vmem:[#allocation5 + $0x20] sm:$0xff]
    %v87 = vld [vmem:[#allocation5 + $0x28] sm:$0xff]
    %v88 = vld [vmem:[#allocation5 + $0x30] sm:$0xff]
    %v89 = vld [vmem:[#allocation5 + $0x38] sm:$0xff]
    %v90 = vld [vmem:[#allocation5 + $0x40] sm:$0xff]
    %v91 = vld [vmem:[#allocation5 + $0x48] sm:$0xff]
    %v92 = vld [vmem:[#allocation5 + $0x50] sm:$0xff]
    %v93 = vld [vmem:[#allocation5 + $0x58] sm:$0xff]
    %v94 = vld [vmem:[#allocation5 + $0x60] sm:$0xff]
    %v95 = vld [vmem:[#allocation5 + $0x68] sm:$0xff]
    %v96 = vld [vmem:[#allocation5 + $0x70] sm:$0xff]
    %v97 = vld [vmem:[#allocation5 + $0x78] sm:$0xff]
    %vm98 = vcmask 130048
    %v99 = vsel %vm98, %v82, 0.0
    %v100 = vsel %vm98, %v84, 0.0
    %v101 = vadd.f32 %v99, %v100
    %v102 = vsel %vm98, %v86, 0.0
    %v103 = vadd.f32 %v101, %v102
    %v104 = vsel %vm98, %v88, 0.0
    %v105 = vadd.f32 %v103, %v104
    %v106 = vsel %vm98, %v83, 0.0
    %v107 = vsel %vm98, %v85, 0.0
    %v108 = vadd.f32 %v106, %v107
    %v109 = vsel %vm98, %v87, 0.0
    %v110 = vadd.f32 %v108, %v109
    %v111 = vsel %vm98, %v89, 0.0
    %v112 = vadd.f32 %v110, %v111
    %v113 = vsel %vm98, %v90, 0.0
    %v114 = vsel %vm98, %v92, 0.0
    %v115 = vadd.f32 %v113, %v114
    %v116 = vsel %vm98, %v94, 0.0
    %v117 = vadd.f32 %v115, %v116
    %v118 = vsel %vm98, %v96, 0.0
    %v119 = vadd.f32 %v117, %v118
    %v120 = vsel %vm98, %v91, 0.0
    %v121 = vsel %vm98, %v93, 0.0
    %v122 = vadd.f32 %v120, %v121
    %v123 = vsel %vm98, %v95, 0.0
    %v124 = vadd.f32 %v122, %v123
    %v125 = vsel %vm98, %v97, 0.0
    %v126 = vadd.f32 %v124, %v125
    %v127 = vsel %vm98, %v82, -inf
    %v128 = vsel %vm98, %v84, -inf
    %v129 = vmax.f32 %v127, %v128
    %v130 = vsel %vm98, %v86, -inf
    %v131 = vmax.f32 %v129, %v130
    %v132 = vsel %vm98, %v88, -inf
    %v133 = vmax.f32 %v131, %v132
    %v134 = vsel %vm98, %v83, -inf
    %v135 = vsel %vm98, %v85, -inf
    %v136 = vmax.f32 %v134, %v135
    %v137 = vsel %vm98, %v87, -inf
    %v138 = vmax.f32 %v136, %v137
    %v139 = vsel %vm98, %v89, -inf
    %v140 = vmax.f32 %v138, %v139
    %v141 = vsel %vm98, %v90, -inf
    %v142 = vsel %vm98, %v92, -inf
    %v143 = vmax.f32 %v141, %v142
    %v144 = vsel %vm98, %v94, -inf
    %v145 = vmax.f32 %v143, %v144
    %v146 = vsel %vm98, %v96, -inf
    %v147 = vmax.f32 %v145, %v146
    %v148 = vsel %vm98, %v91, -inf
    %v149 = vsel %vm98, %v93, -inf
    %v150 = vmax.f32 %v148, %v149
    %v151 = vsel %vm98, %v95, -inf
    %v152 = vmax.f32 %v150, %v151
    %v153 = vsel %vm98, %v97, -inf
    %v154 = vmax.f32 %v152, %v153
    %v155 = vld [vmem:[#allocation2 + $0x18] sm:$0xff]
    %v156 = vld [vmem:[#allocation2 + $0x28] sm:$0xff]
    %v157 = vld [vmem:[#allocation2 + $0x58] sm:$0xff]
    %v158 = vld [vmem:[#allocation2 + $0x68] sm:$0xff]
    %v159 = vadd.f32 %v155, %v105
    %v160 = vadd.f32 %v156, %v112
    %v161 = vadd.f32 %v157, %v119
    %v162 = vadd.f32 %v158, %v126
    %163 = vst.msk [vmem:[#allocation2 + $0x18] sm:$0xff] %vm98, %v159
    %164 = vst.msk [vmem:[#allocation2 + $0x28] sm:$0xff] %vm98, %v160
    %165 = vst.msk [vmem:[#allocation2 + $0x58] sm:$0xff] %vm98, %v161
    %166 = vst.msk [vmem:[#allocation2 + $0x68] sm:$0xff] %vm98, %v162
    %v167 = vld [vmem:[#allocation3 + $0x18] sm:$0xff]
    %v168 = vld [vmem:[#allocation3 + $0x28] sm:$0xff]
    %v169 = vld [vmem:[#allocation3 + $0x58] sm:$0xff]
    %v170 = vld [vmem:[#allocation3 + $0x68] sm:$0xff]
    %v171 = vmax.f32 %v167, %v133
    %v172 = vmax.f32 %v168, %v140
    %v173 = vmax.f32 %v169, %v147
    %v174 = vmax.f32 %v170, %v154
    %175 = vst.msk [vmem:[#allocation3 + $0x18] sm:$0xff] %vm98, %v171
    %176 = vst.msk [vmem:[#allocation3 + $0x28] sm:$0xff] %vm98, %v172
    %177 = vst.msk [vmem:[#allocation3 + $0x58] sm:$0xff] %vm98, %v173
    %178 = vst.msk [vmem:[#allocation3 + $0x68] sm:$0xff] %vm98, %v174
    // Predicated region
    $region22: #{tpu_custom_call.1} parent=1 // pred_check
      %p179 = pneg %p41
    $region23: #{tpu_custom_call.1} parent=1 // pred_check_branch
      %181 = sbr.rel (%p179) target = $region25
    $region24: #{tpu_custom_call.1} parent=1 // pred_region
      %v182 = vld [vmem:[#allocation2] sm:$0xe0]
      %v183 = vld [vmem:[#allocation2 + $0x8] sm:$0xe0]
      %v184 = vld [vmem:[#allocation2 + $0x10] sm:$0xff]
      %v185 = vld [vmem:[#allocation2 + $0x18] sm:$0xff]
      %v186 = vld [vmem:[#allocation2 + $0x20] sm:$0xff]
      %v187 = vld [vmem:[#allocation2 + $0x28] sm:$0xff]
      %v188 = vld [vmem:[#allocation2 + $0x30] sm:$0x7]
      %v189 = vld [vmem:[#allocation2 + $0x38] sm:$0x7]
      %198 = vrot.lane.b32.xlu0 %v182, 3
      %v199 = vpop.permute.xlu0 %198
      %200 = vrot.lane.b32.xlu0 %v183, 3
      %v201 = vpop.permute.xlu0 %200
      %202 = vrot.lane.b32.xlu0 %v184, 3
      %v203 = vpop.permute.xlu0 %202
      %204 = vrot.lane.b32.xlu0 %v185, 3
      %v205 = vpop.permute.xlu0 %204
      %206 = vrot.lane.b32.xlu0 %v186, 3
      %v207 = vpop.permute.xlu0 %206
      %208 = vrot.lane.b32.xlu0 %v187, 3
      %v209 = vpop.permute.xlu0 %208
      %210 = vrot.lane.b32.xlu0 %v188, 3
      %v211 = vpop.permute.xlu0 %210
      %212 = vrot.lane.b32.xlu0 %v189, 3
      %v213 = vpop.permute.xlu0 %212
      %vm214 = vcmask 23552
      %v215 = vsel %vm214, %v199, %v201
      %v216 = vsel %vm214, %v203, %v205
      %v217 = vsel %vm214, %v207, %v209
      %v218 = vsel %vm214, %v211, %v213
      %vm223 = vcmask 130053
      %224 = vst.msk [vmem:[#allocation4 - $0x5] sm:$0xe0] %vm223, %v215
      %225 = vst.msk [vmem:[#allocation4 + $0x3] sm:$0xff] %vm98, %v216
      %226 = vst.msk [vmem:[#allocation4 + $0xb] sm:$0xff] %vm98, %v217
      %vm227 = vcmask 124928
      %228 = vst.msk [vmem:[#allocation4 + $0x13] sm:$0x7] %vm227, %v218
      %s229 = sld [smem:[#allocation9]]
      %v230 = vld [vmem:[#allocation4] sm:$0xff]
      %v231 = vld [vmem:[#allocation4 + $0x8] sm:$0xff]
      %v232 = vstv %s229
      %v233 = vmul.f32 %v232, %v230
      %v234 = vmul.f32 %v232, %v231
      %s235 = sld [smem:[#allocation9 + $0x7]]
      %v236 = vld [vmem:[#allocation4 + $0x1] sm:$0xff]
      %v237 = vld [vmem:[#allocation4 + $0x9] sm:$0xff]
      %v238 = vstv %s235
      %v239 = vmul.f32 %v238, %v236
      %v240 = vmul.f32 %v238, %v237
      %v241 = vadd.f32 %v233, %v239
      %v242 = vadd.f32 %v234, %v240
      %s243 = sld [smem:[#allocation9 + $0xe]]
      %v244 = vld [vmem:[#allocation4 + $0x2] sm:$0xff]
      %v245 = vld [vmem:[#allocation4 + $0xa] sm:$0xff]
      %v246 = vstv %s243
      %v247 = vmul.f32 %v246, %v244
      %v248 = vmul.f32 %v246, %v245
      %v249 = vadd.f32 %v241, %v247
      %v250 = vadd.f32 %v242, %v248
      %s251 = sld [smem:[#allocation9 + $0x15]]
      %v252 = vld [vmem:[#allocation4 + $0x3] sm:$0xff]
      %v253 = vld [vmem:[#allocation4 + $0xb] sm:$0xff]
      %v254 = vstv %s251
      %v255 = vmul.f32 %v254, %v252
      %v256 = vmul.f32 %v254, %v253
      %v257 = vadd.f32 %v249, %v255
      %v258 = vadd.f32 %v250, %v256
      %s259 = sld [smem:[#allocation9 + $0x1c]]
      %v260 = vld [vmem:[#allocation4 + $0x4] sm:$0xff]
      %v261 = vld [vmem:[#allocation4 + $0xc] sm:$0xff]
      %v262 = vstv %s259
      %v263 = vmul.f32 %v262, %v260
      %v264 = vmul.f32 %v262, %v261
      %v265 = vadd.f32 %v257, %v263
      %v266 = vadd.f32 %v258, %v264
      %s267 = sld [smem:[#allocation9 + $0x23]]
      %v268 = vld [vmem:[#allocation4 + $0x5] sm:$0xff]
      %v269 = vld [vmem:[#allocation4 + $0xd] sm:$0xff]
      %v270 = vstv %s267
      %v271 = vmul.f32 %v270, %v268
      %v272 = vmul.f32 %v270, %v269
      %v273 = vadd.f32 %v265, %v271
      %v274 = vadd.f32 %v266, %v272
      %s275 = sld [smem:[#allocation9 + $0x2a]]
      %v276 = vld [vmem:[#allocation4 + $0x6] sm:$0xff]
      %v277 = vld [vmem:[#allocation4 + $0xe] sm:$0xff]
      %v278 = vstv %s275
      %v279 = vmul.f32 %v278, %v276
      %v280 = vmul.f32 %v278, %v277
      %v281 = vadd.f32 %v273, %v279
      %v282 = vadd.f32 %v274, %v280
      %v283 = vadd.f32 %v281, 0.0
      %v284 = vadd.f32 %v282, 0.0
      %v285 = vld [vmem:[#allocation2] sm:$0xe0]
      %v286 = vld [vmem:[#allocation2 + $0x8] sm:$0xe0]
      %v287 = vld [vmem:[#allocation2 + $0x10] sm:$0xff]
      %v288 = vld [vmem:[#allocation2 + $0x18] sm:$0xff]
      %v289 = vld [vmem:[#allocation2 + $0x20] sm:$0xff]
      %v290 = vld [vmem:[#allocation2 + $0x28] sm:$0xff]
      %v291 = vld [vmem:[#allocation2 + $0x30] sm:$0x7]
      %v292 = vld [vmem:[#allocation2 + $0x38] sm:$0x7]
      %301 = vrot.lane.b32.xlu0 %v285, 2
      %v302 = vpop.permute.xlu0 %301
      %303 = vrot.lane.b32.xlu0 %v286, 2
      %v304 = vpop.permute.xlu0 %303
      %305 = vrot.lane.b32.xlu0 %v287, 2
      %v306 = vpop.permute.xlu0 %305
      %307 = vrot.lane.b32.xlu0 %v288, 2
      %v308 = vpop.permute.xlu0 %307
      %309 = vrot.lane.b32.xlu0 %v289, 2
      %v310 = vpop.permute.xlu0 %309
      %311 = vrot.lane.b32.xlu0 %v290, 2
      %v312 = vpop.permute.xlu0 %311
      %313 = vrot.lane.b32.xlu0 %v291, 2
      %v314 = vpop.permute.xlu0 %313
      %315 = vrot.lane.b32.xlu0 %v292, 2
      %v316 = vpop.permute.xlu0 %315
      %vm317 = vcmask 15360
      %v318 = vsel %vm317, %v302, %v304
      %v319 = vsel %vm317, %v306, %v308
      %v320 = vsel %vm317, %v310, %v312
      %v321 = vsel %vm317, %v314, %v316
      %326 = vst.msk [vmem:[#allocation4 - $0x5] sm:$0xe0] %vm223, %v318
      %327 = vst.msk [vmem:[#allocation4 + $0x3] sm:$0xff] %vm98, %v319
      %328 = vst.msk [vmem:[#allocation4 + $0xb] sm:$0xff] %vm98, %v320
      %329 = vst.msk [vmem:[#allocation4 + $0x13] sm:$0x7] %vm227, %v321
      %s330 = sld [smem:[#allocation9 + $0x1]]
      %v331 = vld [vmem:[#allocation4] sm:$0xff]
      %v332 = vld [vmem:[#allocation4 + $0x8] sm:$0xff]
      %v333 = vstv %s330
      %v334 = vmul.f32 %v333, %v331
      %v335 = vmul.f32 %v333, %v332
      %s336 = sld [smem:[#allocation9 + $0x8]]
      %v337 = vld [vmem:[#allocation4 + $0x1] sm:$0xff]
      %v338 = vld [vmem:[#allocation4 + $0x9] sm:$0xff]
      %v339 = vstv %s336
      %v340 = vmul.f32 %v339, %v337
      %v341 = vmul.f32 %v339, %v338
      %v342 = vadd.f32 %v334, %v340
      %v343 = vadd.f32 %v335, %v341
      %s344 = sld [smem:[#allocation9 + $0xf]]
      %v345 = vld [vmem:[#allocation4 + $0x2] sm:$0xff]
      %v346 = vld [vmem:[#allocation4 + $0xa] sm:$0xff]
      %v347 = vstv %s344
      %v348 = vmul.f32 %v347, %v345
      %v349 = vmul.f32 %v347, %v346
      %v350 = vadd.f32 %v342, %v348
      %v351 = vadd.f32 %v343, %v349
      %s352 = sld [smem:[#allocation9 + $0x16]]
      %v353 = vld [vmem:[#allocation4 + $0x3] sm:$0xff]
      %v354 = vld [vmem:[#allocation4 + $0xb] sm:$0xff]
      %v355 = vstv %s352
      %v356 = vmul.f32 %v355, %v353
      %v357 = vmul.f32 %v355, %v354
      %v358 = vadd.f32 %v350, %v356
      %v359 = vadd.f32 %v351, %v357
      %s360 = sld [smem:[#allocation9 + $0x1d]]
      %v361 = vld [vmem:[#allocation4 + $0x4] sm:$0xff]
      %v362 = vld [vmem:[#allocation4 + $0xc] sm:$0xff]
      %v363 = vstv %s360
      %v364 = vmul.f32 %v363, %v361
      %v365 = vmul.f32 %v363, %v362
      %v366 = vadd.f32 %v358, %v364
      %v367 = vadd.f32 %v359, %v365
      %s368 = sld [smem:[#allocation9 + $0x24]]
      %v369 = vld [vmem:[#allocation4 + $0x5] sm:$0xff]
      %v370 = vld [vmem:[#allocation4 + $0xd] sm:$0xff]
      %v371 = vstv %s368
      %v372 = vmul.f32 %v371, %v369
      %v373 = vmul.f32 %v371, %v370
      %v374 = vadd.f32 %v366, %v372
      %v375 = vadd.f32 %v367, %v373
      %s376 = sld [smem:[#allocation9 + $0x2b]]
      %v377 = vld [vmem:[#allocation4 + $0x6] sm:$0xff]
      %v378 = vld [vmem:[#allocation4 + $0xe] sm:$0xff]
      %v379 = vstv %s376
      %v380 = vmul.f32 %v379, %v377
      %v381 = vmul.f32 %v379, %v378
      %v382 = vadd.f32 %v374, %v380
      %v383 = vadd.f32 %v375, %v381
      %v384 = vadd.f32 %v283, %v382
      %v385 = vadd.f32 %v284, %v383
      %v386 = vld [vmem:[#allocation2] sm:$0xe0]
      %v387 = vld [vmem:[#allocation2 + $0x8] sm:$0xe0]
      %v388 = vld [vmem:[#allocation2 + $0x10] sm:$0xff]
      %v389 = vld [vmem:[#allocation2 + $0x18] sm:$0xff]
      %v390 = vld [vmem:[#allocation2 + $0x20] sm:$0xff]
      %v391 = vld [vmem:[#allocation2 + $0x28] sm:$0xff]
      %v392 = vld [vmem:[#allocation2 + $0x30] sm:$0x7]
      %v393 = vld [vmem:[#allocation2 + $0x38] sm:$0x7]
      %402 = vrot.lane.b32.xlu0 %v386, 1
      %v403 = vpop.permute.xlu0 %402
      %404 = vrot.lane.b32.xlu0 %v387, 1
      %v405 = vpop.permute.xlu0 %404
      %406 = vrot.lane.b32.xlu0 %v388, 1
      %v407 = vpop.permute.xlu0 %406
      %408 = vrot.lane.b32.xlu0 %v389, 1
      %v409 = vpop.permute.xlu0 %408
      %410 = vrot.lane.b32.xlu0 %v390, 1
      %v411 = vpop.permute.xlu0 %410
      %412 = vrot.lane.b32.xlu0 %v391, 1
      %v413 = vpop.permute.xlu0 %412
      %414 = vrot.lane.b32.xlu0 %v392, 1
      %v415 = vpop.permute.xlu0 %414
      %416 = vrot.lane.b32.xlu0 %v393, 1
      %v417 = vpop.permute.xlu0 %416
      %vm418 = vcmask 7168
      %v419 = vsel %vm418, %v403, %v405
      %v420 = vsel %vm418, %v407, %v409
      %v421 = vsel %vm418, %v411, %v413
      %v422 = vsel %vm418, %v415, %v417
      %427 = vst.msk [vmem:[#allocation4 - $0x5] sm:$0xe0] %vm223, %v419
      %428 = vst.msk [vmem:[#allocation4 + $0x3] sm:$0xff] %vm98, %v420
      %429 = vst.msk [vmem:[#allocation4 + $0xb] sm:$0xff] %vm98, %v421
      %430 = vst.msk [vmem:[#allocation4 + $0x13] sm:$0x7] %vm227, %v422
      %s431 = sld [smem:[#allocation9 + $0x2]]
      %v432 = vld [vmem:[#allocation4] sm:$0xff]
      %v433 = vld [vmem:[#allocation4 + $0x8] sm:$0xff]
      %v434 = vstv %s431
      %v435 = vmul.f32 %v434, %v432
      %v436 = vmul.f32 %v434, %v433
      %s437 = sld [smem:[#allocation9 + $0x9]]
      %v438 = vld [vmem:[#allocation4 + $0x1] sm:$0xff]
      %v439 = vld [vmem:[#allocation4 + $0x9] sm:$0xff]
      %v440 = vstv %s437
      %v441 = vmul.f32 %v440, %v438
      %v442 = vmul.f32 %v440, %v439
      %v443 = vadd.f32 %v435, %v441
      %v444 = vadd.f32 %v436, %v442
      %s445 = sld [smem:[#allocation9 + $0x10]]
      %v446 = vld [vmem:[#allocation4 + $0x2] sm:$0xff]
      %v447 = vld [vmem:[#allocation4 + $0xa] sm:$0xff]
      %v448 = vstv %s445
      %v449 = vmul.f32 %v448, %v446
      %v450 = vmul.f32 %v448, %v447
      %v451 = vadd.f32 %v443, %v449
      %v452 = vadd.f32 %v444, %v450
      %s453 = sld [smem:[#allocation9 + $0x17]]
      %v454 = vld [vmem:[#allocation4 + $0x3] sm:$0xff]
      %v455 = vld [vmem:[#allocation4 + $0xb] sm:$0xff]
      %v456 = vstv %s453
      %v457 = vmul.f32 %v456, %v454
      %v458 = vmul.f32 %v456, %v455
      %v459 = vadd.f32 %v451, %v457
      %v460 = vadd.f32 %v452, %v458
      %s461 = sld [smem:[#allocation9 + $0x1e]]
      %v462 = vld [vmem:[#allocation4 + $0x4] sm:$0xff]
      %v463 = vld [vmem:[#allocation4 + $0xc] sm:$0xff]
      %v464 = vstv %s461
      %v465 = vmul.f32 %v464, %v462
      %v466 = vmul.f32 %v464, %v463
      %v467 = vadd.f32 %v459, %v465
      %v468 = vadd.f32 %v460, %v466
      %s469 = sld [smem:[#allocation9 + $0x25]]
      %v470 = vld [vmem:[#allocation4 + $0x5] sm:$0xff]
      %v471 = vld [vmem:[#allocation4 + $0xd] sm:$0xff]
      %v472 = vstv %s469
      %v473 = vmul.f32 %v472, %v470
      %v474 = vmul.f32 %v472, %v471
      %v475 = vadd.f32 %v467, %v473
      %v476 = vadd.f32 %v468, %v474
      %s477 = sld [smem:[#allocation9 + $0x2c]]
      %v478 = vld [vmem:[#allocation4 + $0x6] sm:$0xff]
      %v479 = vld [vmem:[#allocation4 + $0xe] sm:$0xff]
      %v480 = vstv %s477
      %v481 = vmul.f32 %v480, %v478
      %v482 = vmul.f32 %v480, %v479
      %v483 = vadd.f32 %v475, %v481
      %v484 = vadd.f32 %v476, %v482
      %v485 = vadd.f32 %v384, %v483
      %v486 = vadd.f32 %v385, %v484
      %v487 = vld [vmem:[#allocation2 + $0x8] sm:$0xe0]
      %v488 = vld [vmem:[#allocation2 + $0x18] sm:$0xff]
      %v489 = vld [vmem:[#allocation2 + $0x28] sm:$0xff]
      %v490 = vld [vmem:[#allocation2 + $0x38] sm:$0x7]
      %491 = vst.msk [vmem:[#allocation4 - $0x5] sm:$0xe0] %vm223, %v487
      %492 = vst.msk [vmem:[#allocation4 + $0x3] sm:$0xff] %vm98, %v488
      %493 = vst.msk [vmem:[#allocation4 + $0xb] sm:$0xff] %vm98, %v489
      %494 = vst.msk [vmem:[#allocation4 + $0x13] sm:$0x7] %vm227, %v490
      %s495 = sld [smem:[#allocation9 + $0x3]]
      %v496 = vld [vmem:[#allocation4] sm:$0xff]
      %v497 = vld [vmem:[#allocation4 + $0x8] sm:$0xff]
      %v498 = vstv %s495
      %v499 = vmul.f32 %v498, %v496
      %v500 = vmul.f32 %v498, %v497
      %s501 = sld [smem:[#allocation9 + $0xa]]
      %v502 = vld [vmem:[#allocation4 + $0x1] sm:$0xff]
      %v503 = vld [vmem:[#allocation4 + $0x9] sm:$0xff]
      %v504 = vstv %s501
      %v505 = vmul.f32 %v504, %v502
      %v506 = vmul.f32 %v504, %v503
      %v507 = vadd.f32 %v499, %v505
      %v508 = vadd.f32 %v500, %v506
      %s509 = sld [smem:[#allocation9 + $0x11]]
      %v510 = vld [vmem:[#allocation4 + $0x2] sm:$0xff]
      %v511 = vld [vmem:[#allocation4 + $0xa] sm:$0xff]
      %v512 = vstv %s509
      %v513 = vmul.f32 %v512, %v510
      %v514 = vmul.f32 %v512, %v511
      %v515 = vadd.f32 %v507, %v513
      %v516 = vadd.f32 %v508, %v514
      %s517 = sld [smem:[#allocation9 + $0x18]]
      %v518 = vld [vmem:[#allocation4 + $0x3] sm:$0xff]
      %v519 = vld [vmem:[#allocation4 + $0xb] sm:$0xff]
      %v520 = vstv %s517
      %v521 = vmul.f32 %v520, %v518
      %v522 = vmul.f32 %v520, %v519
      %v523 = vadd.f32 %v515, %v521
      %v524 = vadd.f32 %v516, %v522
      %s525 = sld [smem:[#allocation9 + $0x1f]]
      %v526 = vld [vmem:[#allocation4 + $0x4] sm:$0xff]
      %v527 = vld [vmem:[#allocation4 + $0xc] sm:$0xff]
      %v528 = vstv %s525
      %v529 = vmul.f32 %v528, %v526
      %v530 = vmul.f32 %v528, %v527
      %v531 = vadd.f32 %v523, %v529
      %v532 = vadd.f32 %v524, %v530
      %s533 = sld [smem:[#allocation9 + $0x26]]
      %v534 = vld [vmem:[#allocation4 + $0x5] sm:$0xff]
      %v535 = vld [vmem:[#allocation4 + $0xd] sm:$0xff]
      %v536 = vstv %s533
      %v537 = vmul.f32 %v536, %v534
      %v538 = vmul.f32 %v536, %v535
      %v539 = vadd.f32 %v531, %v537
      %v540 = vadd.f32 %v532, %v538
      %s541 = sld [smem:[#allocation9 + $0x2d]]
      %v542 = vld [vmem:[#allocation4 + $0x6] sm:$0xff]
      %v543 = vld [vmem:[#allocation4 + $0xe] sm:$0xff]
      %v544 = vstv %s541
      %v545 = vmul.f32 %v544, %v542
      %v546 = vmul.f32 %v544, %v543
      %v547 = vadd.f32 %v539, %v545
      %v548 = vadd.f32 %v540, %v546
      %v549 = vadd.f32 %v485, %v547
      %v550 = vadd.f32 %v486, %v548
      %v551 = vld [vmem:[#allocation2 + $0x8] sm:$0xe0]
      %v552 = vld [vmem:[#allocation2 + $0x18] sm:$0xff]
      %v553 = vld [vmem:[#allocation2 + $0x28] sm:$0xff]
      %v554 = vld [vmem:[#allocation2 + $0x38] sm:$0x7]
      %559 = vrot.lane.b32.xlu0 %v551, 127
      %v560 = vpop.permute.xlu0 %559
      %561 = vrot.lane.b32.xlu0 %v552, 127
      %v562 = vpop.permute.xlu0 %561
      %563 = vrot.lane.b32.xlu0 %v553, 127
      %v564 = vpop.permute.xlu0 %563
      %565 = vrot.lane.b32.xlu0 %v554, 127
      %v566 = vpop.permute.xlu0 %565
      %571 = vst.msk [vmem:[#allocation4 - $0x5] sm:$0xe0] %vm223, %v560
      %572 = vst.msk [vmem:[#allocation4 + $0x3] sm:$0xff] %vm98, %v562
      %573 = vst.msk [vmem:[#allocation4 + $0xb] sm:$0xff] %vm98, %v564
      %574 = vst.msk [vmem:[#allocation4 + $0x13] sm:$0x7] %vm227, %v566
      %s575 = sld [smem:[#allocation9 + $0x4]]
      %v576 = vld [vmem:[#allocation4] sm:$0xff]
      %v577 = vld [vmem:[#allocation4 + $0x8] sm:$0xff]
      %v578 = vstv %s575
      %v579 = vmul.f32 %v578, %v576
      %v580 = vmul.f32 %v578, %v577
      %s581 = sld [smem:[#allocation9 + $0xb]]
      %v582 = vld [vmem:[#allocation4 + $0x1] sm:$0xff]
      %v583 = vld [vmem:[#allocation4 + $0x9] sm:$0xff]
      %v584 = vstv %s581
      %v585 = vmul.f32 %v584, %v582
      %v586 = vmul.f32 %v584, %v583
      %v587 = vadd.f32 %v579, %v585
      %v588 = vadd.f32 %v580, %v586
      %s589 = sld [smem:[#allocation9 + $0x12]]
      %v590 = vld [vmem:[#allocation4 + $0x2] sm:$0xff]
      %v591 = vld [vmem:[#allocation4 + $0xa] sm:$0xff]
      %v592 = vstv %s589
      %v593 = vmul.f32 %v592, %v590
      %v594 = vmul.f32 %v592, %v591
      %v595 = vadd.f32 %v587, %v593
      %v596 = vadd.f32 %v588, %v594
      %s597 = sld [smem:[#allocation9 + $0x19]]
      %v598 = vld [vmem:[#allocation4 + $0x3] sm:$0xff]
      %v599 = vld [vmem:[#allocation4 + $0xb] sm:$0xff]
      %v600 = vstv %s597
      %v601 = vmul.f32 %v600, %v598
      %v602 = vmul.f32 %v600, %v599
      %v603 = vadd.f32 %v595, %v601
      %v604 = vadd.f32 %v596, %v602
      %s605 = sld [smem:[#allocation9 + $0x20]]
      %v606 = vld [vmem:[#allocation4 + $0x4] sm:$0xff]
      %v607 = vld [vmem:[#allocation4 + $0xc] sm:$0xff]
      %v608 = vstv %s605
      %v609 = vmul.f32 %v608, %v606
      %v610 = vmul.f32 %v608, %v607
      %v611 = vadd.f32 %v603, %v609
      %v612 = vadd.f32 %v604, %v610
      %s613 = sld [smem:[#allocation9 + $0x27]]
      %v614 = vld [vmem:[#allocation4 + $0x5] sm:$0xff]
      %v615 = vld [vmem:[#allocation4 + $0xd] sm:$0xff]
      %v616 = vstv %s613
      %v617 = vmul.f32 %v616, %v614
      %v618 = vmul.f32 %v616, %v615
      %v619 = vadd.f32 %v611, %v617
      %v620 = vadd.f32 %v612, %v618
      %s621 = sld [smem:[#allocation9 + $0x2e]]
      %v622 = vld [vmem:[#allocation4 + $0x6] sm:$0xff]
      %v623 = vld [vmem:[#allocation4 + $0xe] sm:$0xff]
      %v624 = vstv %s621
      %v625 = vmul.f32 %v624, %v622
      %v626 = vmul.f32 %v624, %v623
      %v627 = vadd.f32 %v619, %v625
      %v628 = vadd.f32 %v620, %v626
      %v629 = vadd.f32 %v549, %v627
      %v630 = vadd.f32 %v550, %v628
      %v631 = vld [vmem:[#allocation2 + $0x8] sm:$0xe0]
      %v632 = vld [vmem:[#allocation2 + $0x18] sm:$0xff]
      %v633 = vld [vmem:[#allocation2 + $0x28] sm:$0xff]
      %v634 = vld [vmem:[#allocation2 + $0x38] sm:$0x7]
      %639 = vrot.lane.b32.xlu0 %v631, 126
      %v640 = vpop.permute.xlu0 %639
      %641 = vrot.lane.b32.xlu0 %v632, 126
      %v642 = vpop.permute.xlu0 %641
      %643 = vrot.lane.b32.xlu0 %v633, 126
      %v644 = vpop.permute.xlu0 %643
      %645 = vrot.lane.b32.xlu0 %v634, 126
      %v646 = vpop.permute.xlu0 %645
      %651 = vst.msk [vmem:[#allocation4 - $0x5] sm:$0xe0] %vm223, %v640
      %652 = vst.msk [vmem:[#allocation4 + $0x3] sm:$0xff] %vm98, %v642
      %653 = vst.msk [vmem:[#allocation4 + $0xb] sm:$0xff] %vm98, %v644
      %654 = vst.msk [vmem:[#allocation4 + $0x13] sm:$0x7] %vm227, %v646
      %s655 = sld [smem:[#allocation9 + $0x5]]
      %v656 = vld [vmem:[#allocation4] sm:$0xff]
      %v657 = vld [vmem:[#allocation4 + $0x8] sm:$0xff]
      %v658 = vstv %s655
      %v659 = vmul.f32 %v658, %v656
      %v660 = vmul.f32 %v658, %v657
      %s661 = sld [smem:[#allocation9 + $0xc]]
      %v662 = vld [vmem:[#allocation4 + $0x1] sm:$0xff]
      %v663 = vld [vmem:[#allocation4 + $0x9] sm:$0xff]
      %v664 = vstv %s661
      %v665 = vmul.f32 %v664, %v662
      %v666 = vmul.f32 %v664, %v663
      %v667 = vadd.f32 %v659, %v665
      %v668 = vadd.f32 %v660, %v666
      %s669 = sld [smem:[#allocation9 + $0x13]]
      %v670 = vld [vmem:[#allocation4 + $0x2] sm:$0xff]
      %v671 = vld [vmem:[#allocation4 + $0xa] sm:$0xff]
      %v672 = vstv %s669
      %v673 = vmul.f32 %v672, %v670
      %v674 = vmul.f32 %v672, %v671
      %v675 = vadd.f32 %v667, %v673
      %v676 = vadd.f32 %v668, %v674
      %s677 = sld [smem:[#allocation9 + $0x1a]]
      %v678 = vld [vmem:[#allocation4 + $0x3] sm:$0xff]
      %v679 = vld [vmem:[#allocation4 + $0xb] sm:$0xff]
      %v680 = vstv %s677
      %v681 = vmul.f32 %v680, %v678
      %v682 = vmul.f32 %v680, %v679
      %v683 = vadd.f32 %v675, %v681
      %v684 = vadd.f32 %v676, %v682
      %s685 = sld [smem:[#allocation9 + $0x21]]
      %v686 = vld [vmem:[#allocation4 + $0x4] sm:$0xff]
      %v687 = vld [vmem:[#allocation4 + $0xc] sm:$0xff]
      %v688 = vstv %s685
      %v689 = vmul.f32 %v688, %v686
      %v690 = vmul.f32 %v688, %v687
      %v691 = vadd.f32 %v683, %v689
      %v692 = vadd.f32 %v684, %v690
      %s693 = sld [smem:[#allocation9 + $0x28]]
      %v694 = vld [vmem:[#allocation4 + $0x5] sm:$0xff]
      %v695 = vld [vmem:[#allocation4 + $0xd] sm:$0xff]
      %v696 = vstv %s693
      %v697 = vmul.f32 %v696, %v694
      %v698 = vmul.f32 %v696, %v695
      %v699 = vadd.f32 %v691, %v697
      %v700 = vadd.f32 %v692, %v698
      %s701 = sld [smem:[#allocation9 + $0x2f]]
      %v702 = vld [vmem:[#allocation4 + $0x6] sm:$0xff]
      %v703 = vld [vmem:[#allocation4 + $0xe] sm:$0xff]
      %v704 = vstv %s701
      %v705 = vmul.f32 %v704, %v702
      %v706 = vmul.f32 %v704, %v703
      %v707 = vadd.f32 %v699, %v705
      %v708 = vadd.f32 %v700, %v706
      %v709 = vadd.f32 %v629, %v707
      %v710 = vadd.f32 %v630, %v708
      %v711 = vld [vmem:[#allocation2 + $0x8] sm:$0xe0]
      %v712 = vld [vmem:[#allocation2 + $0x18] sm:$0xff]
      %v713 = vld [vmem:[#allocation2 + $0x28] sm:$0xff]
      %v714 = vld [vmem:[#allocation2 + $0x38] sm:$0x7]
      %719 = vrot.lane.b32.xlu0 %v711, 125
      %v720 = vpop.permute.xlu0 %719
      %721 = vrot.lane.b32.xlu0 %v712, 125
      %v722 = vpop.permute.xlu0 %721
      %723 = vrot.lane.b32.xlu0 %v713, 125
      %v724 = vpop.permute.xlu0 %723
      %725 = vrot.lane.b32.xlu0 %v714, 125
      %v726 = vpop.permute.xlu0 %725
      %731 = vst.msk [vmem:[#allocation4 - $0x5] sm:$0xe0] %vm223, %v720
      %732 = vst.msk [vmem:[#allocation4 + $0x3] sm:$0xff] %vm98, %v722
      %733 = vst.msk [vmem:[#allocation4 + $0xb] sm:$0xff] %vm98, %v724
      %734 = vst.msk [vmem:[#allocation4 + $0x13] sm:$0x7] %vm227, %v726
      %s735 = sld [smem:[#allocation9 + $0x6]]
      %v736 = vld [vmem:[#allocation4] sm:$0xff]
      %v737 = vld [vmem:[#allocation4 + $0x8] sm:$0xff]
      %v738 = vstv %s735
      %v739 = vmul.f32 %v738, %v736
      %v740 = vmul.f32 %v738, %v737
      %s741 = sld [smem:[#allocation9 + $0xd]]
      %v742 = vld [vmem:[#allocation4 + $0x1] sm:$0xff]
      %v743 = vld [vmem:[#allocation4 + $0x9] sm:$0xff]
      %v744 = vstv %s741
      %v745 = vmul.f32 %v744, %v742
      %v746 = vmul.f32 %v744, %v743
      %v747 = vadd.f32 %v739, %v745
      %v748 = vadd.f32 %v740, %v746
      %s749 = sld [smem:[#allocation9 + $0x14]]
      %v750 = vld [vmem:[#allocation4 + $0x2] sm:$0xff]
      %v751 = vld [vmem:[#allocation4 + $0xa] sm:$0xff]
      %v752 = vstv %s749
      %v753 = vmul.f32 %v752, %v750
      %v754 = vmul.f32 %v752, %v751
      %v755 = vadd.f32 %v747, %v753
      %v756 = vadd.f32 %v748, %v754
      %s757 = sld [smem:[#allocation9 + $0x1b]]
      %v758 = vld [vmem:[#allocation4 + $0x3] sm:$0xff]
      %v759 = vld [vmem:[#allocation4 + $0xb] sm:$0xff]
      %v760 = vstv %s757
      %v761 = vmul.f32 %v760, %v758
      %v762 = vmul.f32 %v760, %v759
      %v763 = vadd.f32 %v755, %v761
      %v764 = vadd.f32 %v756, %v762
      %s765 = sld [smem:[#allocation9 + $0x22]]
      %v766 = vld [vmem:[#allocation4 + $0x4] sm:$0xff]
      %v767 = vld [vmem:[#allocation4 + $0xc] sm:$0xff]
      %v768 = vstv %s765
      %v769 = vmul.f32 %v768, %v766
      %v770 = vmul.f32 %v768, %v767
      %v771 = vadd.f32 %v763, %v769
      %v772 = vadd.f32 %v764, %v770
      %s773 = sld [smem:[#allocation9 + $0x29]]
      %v774 = vld [vmem:[#allocation4 + $0x5] sm:$0xff]
      %v775 = vld [vmem:[#allocation4 + $0xd] sm:$0xff]
      %v776 = vstv %s773
      %v777 = vmul.f32 %v776, %v774
      %v778 = vmul.f32 %v776, %v775
      %v779 = vadd.f32 %v771, %v777
      %v780 = vadd.f32 %v772, %v778
      %s781 = sld [smem:[#allocation9 + $0x30]]
      %v782 = vld [vmem:[#allocation4 + $0x6] sm:$0xff]
      %v783 = vld [vmem:[#allocation4 + $0xe] sm:$0xff]
      %v784 = vstv %s781
      %v785 = vmul.f32 %v784, %v782
      %v786 = vmul.f32 %v784, %v783
      %v787 = vadd.f32 %v779, %v785
      %v788 = vadd.f32 %v780, %v786
      %v789 = vadd.f32 %v709, %v787
      %v790 = vadd.f32 %v710, %v788
      %v791 = vld [vmem:[#allocation3] sm:$0xe0]
      %v792 = vld [vmem:[#allocation3 + $0x8] sm:$0xe0]
      %v793 = vld [vmem:[#allocation3 + $0x10] sm:$0xff]
      %v794 = vld [vmem:[#allocation3 + $0x18] sm:$0xff]
      %v795 = vld [vmem:[#allocation3 + $0x20] sm:$0xff]
      %v796 = vld [vmem:[#allocation3 + $0x28] sm:$0xff]
      %v797 = vld [vmem:[#allocation3 + $0x30] sm:$0x7]
      %v798 = vld [vmem:[#allocation3 + $0x38] sm:$0x7]
      %807 = vrot.lane.b32.xlu0 %v791, 3
      %v808 = vpop.permute.xlu0 %807
      %809 = vrot.lane.b32.xlu0 %v792, 3
      %v810 = vpop.permute.xlu0 %809
      %811 = vrot.lane.b32.xlu0 %v793, 3
      %v812 = vpop.permute.xlu0 %811
      %813 = vrot.lane.b32.xlu0 %v794, 3
      %v814 = vpop.permute.xlu0 %813
      %815 = vrot.lane.b32.xlu0 %v795, 3
      %v816 = vpop.permute.xlu0 %815
      %817 = vrot.lane.b32.xlu0 %v796, 3
      %v818 = vpop.permute.xlu0 %817
      %819 = vrot.lane.b32.xlu0 %v797, 3
      %v820 = vpop.permute.xlu0 %819
      %821 = vrot.lane.b32.xlu0 %v798, 3
      %v822 = vpop.permute.xlu0 %821
      %v823 = vsel %vm214, %v808, %v810
      %v824 = vsel %vm214, %v812, %v814
      %v825 = vsel %vm214, %v816, %v818
      %v826 = vsel %vm214, %v820, %v822
      %831 = vst.msk [vmem:[#allocation4 - $0x5] sm:$0xe0] %vm223, %v823
      %832 = vst.msk [vmem:[#allocation4 + $0x3] sm:$0xff] %vm98, %v824
      %833 = vst.msk [vmem:[#allocation4 + $0xb] sm:$0xff] %vm98, %v825
      %834 = vst.msk [vmem:[#allocation4 + $0x13] sm:$0x7] %vm227, %v826
      %s835 = sld [smem:[#allocation9 + $0x31]]
      %v836 = vld [vmem:[#allocation4] sm:$0xff]
      %v837 = vld [vmem:[#allocation4 + $0x8] sm:$0xff]
      %v838 = vstv %s835
      %v839 = vmul.f32 %v838, %v836
      %v840 = vmul.f32 %v838, %v837
      %s841 = sld [smem:[#allocation9 + $0x38]]
      %v842 = vld [vmem:[#allocation4 + $0x1] sm:$0xff]
      %v843 = vld [vmem:[#allocation4 + $0x9] sm:$0xff]
      %v844 = vstv %s841
      %v845 = vmul.f32 %v844, %v842
      %v846 = vmul.f32 %v844, %v843
      %v847 = vadd.f32 %v839, %v845
      %v848 = vadd.f32 %v840, %v846
      %s849 = sld [smem:[#allocation9 + $0x3f]]
      %v850 = vld [vmem:[#allocation4 + $0x2] sm:$0xff]
      %v851 = vld [vmem:[#allocation4 + $0xa] sm:$0xff]
      %v852 = vstv %s849
      %v853 = vmul.f32 %v852, %v850
      %v854 = vmul.f32 %v852, %v851
      %v855 = vadd.f32 %v847, %v853
      %v856 = vadd.f32 %v848, %v854
      %s857 = sld [smem:[#allocation9 + $0x46]]
      %v858 = vld [vmem:[#allocation4 + $0x3] sm:$0xff]
      %v859 = vld [vmem:[#allocation4 + $0xb] sm:$0xff]
      %v860 = vstv %s857
      %v861 = vmul.f32 %v860, %v858
      %v862 = vmul.f32 %v860, %v859
      %v863 = vadd.f32 %v855, %v861
      %v864 = vadd.f32 %v856, %v862
      %s865 = sld [smem:[#allocation9 + $0x4d]]
      %v866 = vld [vmem:[#allocation4 + $0x4] sm:$0xff]
      %v867 = vld [vmem:[#allocation4 + $0xc] sm:$0xff]
      %v868 = vstv %s865
      %v869 = vmul.f32 %v868, %v866
      %v870 = vmul.f32 %v868, %v867
      %v871 = vadd.f32 %v863, %v869
      %v872 = vadd.f32 %v864, %v870
      %s873 = sld [smem:[#allocation9 + $0x54]]
      %v874 = vld [vmem:[#allocation4 + $0x5] sm:$0xff]
      %v875 = vld [vmem:[#allocation4 + $0xd] sm:$0xff]
      %v876 = vstv %s873
      %v877 = vmul.f32 %v876, %v874
      %v878 = vmul.f32 %v876, %v875
      %v879 = vadd.f32 %v871, %v877
      %v880 = vadd.f32 %v872, %v878
      %s881 = sld [smem:[#allocation9 + $0x5b]]
      %v882 = vld [vmem:[#allocation4 + $0x6] sm:$0xff]
      %v883 = vld [vmem:[#allocation4 + $0xe] sm:$0xff]
      %v884 = vstv %s881
      %v885 = vmul.f32 %v884, %v882
      %v886 = vmul.f32 %v884, %v883
      %v887 = vadd.f32 %v879, %v885
      %v888 = vadd.f32 %v880, %v886
      %v889 = vadd.f32 %v789, %v887
      %v890 = vadd.f32 %v790, %v888
      %v891 = vld [vmem:[#allocation3] sm:$0xe0]
      %v892 = vld [vmem:[#allocation3 + $0x8] sm:$0xe0]
      %v893 = vld [vmem:[#allocation3 + $0x10] sm:$0xff]
      %v894 = vld [vmem:[#allocation3 + $0x18] sm:$0xff]
      %v895 = vld [vmem:[#allocation3 + $0x20] sm:$0xff]
      %v896 = vld [vmem:[#allocation3 + $0x28] sm:$0xff]
      %v897 = vld [vmem:[#allocation3 + $0x30] sm:$0x7]
      %v898 = vld [vmem:[#allocation3 + $0x38] sm:$0x7]
      %907 = vrot.lane.b32.xlu0 %v891, 2
      %v908 = vpop.permute.xlu0 %907
      %909 = vrot.lane.b32.xlu0 %v892, 2
      %v910 = vpop.permute.xlu0 %909
      %911 = vrot.lane.b32.xlu0 %v893, 2
      %v912 = vpop.permute.xlu0 %911
      %913 = vrot.lane.b32.xlu0 %v894, 2
      %v914 = vpop.permute.xlu0 %913
      %915 = vrot.lane.b32.xlu0 %v895, 2
      %v916 = vpop.permute.xlu0 %915
      %917 = vrot.lane.b32.xlu0 %v896, 2
      %v918 = vpop.permute.xlu0 %917
      %919 = vrot.lane.b32.xlu0 %v897, 2
      %v920 = vpop.permute.xlu0 %919
      %921 = vrot.lane.b32.xlu0 %v898, 2
      %v922 = vpop.permute.xlu0 %921
      %v923 = vsel %vm317, %v908, %v910
      %v924 = vsel %vm317, %v912, %v914
      %v925 = vsel %vm317, %v916, %v918
      %v926 = vsel %vm317, %v920, %v922
      %931 = vst.msk [vmem:[#allocation4 - $0x5] sm:$0xe0] %vm223, %v923
      %932 = vst.msk [vmem:[#allocation4 + $0x3] sm:$0xff] %vm98, %v924
      %933 = vst.msk [vmem:[#allocation4 + $0xb] sm:$0xff] %vm98, %v925
      %934 = vst.msk [vmem:[#allocation4 + $0x13] sm:$0x7] %vm227, %v926
      %s935 = sld [smem:[#allocation9 + $0x32]]
      %v936 = vld [vmem:[#allocation4] sm:$0xff]
      %v937 = vld [vmem:[#allocation4 + $0x8] sm:$0xff]
      %v938 = vstv %s935
      %v939 = vmul.f32 %v938, %v936
      %v940 = vmul.f32 %v938, %v937
      %s941 = sld [smem:[#allocation9 + $0x39]]
      %v942 = vld [vmem:[#allocation4 + $0x1] sm:$0xff]
      %v943 = vld [vmem:[#allocation4 + $0x9] sm:$0xff]
      %v944 = vstv %s941
      %v945 = vmul.f32 %v944, %v942
      %v946 = vmul.f32 %v944, %v943
      %v947 = vadd.f32 %v939, %v945
      %v948 = vadd.f32 %v940, %v946
      %s949 = sld [smem:[#allocation9 + $0x40]]
      %v950 = vld [vmem:[#allocation4 + $0x2] sm:$0xff]
      %v951 = vld [vmem:[#allocation4 + $0xa] sm:$0xff]
      %v952 = vstv %s949
      %v953 = vmul.f32 %v952, %v950
      %v954 = vmul.f32 %v952, %v951
      %v955 = vadd.f32 %v947, %v953
      %v956 = vadd.f32 %v948, %v954
      %s957 = sld [smem:[#allocation9 + $0x47]]
      %v958 = vld [vmem:[#allocation4 + $0x3] sm:$0xff]
      %v959 = vld [vmem:[#allocation4 + $0xb] sm:$0xff]
      %v960 = vstv %s957
      %v961 = vmul.f32 %v960, %v958
      %v962 = vmul.f32 %v960, %v959
      %v963 = vadd.f32 %v955, %v961
      %v964 = vadd.f32 %v956, %v962
      %s965 = sld [smem:[#allocation9 + $0x4e]]
      %v966 = vld [vmem:[#allocation4 + $0x4] sm:$0xff]
      %v967 = vld [vmem:[#allocation4 + $0xc] sm:$0xff]
      %v968 = vstv %s965
      %v969 = vmul.f32 %v968, %v966
      %v970 = vmul.f32 %v968, %v967
      %v971 = vadd.f32 %v963, %v969
      %v972 = vadd.f32 %v964, %v970
      %s973 = sld [smem:[#allocation9 + $0x55]]
      %v974 = vld [vmem:[#allocation4 + $0x5] sm:$0xff]
      %v975 = vld [vmem:[#allocation4 + $0xd] sm:$0xff]
      %v976 = vstv %s973
      %v977 = vmul.f32 %v976, %v974
      %v978 = vmul.f32 %v976, %v975
      %v979 = vadd.f32 %v971, %v977
      %v980 = vadd.f32 %v972, %v978
      %s981 = sld [smem:[#allocation9 + $0x5c]]
      %v982 = vld [vmem:[#allocation4 + $0x6] sm:$0xff]
      %v983 = vld [vmem:[#allocation4 + $0xe] sm:$0xff]
      %v984 = vstv %s981
      %v985 = vmul.f32 %v984, %v982
      %v986 = vmul.f32 %v984, %v983
      %v987 = vadd.f32 %v979, %v985
      %v988 = vadd.f32 %v980, %v986
      %v989 = vadd.f32 %v889, %v987
      %v990 = vadd.f32 %v890, %v988
      %v991 = vld [vmem:[#allocation3] sm:$0xe0]
      %v992 = vld [vmem:[#allocation3 + $0x8] sm:$0xe0]
      %v993 = vld [vmem:[#allocation3 + $0x10] sm:$0xff]
      %v994 = vld [vmem:[#allocation3 + $0x18] sm:$0xff]
      %v995 = vld [vmem:[#allocation3 + $0x20] sm:$0xff]
      %v996 = vld [vmem:[#allocation3 + $0x28] sm:$0xff]
      %v997 = vld [vmem:[#allocation3 + $0x30] sm:$0x7]
      %v998 = vld [vmem:[#allocation3 + $0x38] sm:$0x7]
      %1007 = vrot.lane.b32.xlu0 %v991, 1
      %v1008 = vpop.permute.xlu0 %1007
      %1009 = vrot.lane.b32.xlu0 %v992, 1
      %v1010 = vpop.permute.xlu0 %1009
      %1011 = vrot.lane.b32.xlu0 %v993, 1
      %v1012 = vpop.permute.xlu0 %1011
      %1013 = vrot.lane.b32.xlu0 %v994, 1
      %v1014 = vpop.permute.xlu0 %1013
      %1015 = vrot.lane.b32.xlu0 %v995, 1
      %v1016 = vpop.permute.xlu0 %1015
      %1017 = vrot.lane.b32.xlu0 %v996, 1
      %v1018 = vpop.permute.xlu0 %1017
      %1019 = vrot.lane.b32.xlu0 %v997, 1
      %v1020 = vpop.permute.xlu0 %1019
      %1021 = vrot.lane.b32.xlu0 %v998, 1
      %v1022 = vpop.permute.xlu0 %1021
      %v1023 = vsel %vm418, %v1008, %v1010
      %v1024 = vsel %vm418, %v1012, %v1014
      %v1025 = vsel %vm418, %v1016, %v1018
      %v1026 = vsel %vm418, %v1020, %v1022
      %1031 = vst.msk [vmem:[#allocation4 - $0x5] sm:$0xe0] %vm223, %v1023
      %1032 = vst.msk [vmem:[#allocation4 + $0x3] sm:$0xff] %vm98, %v1024
      %1033 = vst.msk [vmem:[#allocation4 + $0xb] sm:$0xff] %vm98, %v1025
      %1034 = vst.msk [vmem:[#allocation4 + $0x13] sm:$0x7] %vm227, %v1026
      %s1035 = sld [smem:[#allocation9 + $0x33]]
      %v1036 = vld [vmem:[#allocation4] sm:$0xff]
      %v1037 = vld [vmem:[#allocation4 + $0x8] sm:$0xff]
      %v1038 = vstv %s1035
      %v1039 = vmul.f32 %v1038, %v1036
      %v1040 = vmul.f32 %v1038, %v1037
      %s1041 = sld [smem:[#allocation9 + $0x3a]]
      %v1042 = vld [vmem:[#allocation4 + $0x1] sm:$0xff]
      %v1043 = vld [vmem:[#allocation4 + $0x9] sm:$0xff]
      %v1044 = vstv %s1041
      %v1045 = vmul.f32 %v1044, %v1042
      %v1046 = vmul.f32 %v1044, %v1043
      %v1047 = vadd.f32 %v1039, %v1045
      %v1048 = vadd.f32 %v1040, %v1046
      %s1049 = sld [smem:[#allocation9 + $0x41]]
      %v1050 = vld [vmem:[#allocation4 + $0x2] sm:$0xff]
      %v1051 = vld [vmem:[#allocation4 + $0xa] sm:$0xff]
      %v1052 = vstv %s1049
      %v1053 = vmul.f32 %v1052, %v1050
      %v1054 = vmul.f32 %v1052, %v1051
      %v1055 = vadd.f32 %v1047, %v1053
      %v1056 = vadd.f32 %v1048, %v1054
      %s1057 = sld [smem:[#allocation9 + $0x48]]
      %v1058 = vld [vmem:[#allocation4 + $0x3] sm:$0xff]
      %v1059 = vld [vmem:[#allocation4 + $0xb] sm:$0xff]
      %v1060 = vstv %s1057
      %v1061 = vmul.f32 %v1060, %v1058
      %v1062 = vmul.f32 %v1060, %v1059
      %v1063 = vadd.f32 %v1055, %v1061
      %v1064 = vadd.f32 %v1056, %v1062
      %s1065 = sld [smem:[#allocation9 + $0x4f]]
      %v1066 = vld [vmem:[#allocation4 + $0x4] sm:$0xff]
      %v1067 = vld [vmem:[#allocation4 + $0xc] sm:$0xff]
      %v1068 = vstv %s1065
      %v1069 = vmul.f32 %v1068, %v1066
      %v1070 = vmul.f32 %v1068, %v1067
      %v1071 = vadd.f32 %v1063, %v1069
      %v1072 = vadd.f32 %v1064, %v1070
      %s1073 = sld [smem:[#allocation9 + $0x56]]
      %v1074 = vld [vmem:[#allocation4 + $0x5] sm:$0xff]
      %v1075 = vld [vmem:[#allocation4 + $0xd] sm:$0xff]
      %v1076 = vstv %s1073
      %v1077 = vmul.f32 %v1076, %v1074
      %v1078 = vmul.f32 %v1076, %v1075
      %v1079 = vadd.f32 %v1071, %v1077
      %v1080 = vadd.f32 %v1072, %v1078
      %s1081 = sld [smem:[#allocation9 + $0x5d]]
      %v1082 = vld [vmem:[#allocation4 + $0x6] sm:$0xff]
      %v1083 = vld [vmem:[#allocation4 + $0xe] sm:$0xff]
      %v1084 = vstv %s1081
      %v1085 = vmul.f32 %v1084, %v1082
      %v1086 = vmul.f32 %v1084, %v1083
      %v1087 = vadd.f32 %v1079, %v1085
      %v1088 = vadd.f32 %v1080, %v1086
      %v1089 = vadd.f32 %v989, %v1087
      %v1090 = vadd.f32 %v990, %v1088
      %v1091 = vld [vmem:[#allocation3 + $0x8] sm:$0xe0]
      %v1092 = vld [vmem:[#allocation3 + $0x18] sm:$0xff]
      %v1093 = vld [vmem:[#allocation3 + $0x28] sm:$0xff]
      %v1094 = vld [vmem:[#allocation3 + $0x38] sm:$0x7]
      %1095 = vst.msk [vmem:[#allocation4 - $0x5] sm:$0xe0] %vm223, %v1091
      %1096 = vst.msk [vmem:[#allocation4 + $0x3] sm:$0xff] %vm98, %v1092
      %1097 = vst.msk [vmem:[#allocation4 + $0xb] sm:$0xff] %vm98, %v1093
      %1098 = vst.msk [vmem:[#allocation4 + $0x13] sm:$0x7] %vm227, %v1094
      %s1099 = sld [smem:[#allocation9 + $0x34]]
      %v1100 = vld [vmem:[#allocation4] sm:$0xff]
      %v1101 = vld [vmem:[#allocation4 + $0x8] sm:$0xff]
      %v1102 = vstv %s1099
      %v1103 = vmul.f32 %v1102, %v1100
      %v1104 = vmul.f32 %v1102, %v1101
      %s1105 = sld [smem:[#allocation9 + $0x3b]]
      %v1106 = vld [vmem:[#allocation4 + $0x1] sm:$0xff]
      %v1107 = vld [vmem:[#allocation4 + $0x9] sm:$0xff]
      %v1108 = vstv %s1105
      %v1109 = vmul.f32 %v1108, %v1106
      %v1110 = vmul.f32 %v1108, %v1107
      %v1111 = vadd.f32 %v1103, %v1109
      %v1112 = vadd.f32 %v1104, %v1110
      %s1113 = sld [smem:[#allocation9 + $0x42]]
      %v1114 = vld [vmem:[#allocation4 + $0x2] sm:$0xff]
      %v1115 = vld [vmem:[#allocation4 + $0xa] sm:$0xff]
      %v1116 = vstv %s1113
      %v1117 = vmul.f32 %v1116, %v1114
      %v1118 = vmul.f32 %v1116, %v1115
      %v1119 = vadd.f32 %v1111, %v1117
      %v1120 = vadd.f32 %v1112, %v1118
      %s1121 = sld [smem:[#allocation9 + $0x49]]
      %v1122 = vld [vmem:[#allocation4 + $0x3] sm:$0xff]
      %v1123 = vld [vmem:[#allocation4 + $0xb] sm:$0xff]
      %v1124 = vstv %s1121
      %v1125 = vmul.f32 %v1124, %v1122
      %v1126 = vmul.f32 %v1124, %v1123
      %v1127 = vadd.f32 %v1119, %v1125
      %v1128 = vadd.f32 %v1120, %v1126
      %s1129 = sld [smem:[#allocation9 + $0x50]]
      %v1130 = vld [vmem:[#allocation4 + $0x4] sm:$0xff]
      %v1131 = vld [vmem:[#allocation4 + $0xc] sm:$0xff]
      %v1132 = vstv %s1129
      %v1133 = vmul.f32 %v1132, %v1130
      %v1134 = vmul.f32 %v1132, %v1131
      %v1135 = vadd.f32 %v1127, %v1133
      %v1136 = vadd.f32 %v1128, %v1134
      %s1137 = sld [smem:[#allocation9 + $0x57]]
      %v1138 = vld [vmem:[#allocation4 + $0x5] sm:$0xff]
      %v1139 = vld [vmem:[#allocation4 + $0xd] sm:$0xff]
      %v1140 = vstv %s1137
      %v1141 = vmul.f32 %v1140, %v1138
      %v1142 = vmul.f32 %v1140, %v1139
      %v1143 = vadd.f32 %v1135, %v1141
      %v1144 = vadd.f32 %v1136, %v1142
      %s1145 = sld [smem:[#allocation9 + $0x5e]]
      %v1146 = vld [vmem:[#allocation4 + $0x6] sm:$0xff]
      %v1147 = vld [vmem:[#allocation4 + $0xe] sm:$0xff]
      %v1148 = vstv %s1145
      %v1149 = vmul.f32 %v1148, %v1146
      %v1150 = vmul.f32 %v1148, %v1147
      %v1151 = vadd.f32 %v1143, %v1149
      %v1152 = vadd.f32 %v1144, %v1150
      %v1153 = vadd.f32 %v1089, %v1151
      %v1154 = vadd.f32 %v1090, %v1152
      %v1155 = vld [vmem:[#allocation3 + $0x8] sm:$0xe0]
      %v1156 = vld [vmem:[#allocation3 + $0x18] sm:$0xff]
      %v1157 = vld [vmem:[#allocation3 + $0x28] sm:$0xff]
      %v1158 = vld [vmem:[#allocation3 + $0x38] sm:$0x7]
      %1163 = vrot.lane.b32.xlu0 %v1155, 127
      %v1164 = vpop.permute.xlu0 %1163
      %1165 = vrot.lane.b32.xlu0 %v1156, 127
      %v1166 = vpop.permute.xlu0 %1165
      %1167 = vrot.lane.b32.xlu0 %v1157, 127
      %v1168 = vpop.permute.xlu0 %1167
      %1169 = vrot.lane.b32.xlu0 %v1158, 127
      %v1170 = vpop.permute.xlu0 %1169
      %1175 = vst.msk [vmem:[#allocation4 - $0x5] sm:$0xe0] %vm223, %v1164
      %1176 = vst.msk [vmem:[#allocation4 + $0x3] sm:$0xff] %vm98, %v1166
      %1177 = vst.msk [vmem:[#allocation4 + $0xb] sm:$0xff] %vm98, %v1168
      %1178 = vst.msk [vmem:[#allocation4 + $0x13] sm:$0x7] %vm227, %v1170
      %s1179 = sld [smem:[#allocation9 + $0x35]]
      %v1180 = vld [vmem:[#allocation4] sm:$0xff]
      %v1181 = vld [vmem:[#allocation4 + $0x8] sm:$0xff]
      %v1182 = vstv %s1179
      %v1183 = vmul.f32 %v1182, %v1180
      %v1184 = vmul.f32 %v1182, %v1181
      %s1185 = sld [smem:[#allocation9 + $0x3c]]
      %v1186 = vld [vmem:[#allocation4 + $0x1] sm:$0xff]
      %v1187 = vld [vmem:[#allocation4 + $0x9] sm:$0xff]
      %v1188 = vstv %s1185
      %v1189 = vmul.f32 %v1188, %v1186
      %v1190 = vmul.f32 %v1188, %v1187
      %v1191 = vadd.f32 %v1183, %v1189
      %v1192 = vadd.f32 %v1184, %v1190
      %s1193 = sld [smem:[#allocation9 + $0x43]]
      %v1194 = vld [vmem:[#allocation4 + $0x2] sm:$0xff]
      %v1195 = vld [vmem:[#allocation4 + $0xa] sm:$0xff]
      %v1196 = vstv %s1193
      %v1197 = vmul.f32 %v1196, %v1194
      %v1198 = vmul.f32 %v1196, %v1195
      %v1199 = vadd.f32 %v1191, %v1197
      %v1200 = vadd.f32 %v1192, %v1198
      %s1201 = sld [smem:[#allocation9 + $0x4a]]
      %v1202 = vld [vmem:[#allocation4 + $0x3] sm:$0xff]
      %v1203 = vld [vmem:[#allocation4 + $0xb] sm:$0xff]
      %v1204 = vstv %s1201
      %v1205 = vmul.f32 %v1204, %v1202
      %v1206 = vmul.f32 %v1204, %v1203
      %v1207 = vadd.f32 %v1199, %v1205
      %v1208 = vadd.f32 %v1200, %v1206
      %s1209 = sld [smem:[#allocation9 + $0x51]]
      %v1210 = vld [vmem:[#allocation4 + $0x4] sm:$0xff]
      %v1211 = vld [vmem:[#allocation4 + $0xc] sm:$0xff]
      %v1212 = vstv %s1209
      %v1213 = vmul.f32 %v1212, %v1210
      %v1214 = vmul.f32 %v1212, %v1211
      %v1215 = vadd.f32 %v1207, %v1213
      %v1216 = vadd.f32 %v1208, %v1214
      %s1217 = sld [smem:[#allocation9 + $0x58]]
      %v1218 = vld [vmem:[#allocation4 + $0x5] sm:$0xff]
      %v1219 = vld [vmem:[#allocation4 + $0xd] sm:$0xff]
      %v1220 = vstv %s1217
      %v1221 = vmul.f32 %v1220, %v1218
      %v1222 = vmul.f32 %v1220, %v1219
      %v1223 = vadd.f32 %v1215, %v1221
      %v1224 = vadd.f32 %v1216, %v1222
      %s1225 = sld [smem:[#allocation9 + $0x5f]]
      %v1226 = vld [vmem:[#allocation4 + $0x6] sm:$0xff]
      %v1227 = vld [vmem:[#allocation4 + $0xe] sm:$0xff]
      %v1228 = vstv %s1225
      %v1229 = vmul.f32 %v1228, %v1226
      %v1230 = vmul.f32 %v1228, %v1227
      %v1231 = vadd.f32 %v1223, %v1229
      %v1232 = vadd.f32 %v1224, %v1230
      %v1233 = vadd.f32 %v1153, %v1231
      %v1234 = vadd.f32 %v1154, %v1232
      %v1235 = vld [vmem:[#allocation3 + $0x8] sm:$0xe0]
      %v1236 = vld [vmem:[#allocation3 + $0x18] sm:$0xff]
      %v1237 = vld [vmem:[#allocation3 + $0x28] sm:$0xff]
      %v1238 = vld [vmem:[#allocation3 + $0x38] sm:$0x7]
      %1243 = vrot.lane.b32.xlu0 %v1235, 126
      %v1244 = vpop.permute.xlu0 %1243
      %1245 = vrot.lane.b32.xlu0 %v1236, 126
      %v1246 = vpop.permute.xlu0 %1245
      %1247 = vrot.lane.b32.xlu0 %v1237, 126
      %v1248 = vpop.permute.xlu0 %1247
      %1249 = vrot.lane.b32.xlu0 %v1238, 126
      %v1250 = vpop.permute.xlu0 %1249
      %1255 = vst.msk [vmem:[#allocation4 - $0x5] sm:$0xe0] %vm223, %v1244
      %1256 = vst.msk [vmem:[#allocation4 + $0x3] sm:$0xff] %vm98, %v1246
      %1257 = vst.msk [vmem:[#allocation4 + $0xb] sm:$0xff] %vm98, %v1248
      %1258 = vst.msk [vmem:[#allocation4 + $0x13] sm:$0x7] %vm227, %v1250
      %s1259 = sld [smem:[#allocation9 + $0x36]]
      %v1260 = vld [vmem:[#allocation4] sm:$0xff]
      %v1261 = vld [vmem:[#allocation4 + $0x8] sm:$0xff]
      %v1262 = vstv %s1259
      %v1263 = vmul.f32 %v1262, %v1260
      %v1264 = vmul.f32 %v1262, %v1261
      %s1265 = sld [smem:[#allocation9 + $0x3d]]
      %v1266 = vld [vmem:[#allocation4 + $0x1] sm:$0xff]
      %v1267 = vld [vmem:[#allocation4 + $0x9] sm:$0xff]
      %v1268 = vstv %s1265
      %v1269 = vmul.f32 %v1268, %v1266
      %v1270 = vmul.f32 %v1268, %v1267
      %v1271 = vadd.f32 %v1263, %v1269
      %v1272 = vadd.f32 %v1264, %v1270
      %s1273 = sld [smem:[#allocation9 + $0x44]]
      %v1274 = vld [vmem:[#allocation4 + $0x2] sm:$0xff]
      %v1275 = vld [vmem:[#allocation4 + $0xa] sm:$0xff]
      %v1276 = vstv %s1273
      %v1277 = vmul.f32 %v1276, %v1274
      %v1278 = vmul.f32 %v1276, %v1275
      %v1279 = vadd.f32 %v1271, %v1277
      %v1280 = vadd.f32 %v1272, %v1278
      %s1281 = sld [smem:[#allocation9 + $0x4b]]
      %v1282 = vld [vmem:[#allocation4 + $0x3] sm:$0xff]
      %v1283 = vld [vmem:[#allocation4 + $0xb] sm:$0xff]
      %v1284 = vstv %s1281
      %v1285 = vmul.f32 %v1284, %v1282
      %v1286 = vmul.f32 %v1284, %v1283
      %v1287 = vadd.f32 %v1279, %v1285
      %v1288 = vadd.f32 %v1280, %v1286
      %s1289 = sld [smem:[#allocation9 + $0x52]]
      %v1290 = vld [vmem:[#allocation4 + $0x4] sm:$0xff]
      %v1291 = vld [vmem:[#allocation4 + $0xc] sm:$0xff]
      %v1292 = vstv %s1289
      %v1293 = vmul.f32 %v1292, %v1290
      %v1294 = vmul.f32 %v1292, %v1291
      %v1295 = vadd.f32 %v1287, %v1293
      %v1296 = vadd.f32 %v1288, %v1294
      %s1297 = sld [smem:[#allocation9 + $0x59]]
      %v1298 = vld [vmem:[#allocation4 + $0x5] sm:$0xff]
      %v1299 = vld [vmem:[#allocation4 + $0xd] sm:$0xff]
      %v1300 = vstv %s1297
      %v1301 = vmul.f32 %v1300, %v1298
      %v1302 = vmul.f32 %v1300, %v1299
      %v1303 = vadd.f32 %v1295, %v1301
      %v1304 = vadd.f32 %v1296, %v1302
      %s1305 = sld [smem:[#allocation9 + $0x60]]
      %v1306 = vld [vmem:[#allocation4 + $0x6] sm:$0xff]
      %v1307 = vld [vmem:[#allocation4 + $0xe] sm:$0xff]
      %v1308 = vstv %s1305
      %v1309 = vmul.f32 %v1308, %v1306
      %v1310 = vmul.f32 %v1308, %v1307
      %v1311 = vadd.f32 %v1303, %v1309
      %v1312 = vadd.f32 %v1304, %v1310
      %v1313 = vadd.f32 %v1233, %v1311
      %v1314 = vadd.f32 %v1234, %v1312
      %v1315 = vld [vmem:[#allocation3 + $0x8] sm:$0xe0]
      %v1316 = vld [vmem:[#allocation3 + $0x18] sm:$0xff]
      %v1317 = vld [vmem:[#allocation3 + $0x28] sm:$0xff]
      %v1318 = vld [vmem:[#allocation3 + $0x38] sm:$0x7]
      %1323 = vrot.lane.b32.xlu0 %v1315, 125
      %v1324 = vpop.permute.xlu0 %1323
      %1325 = vrot.lane.b32.xlu0 %v1316, 125
      %v1326 = vpop.permute.xlu0 %1325
      %1327 = vrot.lane.b32.xlu0 %v1317, 125
      %v1328 = vpop.permute.xlu0 %1327
      %1329 = vrot.lane.b32.xlu0 %v1318, 125
      %v1330 = vpop.permute.xlu0 %1329
      %1335 = vst.msk [vmem:[#allocation4 - $0x5] sm:$0xe0] %vm223, %v1324
      %1336 = vst.msk [vmem:[#allocation4 + $0x3] sm:$0xff] %vm98, %v1326
      %1337 = vst.msk [vmem:[#allocation4 + $0xb] sm:$0xff] %vm98, %v1328
      %1338 = vst.msk [vmem:[#allocation4 + $0x13] sm:$0x7] %vm227, %v1330
      %s1339 = sld [smem:[#allocation9 + $0x37]]
      %v1340 = vld [vmem:[#allocation4] sm:$0xff]
      %v1341 = vld [vmem:[#allocation4 + $0x8] sm:$0xff]
      %v1342 = vstv %s1339
      %v1343 = vmul.f32 %v1342, %v1340
      %v1344 = vmul.f32 %v1342, %v1341
      %s1345 = sld [smem:[#allocation9 + $0x3e]]
      %v1346 = vld [vmem:[#allocation4 + $0x1] sm:$0xff]
      %v1347 = vld [vmem:[#allocation4 + $0x9] sm:$0xff]
      %v1348 = vstv %s1345
      %v1349 = vmul.f32 %v1348, %v1346
      %v1350 = vmul.f32 %v1348, %v1347
      %v1351 = vadd.f32 %v1343, %v1349
      %v1352 = vadd.f32 %v1344, %v1350
      %s1353 = sld [smem:[#allocation9 + $0x45]]
      %v1354 = vld [vmem:[#allocation4 + $0x2] sm:$0xff]
      %v1355 = vld [vmem:[#allocation4 + $0xa] sm:$0xff]
      %v1356 = vstv %s1353
      %v1357 = vmul.f32 %v1356, %v1354
      %v1358 = vmul.f32 %v1356, %v1355
      %v1359 = vadd.f32 %v1351, %v1357
      %v1360 = vadd.f32 %v1352, %v1358
      %s1361 = sld [smem:[#allocation9 + $0x4c]]
      %v1362 = vld [vmem:[#allocation4 + $0x3] sm:$0xff]
      %v1363 = vld [vmem:[#allocation4 + $0xb] sm:$0xff]
      %v1364 = vstv %s1361
      %v1365 = vmul.f32 %v1364, %v1362
      %v1366 = vmul.f32 %v1364, %v1363
      %v1367 = vadd.f32 %v1359, %v1365
      %v1368 = vadd.f32 %v1360, %v1366
      %s1369 = sld [smem:[#allocation9 + $0x53]]
      %v1370 = vld [vmem:[#allocation4 + $0x4] sm:$0xff]
      %v1371 = vld [vmem:[#allocation4 + $0xc] sm:$0xff]
      %v1372 = vstv %s1369
      %v1373 = vmul.f32 %v1372, %v1370
      %v1374 = vmul.f32 %v1372, %v1371
      %v1375 = vadd.f32 %v1367, %v1373
      %v1376 = vadd.f32 %v1368, %v1374
      %s1377 = sld [smem:[#allocation9 + $0x5a]]
      %v1378 = vld [vmem:[#allocation4 + $0x5] sm:$0xff]
      %v1379 = vld [vmem:[#allocation4 + $0xd] sm:$0xff]
      %v1380 = vstv %s1377
      %v1381 = vmul.f32 %v1380, %v1378
      %v1382 = vmul.f32 %v1380, %v1379
      %v1383 = vadd.f32 %v1375, %v1381
      %v1384 = vadd.f32 %v1376, %v1382
      %s1385 = sld [smem:[#allocation9 + $0x61]]
      %v1386 = vld [vmem:[#allocation4 + $0x6] sm:$0xff]
      %v1387 = vld [vmem:[#allocation4 + $0xe] sm:$0xff]
      %v1388 = vstv %s1385
      %v1389 = vmul.f32 %v1388, %v1386
      %v1390 = vmul.f32 %v1388, %v1387
      %v1391 = vadd.f32 %v1383, %v1389
      %v1392 = vadd.f32 %v1384, %v1390
      %v1393 = vadd.f32 %v1313, %v1391
      %v1394 = vadd.f32 %v1314, %v1392
      %v1395 = vxor.u32 %v1393, 2147483648
      %v1396 = vxor.u32 %v1394, 2147483648
      %v1397 = vmul.f32 %v1395, 1.442695
      %v1398 = vpow.pop %v1397
      %v1399 = vmul.f32 %v1396, 1.442695
      %v1400 = vpow.pop %v1399
      %v1401 = vadd.f32 %v1398, 1.0
      %v1402 = vadd.f32 %v1400, 1.0
      %v1403 = vrcp.pop %v1401
      %v1404 = vmul.f32 %v1401, %v1403
      %v1405 = vsub.f32 1.0, %v1404
      %v1406 = vmul.f32 %v1403, %v1405
      %v1407 = vadd.f32 %v1403, %v1406
      %vm1408 = vweird.f32 %v1401
      %vm1409 = vweird.f32 %v1403
      %vm1410 = vmor %vm1408, %vm1409
      %v1411 = vsel %vm1410, %v1403, %v1407
      %v1412 = vand.u32 2147483647, %v1401
      %vm1413 = vcmp.eq.f32.partialorder %v1412, 8.507059e+37
      %v1414 = vand.u32 %v1401, 2147483648
      %v1415 = vor.u32 1.1754944e-38, %v1414
      %v1416 = vsel %vm1413, %v1415, %v1411
      %v1417 = vmul.f32 1.0, %v1416
      %v1418 = vrcp.pop %v1402
      %v1419 = vmul.f32 %v1402, %v1418
      %v1420 = vsub.f32 1.0, %v1419
      %v1421 = vmul.f32 %v1418, %v1420
      %v1422 = vadd.f32 %v1418, %v1421
      %vm1423 = vweird.f32 %v1402
      %vm1424 = vweird.f32 %v1418
      %vm1425 = vmor %vm1423, %vm1424
      %v1426 = vsel %vm1425, %v1418, %v1422
      %v1427 = vand.u32 2147483647, %v1402
      %vm1428 = vcmp.eq.f32.partialorder %v1427, 8.507059e+37
      %v1429 = vand.u32 %v1402, 2147483648
      %v1430 = vor.u32 1.1754944e-38, %v1429
      %v1431 = vsel %vm1428, %v1430, %v1426
      %v1432 = vmul.f32 1.0, %v1431
      %1433 = vst.msk [vmem:[#allocation10] sm:$0xff] %vm98, %v1417
      %1434 = vst.msk [vmem:[#allocation10 + $0x8] sm:$0xff] %vm98, %v1432
      %s1435 = scalar_lea.vmem [#allocation2], 64
      %v1436 = vld [vmem:[%s1435] sm:$0xe0]
      %v1437 = vld [vmem:[%s1435 + $0x8] sm:$0xe0]
      %v1438 = vld [vmem:[%s1435 + $0x10] sm:$0xff]
      %v1439 = vld [vmem:[%s1435 + $0x18] sm:$0xff]
      %v1440 = vld [vmem:[%s1435 + $0x20] sm:$0xff]
      %v1441 = vld [vmem:[%s1435 + $0x28] sm:$0xff]
      %v1442 = vld [vmem:[%s1435 + $0x30] sm:$0x7]
      %v1443 = vld [vmem:[%s1435 + $0x38] sm:$0x7]
      %1452 = vrot.lane.b32.xlu0 %v1436, 3
      %v1453 = vpop.permute.xlu0 %1452
      %1454 = vrot.lane.b32.xlu0 %v1437, 3
      %v1455 = vpop.permute.xlu0 %1454
      %1456 = vrot.lane.b32.xlu0 %v1438, 3
      %v1457 = vpop.permute.xlu0 %1456
      %1458 = vrot.lane.b32.xlu0 %v1439, 3
      %v1459 = vpop.permute.xlu0 %1458
      %1460 = vrot.lane.b32.xlu0 %v1440, 3
      %v1461 = vpop.permute.xlu0 %1460
      %1462 = vrot.lane.b32.xlu0 %v1441, 3
      %v1463 = vpop.permute.xlu0 %1462
      %1464 = vrot.lane.b32.xlu0 %v1442, 3
      %v1465 = vpop.permute.xlu0 %1464
      %1466 = vrot.lane.b32.xlu0 %v1443, 3
      %v1467 = vpop.permute.xlu0 %1466
      %v1468 = vsel %vm214, %v1453, %v1455
      %v1469 = vsel %vm214, %v1457, %v1459
      %v1470 = vsel %vm214, %v1461, %v1463
      %v1471 = vsel %vm214, %v1465, %v1467
      %1476 = vst.msk [vmem:[#allocation4 - $0x5] sm:$0xe0] %vm223, %v1468
      %1477 = vst.msk [vmem:[#allocation4 + $0x3] sm:$0xff] %vm98, %v1469
      %1478 = vst.msk [vmem:[#allocation4 + $0xb] sm:$0xff] %vm98, %v1470
      %1479 = vst.msk [vmem:[#allocation4 + $0x13] sm:$0x7] %vm227, %v1471
      %s1480 = sld [smem:[#allocation9]]
      %v1481 = vld [vmem:[#allocation4] sm:$0xff]
      %v1482 = vld [vmem:[#allocation4 + $0x8] sm:$0xff]
      %v1483 = vstv %s1480
      %v1484 = vmul.f32 %v1483, %v1481
      %v1485 = vmul.f32 %v1483, %v1482
      %s1486 = sld [smem:[#allocation9 + $0x7]]
      %v1487 = vld [vmem:[#allocation4 + $0x1] sm:$0xff]
      %v1488 = vld [vmem:[#allocation4 + $0x9] sm:$0xff]
      %v1489 = vstv %s1486
      %v1490 = vmul.f32 %v1489, %v1487
      %v1491 = vmul.f32 %v1489, %v1488
      %v1492 = vadd.f32 %v1484, %v1490
      %v1493 = vadd.f32 %v1485, %v1491
      %s1494 = sld [smem:[#allocation9 + $0xe]]
      %v1495 = vld [vmem:[#allocation4 + $0x2] sm:$0xff]
      %v1496 = vld [vmem:[#allocation4 + $0xa] sm:$0xff]
      %v1497 = vstv %s1494
      %v1498 = vmul.f32 %v1497, %v1495
      %v1499 = vmul.f32 %v1497, %v1496
      %v1500 = vadd.f32 %v1492, %v1498
      %v1501 = vadd.f32 %v1493, %v1499
      %s1502 = sld [smem:[#allocation9 + $0x15]]
      %v1503 = vld [vmem:[#allocation4 + $0x3] sm:$0xff]
      %v1504 = vld [vmem:[#allocation4 + $0xb] sm:$0xff]
      %v1505 = vstv %s1502
      %v1506 = vmul.f32 %v1505, %v1503
      %v1507 = vmul.f32 %v1505, %v1504
      %v1508 = vadd.f32 %v1500, %v1506
      %v1509 = vadd.f32 %v1501, %v1507
      %s1510 = sld [smem:[#allocation9 + $0x1c]]
      %v1511 = vld [vmem:[#allocation4 + $0x4] sm:$0xff]
      %v1512 = vld [vmem:[#allocation4 + $0xc] sm:$0xff]
      %v1513 = vstv %s1510
      %v1514 = vmul.f32 %v1513, %v1511
      %v1515 = vmul.f32 %v1513, %v1512
      %v1516 = vadd.f32 %v1508, %v1514
      %v1517 = vadd.f32 %v1509, %v1515
      %s1518 = sld [smem:[#allocation9 + $0x23]]
      %v1519 = vld [vmem:[#allocation4 + $0x5] sm:$0xff]
      %v1520 = vld [vmem:[#allocation4 + $0xd] sm:$0xff]
      %v1521 = vstv %s1518
      %v1522 = vmul.f32 %v1521, %v1519
      %v1523 = vmul.f32 %v1521, %v1520
      %v1524 = vadd.f32 %v1516, %v1522
      %v1525 = vadd.f32 %v1517, %v1523
      %s1526 = sld [smem:[#allocation9 + $0x2a]]
      %v1527 = vld [vmem:[#allocation4 + $0x6] sm:$0xff]
      %v1528 = vld [vmem:[#allocation4 + $0xe] sm:$0xff]
      %v1529 = vstv %s1526
      %v1530 = vmul.f32 %v1529, %v1527
      %v1531 = vmul.f32 %v1529, %v1528
      %v1532 = vadd.f32 %v1524, %v1530
      %v1533 = vadd.f32 %v1525, %v1531
      %v1534 = vadd.f32 %v1532, 0.0
      %v1535 = vadd.f32 %v1533, 0.0
      %v1536 = vld [vmem:[%s1435] sm:$0xe0]
      %v1537 = vld [vmem:[%s1435 + $0x8] sm:$0xe0]
      %v1538 = vld [vmem:[%s1435 + $0x10] sm:$0xff]
      %v1539 = vld [vmem:[%s1435 + $0x18] sm:$0xff]
      %v1540 = vld [vmem:[%s1435 + $0x20] sm:$0xff]
      %v1541 = vld [vmem:[%s1435 + $0x28] sm:$0xff]
      %v1542 = vld [vmem:[%s1435 + $0x30] sm:$0x7]
      %v1543 = vld [vmem:[%s1435 + $0x38] sm:$0x7]
      %1552 = vrot.lane.b32.xlu0 %v1536, 2
      %v1553 = vpop.permute.xlu0 %1552
      %1554 = vrot.lane.b32.xlu0 %v1537, 2
      %v1555 = vpop.permute.xlu0 %1554
      %1556 = vrot.lane.b32.xlu0 %v1538, 2
      %v1557 = vpop.permute.xlu0 %1556
      %1558 = vrot.lane.b32.xlu0 %v1539, 2
      %v1559 = vpop.permute.xlu0 %1558
      %1560 = vrot.lane.b32.xlu0 %v1540, 2
      %v1561 = vpop.permute.xlu0 %1560
      %1562 = vrot.lane.b32.xlu0 %v1541, 2
      %v1563 = vpop.permute.xlu0 %1562
      %1564 = vrot.lane.b32.xlu0 %v1542, 2
      %v1565 = vpop.permute.xlu0 %1564
      %1566 = vrot.lane.b32.xlu0 %v1543, 2
      %v1567 = vpop.permute.xlu0 %1566
      %v1568 = vsel %vm317, %v1553, %v1555
      %v1569 = vsel %vm317, %v1557, %v1559
      %v1570 = vsel %vm317, %v1561, %v1563
      %v1571 = vsel %vm317, %v1565, %v1567
      %1576 = vst.msk [vmem:[#allocation4 - $0x5] sm:$0xe0] %vm223, %v1568
      %1577 = vst.msk [vmem:[#allocation4 + $0x3] sm:$0xff] %vm98, %v1569
      %1578 = vst.msk [vmem:[#allocation4 + $0xb] sm:$0xff] %vm98, %v1570
      %1579 = vst.msk [vmem:[#allocation4 + $0x13] sm:$0x7] %vm227, %v1571
      %s1580 = sld [smem:[#allocation9 + $0x1]]
      %v1581 = vld [vmem:[#allocation4] sm:$0xff]
      %v1582 = vld [vmem:[#allocation4 + $0x8] sm:$0xff]
      %v1583 = vstv %s1580
      %v1584 = vmul.f32 %v1583, %v1581
      %v1585 = vmul.f32 %v1583, %v1582
      %s1586 = sld [smem:[#allocation9 + $0x8]]
      %v1587 = vld [vmem:[#allocation4 + $0x1] sm:$0xff]
      %v1588 = vld [vmem:[#allocation4 + $0x9] sm:$0xff]
      %v1589 = vstv %s1586
      %v1590 = vmul.f32 %v1589, %v1587
      %v1591 = vmul.f32 %v1589, %v1588
      %v1592 = vadd.f32 %v1584, %v1590
      %v1593 = vadd.f32 %v1585, %v1591
      %s1594 = sld [smem:[#allocation9 + $0xf]]
      %v1595 = vld [vmem:[#allocation4 + $0x2] sm:$0xff]
      %v1596 = vld [vmem:[#allocation4 + $0xa] sm:$0xff]
      %v1597 = vstv %s1594
      %v1598 = vmul.f32 %v1597, %v1595
      %v1599 = vmul.f32 %v1597, %v1596
      %v1600 = vadd.f32 %v1592, %v1598
      %v1601 = vadd.f32 %v1593, %v1599
      %s1602 = sld [smem:[#allocation9 + $0x16]]
      %v1603 = vld [vmem:[#allocation4 + $0x3] sm:$0xff]
      %v1604 = vld [vmem:[#allocation4 + $0xb] sm:$0xff]
      %v1605 = vstv %s1602
      %v1606 = vmul.f32 %v1605, %v1603
      %v1607 = vmul.f32 %v1605, %v1604
      %v1608 = vadd.f32 %v1600, %v1606
      %v1609 = vadd.f32 %v1601, %v1607
      %s1610 = sld [smem:[#allocation9 + $0x1d]]
      %v1611 = vld [vmem:[#allocation4 + $0x4] sm:$0xff]
      %v1612 = vld [vmem:[#allocation4 + $0xc] sm:$0xff]
      %v1613 = vstv %s1610
      %v1614 = vmul.f32 %v1613, %v1611
      %v1615 = vmul.f32 %v1613, %v1612
      %v1616 = vadd.f32 %v1608, %v1614
      %v1617 = vadd.f32 %v1609, %v1615
      %s1618 = sld [smem:[#allocation9 + $0x24]]
      %v1619 = vld [vmem:[#allocation4 + $0x5] sm:$0xff]
      %v1620 = vld [vmem:[#allocation4 + $0xd] sm:$0xff]
      %v1621 = vstv %s1618
      %v1622 = vmul.f32 %v1621, %v1619
      %v1623 = vmul.f32 %v1621, %v1620
      %v1624 = vadd.f32 %v1616, %v1622
      %v1625 = vadd.f32 %v1617, %v1623
      %s1626 = sld [smem:[#allocation9 + $0x2b]]
      %v1627 = vld [vmem:[#allocation4 + $0x6] sm:$0xff]
      %v1628 = vld [vmem:[#allocation4 + $0xe] sm:$0xff]
      %v1629 = vstv %s1626
      %v1630 = vmul.f32 %v1629, %v1627
      %v1631 = vmul.f32 %v1629, %v1628
      %v1632 = vadd.f32 %v1624, %v1630
      %v1633 = vadd.f32 %v1625, %v1631
      %v1634 = vadd.f32 %v1534, %v1632
      %v1635 = vadd.f32 %v1535, %v1633
      %v1636 = vld [vmem:[%s1435] sm:$0xe0]
      %v1637 = vld [vmem:[%s1435 + $0x8] sm:$0xe0]
      %v1638 = vld [vmem:[%s1435 + $0x10] sm:$0xff]
      %v1639 = vld [vmem:[%s1435 + $0x18] sm:$0xff]
      %v1640 = vld [vmem:[%s1435 + $0x20] sm:$0xff]
      %v1641 = vld [vmem:[%s1435 + $0x28] sm:$0xff]
      %v1642 = vld [vmem:[%s1435 + $0x30] sm:$0x7]
      %v1643 = vld [vmem:[%s1435 + $0x38] sm:$0x7]
      %1652 = vrot.lane.b32.xlu0 %v1636, 1
      %v1653 = vpop.permute.xlu0 %1652
      %1654 = vrot.lane.b32.xlu0 %v1637, 1
      %v1655 = vpop.permute.xlu0 %1654
      %1656 = vrot.lane.b32.xlu0 %v1638, 1
      %v1657 = vpop.permute.xlu0 %1656
      %1658 = vrot.lane.b32.xlu0 %v1639, 1
      %v1659 = vpop.permute.xlu0 %1658
      %1660 = vrot.lane.b32.xlu0 %v1640, 1
      %v1661 = vpop.permute.xlu0 %1660
      %1662 = vrot.lane.b32.xlu0 %v1641, 1
      %v1663 = vpop.permute.xlu0 %1662
      %1664 = vrot.lane.b32.xlu0 %v1642, 1
      %v1665 = vpop.permute.xlu0 %1664
      %1666 = vrot.lane.b32.xlu0 %v1643, 1
      %v1667 = vpop.permute.xlu0 %1666
      %v1668 = vsel %vm418, %v1653, %v1655
      %v1669 = vsel %vm418, %v1657, %v1659
      %v1670 = vsel %vm418, %v1661, %v1663
      %v1671 = vsel %vm418, %v1665, %v1667
      %1676 = vst.msk [vmem:[#allocation4 - $0x5] sm:$0xe0] %vm223, %v1668
      %1677 = vst.msk [vmem:[#allocation4 + $0x3] sm:$0xff] %vm98, %v1669
      %1678 = vst.msk [vmem:[#allocation4 + $0xb] sm:$0xff] %vm98, %v1670
      %1679 = vst.msk [vmem:[#allocation4 + $0x13] sm:$0x7] %vm227, %v1671
      %s1680 = sld [smem:[#allocation9 + $0x2]]
      %v1681 = vld [vmem:[#allocation4] sm:$0xff]
      %v1682 = vld [vmem:[#allocation4 + $0x8] sm:$0xff]
      %v1683 = vstv %s1680
      %v1684 = vmul.f32 %v1683, %v1681
      %v1685 = vmul.f32 %v1683, %v1682
      %s1686 = sld [smem:[#allocation9 + $0x9]]
      %v1687 = vld [vmem:[#allocation4 + $0x1] sm:$0xff]
      %v1688 = vld [vmem:[#allocation4 + $0x9] sm:$0xff]
      %v1689 = vstv %s1686
      %v1690 = vmul.f32 %v1689, %v1687
      %v1691 = vmul.f32 %v1689, %v1688
      %v1692 = vadd.f32 %v1684, %v1690
      %v1693 = vadd.f32 %v1685, %v1691
      %s1694 = sld [smem:[#allocation9 + $0x10]]
      %v1695 = vld [vmem:[#allocation4 + $0x2] sm:$0xff]
      %v1696 = vld [vmem:[#allocation4 + $0xa] sm:$0xff]
      %v1697 = vstv %s1694
      %v1698 = vmul.f32 %v1697, %v1695
      %v1699 = vmul.f32 %v1697, %v1696
      %v1700 = vadd.f32 %v1692, %v1698
      %v1701 = vadd.f32 %v1693, %v1699
      %s1702 = sld [smem:[#allocation9 + $0x17]]
      %v1703 = vld [vmem:[#allocation4 + $0x3] sm:$0xff]
      %v1704 = vld [vmem:[#allocation4 + $0xb] sm:$0xff]
      %v1705 = vstv %s1702
      %v1706 = vmul.f32 %v1705, %v1703
      %v1707 = vmul.f32 %v1705, %v1704
      %v1708 = vadd.f32 %v1700, %v1706
      %v1709 = vadd.f32 %v1701, %v1707
      %s1710 = sld [smem:[#allocation9 + $0x1e]]
      %v1711 = vld [vmem:[#allocation4 + $0x4] sm:$0xff]
      %v1712 = vld [vmem:[#allocation4 + $0xc] sm:$0xff]
      %v1713 = vstv %s1710
      %v1714 = vmul.f32 %v1713, %v1711
      %v1715 = vmul.f32 %v1713, %v1712
      %v1716 = vadd.f32 %v1708, %v1714
      %v1717 = vadd.f32 %v1709, %v1715
      %s1718 = sld [smem:[#allocation9 + $0x25]]
      %v1719 = vld [vmem:[#allocation4 + $0x5] sm:$0xff]
      %v1720 = vld [vmem:[#allocation4 + $0xd] sm:$0xff]
      %v1721 = vstv %s1718
      %v1722 = vmul.f32 %v1721, %v1719
      %v1723 = vmul.f32 %v1721, %v1720
      %v1724 = vadd.f32 %v1716, %v1722
      %v1725 = vadd.f32 %v1717, %v1723
      %s1726 = sld [smem:[#allocation9 + $0x2c]]
      %v1727 = vld [vmem:[#allocation4 + $0x6] sm:$0xff]
      %v1728 = vld [vmem:[#allocation4 + $0xe] sm:$0xff]
      %v1729 = vstv %s1726
      %v1730 = vmul.f32 %v1729, %v1727
      %v1731 = vmul.f32 %v1729, %v1728
      %v1732 = vadd.f32 %v1724, %v1730
      %v1733 = vadd.f32 %v1725, %v1731
      %v1734 = vadd.f32 %v1634, %v1732
      %v1735 = vadd.f32 %v1635, %v1733
      %v1736 = vld [vmem:[%s1435 + $0x8] sm:$0xe0]
      %v1737 = vld [vmem:[%s1435 + $0x18] sm:$0xff]
      %v1738 = vld [vmem:[%s1435 + $0x28] sm:$0xff]
      %v1739 = vld [vmem:[%s1435 + $0x38] sm:$0x7]
      %1740 = vst.msk [vmem:[#allocation4 - $0x5] sm:$0xe0] %vm223, %v1736
      %1741 = vst.msk [vmem:[#allocation4 + $0x3] sm:$0xff] %vm98, %v1737
      %1742 = vst.msk [vmem:[#allocation4 + $0xb] sm:$0xff] %vm98, %v1738
      %1743 = vst.msk [vmem:[#allocation4 + $0x13] sm:$0x7] %vm227, %v1739
      %s1744 = sld [smem:[#allocation9 + $0x3]]
      %v1745 = vld [vmem:[#allocation4] sm:$0xff]
      %v1746 = vld [vmem:[#allocation4 + $0x8] sm:$0xff]
      %v1747 = vstv %s1744
      %v1748 = vmul.f32 %v1747, %v1745
      %v1749 = vmul.f32 %v1747, %v1746
      %s1750 = sld [smem:[#allocation9 + $0xa]]
      %v1751 = vld [vmem:[#allocation4 + $0x1] sm:$0xff]
      %v1752 = vld [vmem:[#allocation4 + $0x9] sm:$0xff]
      %v1753 = vstv %s1750
      %v1754 = vmul.f32 %v1753, %v1751
      %v1755 = vmul.f32 %v1753, %v1752
      %v1756 = vadd.f32 %v1748, %v1754
      %v1757 = vadd.f32 %v1749, %v1755
      %s1758 = sld [smem:[#allocation9 + $0x11]]
      %v1759 = vld [vmem:[#allocation4 + $0x2] sm:$0xff]
      %v1760 = vld [vmem:[#allocation4 + $0xa] sm:$0xff]
      %v1761 = vstv %s1758
      %v1762 = vmul.f32 %v1761, %v1759
      %v1763 = vmul.f32 %v1761, %v1760
      %v1764 = vadd.f32 %v1756, %v1762
      %v1765 = vadd.f32 %v1757, %v1763
      %s1766 = sld [smem:[#allocation9 + $0x18]]
      %v1767 = vld [vmem:[#allocation4 + $0x3] sm:$0xff]
      %v1768 = vld [vmem:[#allocation4 + $0xb] sm:$0xff]
      %v1769 = vstv %s1766
      %v1770 = vmul.f32 %v1769, %v1767
      %v1771 = vmul.f32 %v1769, %v1768
      %v1772 = vadd.f32 %v1764, %v1770
      %v1773 = vadd.f32 %v1765, %v1771
      %s1774 = sld [smem:[#allocation9 + $0x1f]]
      %v1775 = vld [vmem:[#allocation4 + $0x4] sm:$0xff]
      %v1776 = vld [vmem:[#allocation4 + $0xc] sm:$0xff]
      %v1777 = vstv %s1774
      %v1778 = vmul.f32 %v1777, %v1775
      %v1779 = vmul.f32 %v1777, %v1776
      %v1780 = vadd.f32 %v1772, %v1778
      %v1781 = vadd.f32 %v1773, %v1779
      %s1782 = sld [smem:[#allocation9 + $0x26]]
      %v1783 = vld [vmem:[#allocation4 + $0x5] sm:$0xff]
      %v1784 = vld [vmem:[#allocation4 + $0xd] sm:$0xff]
      %v1785 = vstv %s1782
      %v1786 = vmul.f32 %v1785, %v1783
      %v1787 = vmul.f32 %v1785, %v1784
      %v1788 = vadd.f32 %v1780, %v1786
      %v1789 = vadd.f32 %v1781, %v1787
      %s1790 = sld [smem:[#allocation9 + $0x2d]]
      %v1791 = vld [vmem:[#allocation4 + $0x6] sm:$0xff]
      %v1792 = vld [vmem:[#allocation4 + $0xe] sm:$0xff]
      %v1793 = vstv %s1790
      %v1794 = vmul.f32 %v1793, %v1791
      %v1795 = vmul.f32 %v1793, %v1792
      %v1796 = vadd.f32 %v1788, %v1794
      %v1797 = vadd.f32 %v1789, %v1795
      %v1798 = vadd.f32 %v1734, %v1796
      %v1799 = vadd.f32 %v1735, %v1797
      %v1800 = vld [vmem:[%s1435 + $0x8] sm:$0xe0]
      %v1801 = vld [vmem:[%s1435 + $0x18] sm:$0xff]
      %v1802 = vld [vmem:[%s1435 + $0x28] sm:$0xff]
      %v1803 = vld [vmem:[%s1435 + $0x38] sm:$0x7]
      %1808 = vrot.lane.b32.xlu0 %v1800, 127
      %v1809 = vpop.permute.xlu0 %1808
      %1810 = vrot.lane.b32.xlu0 %v1801, 127
      %v1811 = vpop.permute.xlu0 %1810
      %1812 = vrot.lane.b32.xlu0 %v1802, 127
      %v1813 = vpop.permute.xlu0 %1812
      %1814 = vrot.lane.b32.xlu0 %v1803, 127
      %v1815 = vpop.permute.xlu0 %1814
      %1820 = vst.msk [vmem:[#allocation4 - $0x5] sm:$0xe0] %vm223, %v1809
      %1821 = vst.msk [vmem:[#allocation4 + $0x3] sm:$0xff] %vm98, %v1811
      %1822 = vst.msk [vmem:[#allocation4 + $0xb] sm:$0xff] %vm98, %v1813
      %1823 = vst.msk [vmem:[#allocation4 + $0x13] sm:$0x7] %vm227, %v1815
      %s1824 = sld [smem:[#allocation9 + $0x4]]
      %v1825 = vld [vmem:[#allocation4] sm:$0xff]
      %v1826 = vld [vmem:[#allocation4 + $0x8] sm:$0xff]
      %v1827 = vstv %s1824
      %v1828 = vmul.f32 %v1827, %v1825
      %v1829 = vmul.f32 %v1827, %v1826
      %s1830 = sld [smem:[#allocation9 + $0xb]]
      %v1831 = vld [vmem:[#allocation4 + $0x1] sm:$0xff]
      %v1832 = vld [vmem:[#allocation4 + $0x9] sm:$0xff]
      %v1833 = vstv %s1830
      %v1834 = vmul.f32 %v1833, %v1831
      %v1835 = vmul.f32 %v1833, %v1832
      %v1836 = vadd.f32 %v1828, %v1834
      %v1837 = vadd.f32 %v1829, %v1835
      %s1838 = sld [smem:[#allocation9 + $0x12]]
      %v1839 = vld [vmem:[#allocation4 + $0x2] sm:$0xff]
      %v1840 = vld [vmem:[#allocation4 + $0xa] sm:$0xff]
      %v1841 = vstv %s1838
      %v1842 = vmul.f32 %v1841, %v1839
      %v1843 = vmul.f32 %v1841, %v1840
      %v1844 = vadd.f32 %v1836, %v1842
      %v1845 = vadd.f32 %v1837, %v1843
      %s1846 = sld [smem:[#allocation9 + $0x19]]
      %v1847 = vld [vmem:[#allocation4 + $0x3] sm:$0xff]
      %v1848 = vld [vmem:[#allocation4 + $0xb] sm:$0xff]
      %v1849 = vstv %s1846
      %v1850 = vmul.f32 %v1849, %v1847
      %v1851 = vmul.f32 %v1849, %v1848
      %v1852 = vadd.f32 %v1844, %v1850
      %v1853 = vadd.f32 %v1845, %v1851
      %s1854 = sld [smem:[#allocation9 + $0x20]]
      %v1855 = vld [vmem:[#allocation4 + $0x4] sm:$0xff]
      %v1856 = vld [vmem:[#allocation4 + $0xc] sm:$0xff]
      %v1857 = vstv %s1854
      %v1858 = vmul.f32 %v1857, %v1855
      %v1859 = vmul.f32 %v1857, %v1856
      %v1860 = vadd.f32 %v1852, %v1858
      %v1861 = vadd.f32 %v1853, %v1859
      %s1862 = sld [smem:[#allocation9 + $0x27]]
      %v1863 = vld [vmem:[#allocation4 + $0x5] sm:$0xff]
      %v1864 = vld [vmem:[#allocation4 + $0xd] sm:$0xff]
      %v1865 = vstv %s1862
      %v1866 = vmul.f32 %v1865, %v1863
      %v1867 = vmul.f32 %v1865, %v1864
      %v1868 = vadd.f32 %v1860, %v1866
      %v1869 = vadd.f32 %v1861, %v1867
      %s1870 = sld [smem:[#allocation9 + $0x2e]]
      %v1871 = vld [vmem:[#allocation4 + $0x6] sm:$0xff]
      %v1872 = vld [vmem:[#allocation4 + $0xe] sm:$0xff]
      %v1873 = vstv %s1870
      %v1874 = vmul.f32 %v1873, %v1871
      %v1875 = vmul.f32 %v1873, %v1872
      %v1876 = vadd.f32 %v1868, %v1874
      %v1877 = vadd.f32 %v1869, %v1875
      %v1878 = vadd.f32 %v1798, %v1876
      %v1879 = vadd.f32 %v1799, %v1877
      %v1880 = vld [vmem:[%s1435 + $0x8] sm:$0xe0]
      %v1881 = vld [vmem:[%s1435 + $0x18] sm:$0xff]
      %v1882 = vld [vmem:[%s1435 + $0x28] sm:$0xff]
      %v1883 = vld [vmem:[%s1435 + $0x38] sm:$0x7]
      %1888 = vrot.lane.b32.xlu0 %v1880, 126
      %v1889 = vpop.permute.xlu0 %1888
      %1890 = vrot.lane.b32.xlu0 %v1881, 126
      %v1891 = vpop.permute.xlu0 %1890
      %1892 = vrot.lane.b32.xlu0 %v1882, 126
      %v1893 = vpop.permute.xlu0 %1892
      %1894 = vrot.lane.b32.xlu0 %v1883, 126
      %v1895 = vpop.permute.xlu0 %1894
      %1900 = vst.msk [vmem:[#allocation4 - $0x5] sm:$0xe0] %vm223, %v1889
      %1901 = vst.msk [vmem:[#allocation4 + $0x3] sm:$0xff] %vm98, %v1891
      %1902 = vst.msk [vmem:[#allocation4 + $0xb] sm:$0xff] %vm98, %v1893
      %1903 = vst.msk [vmem:[#allocation4 + $0x13] sm:$0x7] %vm227, %v1895
      %s1904 = sld [smem:[#allocation9 + $0x5]]
      %v1905 = vld [vmem:[#allocation4] sm:$0xff]
      %v1906 = vld [vmem:[#allocation4 + $0x8] sm:$0xff]
      %v1907 = vstv %s1904
      %v1908 = vmul.f32 %v1907, %v1905
      %v1909 = vmul.f32 %v1907, %v1906
      %s1910 = sld [smem:[#allocation9 + $0xc]]
      %v1911 = vld [vmem:[#allocation4 + $0x1] sm:$0xff]
      %v1912 = vld [vmem:[#allocation4 + $0x9] sm:$0xff]
      %v1913 = vstv %s1910
      %v1914 = vmul.f32 %v1913, %v1911
      %v1915 = vmul.f32 %v1913, %v1912
      %v1916 = vadd.f32 %v1908, %v1914
      %v1917 = vadd.f32 %v1909, %v1915
      %s1918 = sld [smem:[#allocation9 + $0x13]]
      %v1919 = vld [vmem:[#allocation4 + $0x2] sm:$0xff]
      %v1920 = vld [vmem:[#allocation4 + $0xa] sm:$0xff]
      %v1921 = vstv %s1918
      %v1922 = vmul.f32 %v1921, %v1919
      %v1923 = vmul.f32 %v1921, %v1920
      %v1924 = vadd.f32 %v1916, %v1922
      %v1925 = vadd.f32 %v1917, %v1923
      %s1926 = sld [smem:[#allocation9 + $0x1a]]
      %v1927 = vld [vmem:[#allocation4 + $0x3] sm:$0xff]
      %v1928 = vld [vmem:[#allocation4 + $0xb] sm:$0xff]
      %v1929 = vstv %s1926
      %v1930 = vmul.f32 %v1929, %v1927
      %v1931 = vmul.f32 %v1929, %v1928
      %v1932 = vadd.f32 %v1924, %v1930
      %v1933 = vadd.f32 %v1925, %v1931
      %s1934 = sld [smem:[#allocation9 + $0x21]]
      %v1935 = vld [vmem:[#allocation4 + $0x4] sm:$0xff]
      %v1936 = vld [vmem:[#allocation4 + $0xc] sm:$0xff]
      %v1937 = vstv %s1934
      %v1938 = vmul.f32 %v1937, %v1935
      %v1939 = vmul.f32 %v1937, %v1936
      %v1940 = vadd.f32 %v1932, %v1938
      %v1941 = vadd.f32 %v1933, %v1939
      %s1942 = sld [smem:[#allocation9 + $0x28]]
      %v1943 = vld [vmem:[#allocation4 + $0x5] sm:$0xff]
      %v1944 = vld [vmem:[#allocation4 + $0xd] sm:$0xff]
      %v1945 = vstv %s1942
      %v1946 = vmul.f32 %v1945, %v1943
      %v1947 = vmul.f32 %v1945, %v1944
      %v1948 = vadd.f32 %v1940, %v1946
      %v1949 = vadd.f32 %v1941, %v1947
      %s1950 = sld [smem:[#allocation9 + $0x2f]]
      %v1951 = vld [vmem:[#allocation4 + $0x6] sm:$0xff]
      %v1952 = vld [vmem:[#allocation4 + $0xe] sm:$0xff]
      %v1953 = vstv %s1950
      %v1954 = vmul.f32 %v1953, %v1951
      %v1955 = vmul.f32 %v1953, %v1952
      %v1956 = vadd.f32 %v1948, %v1954
      %v1957 = vadd.f32 %v1949, %v1955
      %v1958 = vadd.f32 %v1878, %v1956
      %v1959 = vadd.f32 %v1879, %v1957
      %v1960 = vld [vmem:[%s1435 + $0x8] sm:$0xe0]
      %v1961 = vld [vmem:[%s1435 + $0x18] sm:$0xff]
      %v1962 = vld [vmem:[%s1435 + $0x28] sm:$0xff]
      %v1963 = vld [vmem:[%s1435 + $0x38] sm:$0x7]
      %1968 = vrot.lane.b32.xlu0 %v1960, 125
      %v1969 = vpop.permute.xlu0 %1968
      %1970 = vrot.lane.b32.xlu0 %v1961, 125
      %v1971 = vpop.permute.xlu0 %1970
      %1972 = vrot.lane.b32.xlu0 %v1962, 125
      %v1973 = vpop.permute.xlu0 %1972
      %1974 = vrot.lane.b32.xlu0 %v1963, 125
      %v1975 = vpop.permute.xlu0 %1974
      %1980 = vst.msk [vmem:[#allocation4 - $0x5] sm:$0xe0] %vm223, %v1969
      %1981 = vst.msk [vmem:[#allocation4 + $0x3] sm:$0xff] %vm98, %v1971
      %1982 = vst.msk [vmem:[#allocation4 + $0xb] sm:$0xff] %vm98, %v1973
      %1983 = vst.msk [vmem:[#allocation4 + $0x13] sm:$0x7] %vm227, %v1975
      %s1984 = sld [smem:[#allocation9 + $0x6]]
      %v1985 = vld [vmem:[#allocation4] sm:$0xff]
      %v1986 = vld [vmem:[#allocation4 + $0x8] sm:$0xff]
      %v1987 = vstv %s1984
      %v1988 = vmul.f32 %v1987, %v1985
      %v1989 = vmul.f32 %v1987, %v1986
      %s1990 = sld [smem:[#allocation9 + $0xd]]
      %v1991 = vld [vmem:[#allocation4 + $0x1] sm:$0xff]
      %v1992 = vld [vmem:[#allocation4 + $0x9] sm:$0xff]
      %v1993 = vstv %s1990
      %v1994 = vmul.f32 %v1993, %v1991
      %v1995 = vmul.f32 %v1993, %v1992
      %v1996 = vadd.f32 %v1988, %v1994
      %v1997 = vadd.f32 %v1989, %v1995
      %s1998 = sld [smem:[#allocation9 + $0x14]]
      %v1999 = vld [vmem:[#allocation4 + $0x2] sm:$0xff]
      %v2000 = vld [vmem:[#allocation4 + $0xa] sm:$0xff]
      %v2001 = vstv %s1998
      %v2002 = vmul.f32 %v2001, %v1999
      %v2003 = vmul.f32 %v2001, %v2000
      %v2004 = vadd.f32 %v1996, %v2002
      %v2005 = vadd.f32 %v1997, %v2003
      %s2006 = sld [smem:[#allocation9 + $0x1b]]
      %v2007 = vld [vmem:[#allocation4 + $0x3] sm:$0xff]
      %v2008 = vld [vmem:[#allocation4 + $0xb] sm:$0xff]
      %v2009 = vstv %s2006
      %v2010 = vmul.f32 %v2009, %v2007
      %v2011 = vmul.f32 %v2009, %v2008
      %v2012 = vadd.f32 %v2004, %v2010
      %v2013 = vadd.f32 %v2005, %v2011
      %s2014 = sld [smem:[#allocation9 + $0x22]]
      %v2015 = vld [vmem:[#allocation4 + $0x4] sm:$0xff]
      %v2016 = vld [vmem:[#allocation4 + $0xc] sm:$0xff]
      %v2017 = vstv %s2014
      %v2018 = vmul.f32 %v2017, %v2015
      %v2019 = vmul.f32 %v2017, %v2016
      %v2020 = vadd.f32 %v2012, %v2018
      %v2021 = vadd.f32 %v2013, %v2019
      %s2022 = sld [smem:[#allocation9 + $0x29]]
      %v2023 = vld [vmem:[#allocation4 + $0x5] sm:$0xff]
      %v2024 = vld [vmem:[#allocation4 + $0xd] sm:$0xff]
      %v2025 = vstv %s2022
      %v2026 = vmul.f32 %v2025, %v2023
      %v2027 = vmul.f32 %v2025, %v2024
      %v2028 = vadd.f32 %v2020, %v2026
      %v2029 = vadd.f32 %v2021, %v2027
      %s2030 = sld [smem:[#allocation9 + $0x30]]
      %v2031 = vld [vmem:[#allocation4 + $0x6] sm:$0xff]
      %v2032 = vld [vmem:[#allocation4 + $0xe] sm:$0xff]
      %v2033 = vstv %s2030
      %v2034 = vmul.f32 %v2033, %v2031
      %v2035 = vmul.f32 %v2033, %v2032
      %v2036 = vadd.f32 %v2028, %v2034
      %v2037 = vadd.f32 %v2029, %v2035
      %v2038 = vadd.f32 %v1958, %v2036
      %v2039 = vadd.f32 %v1959, %v2037
      %s2040 = scalar_lea.vmem [#allocation3], 64
      %v2041 = vld [vmem:[%s2040] sm:$0xe0]
      %v2042 = vld [vmem:[%s2040 + $0x8] sm:$0xe0]
      %v2043 = vld [vmem:[%s2040 + $0x10] sm:$0xff]
      %v2044 = vld [vmem:[%s2040 + $0x18] sm:$0xff]
      %v2045 = vld [vmem:[%s2040 + $0x20] sm:$0xff]
      %v2046 = vld [vmem:[%s2040 + $0x28] sm:$0xff]
      %v2047 = vld [vmem:[%s2040 + $0x30] sm:$0x7]
      %v2048 = vld [vmem:[%s2040 + $0x38] sm:$0x7]
      %2057 = vrot.lane.b32.xlu0 %v2041, 3
      %v2058 = vpop.permute.xlu0 %2057
      %2059 = vrot.lane.b32.xlu0 %v2042, 3
      %v2060 = vpop.permute.xlu0 %2059
      %2061 = vrot.lane.b32.xlu0 %v2043, 3
      %v2062 = vpop.permute.xlu0 %2061
      %2063 = vrot.lane.b32.xlu0 %v2044, 3
      %v2064 = vpop.permute.xlu0 %2063
      %2065 = vrot.lane.b32.xlu0 %v2045, 3
      %v2066 = vpop.permute.xlu0 %2065
      %2067 = vrot.lane.b32.xlu0 %v2046, 3
      %v2068 = vpop.permute.xlu0 %2067
      %2069 = vrot.lane.b32.xlu0 %v2047, 3
      %v2070 = vpop.permute.xlu0 %2069
      %2071 = vrot.lane.b32.xlu0 %v2048, 3
      %v2072 = vpop.permute.xlu0 %2071
      %v2073 = vsel %vm214, %v2058, %v2060
      %v2074 = vsel %vm214, %v2062, %v2064
      %v2075 = vsel %vm214, %v2066, %v2068
      %v2076 = vsel %vm214, %v2070, %v2072
      %2081 = vst.msk [vmem:[#allocation4 - $0x5] sm:$0xe0] %vm223, %v2073
      %2082 = vst.msk [vmem:[#allocation4 + $0x3] sm:$0xff] %vm98, %v2074
      %2083 = vst.msk [vmem:[#allocation4 + $0xb] sm:$0xff] %vm98, %v2075
      %2084 = vst.msk [vmem:[#allocation4 + $0x13] sm:$0x7] %vm227, %v2076
      %s2085 = sld [smem:[#allocation9 + $0x31]]
      %v2086 = vld [vmem:[#allocation4] sm:$0xff]
      %v2087 = vld [vmem:[#allocation4 + $0x8] sm:$0xff]
      %v2088 = vstv %s2085
      %v2089 = vmul.f32 %v2088, %v2086
      %v2090 = vmul.f32 %v2088, %v2087
      %s2091 = sld [smem:[#allocation9 + $0x38]]
      %v2092 = vld [vmem:[#allocation4 + $0x1] sm:$0xff]
      %v2093 = vld [vmem:[#allocation4 + $0x9] sm:$0xff]
      %v2094 = vstv %s2091
      %v2095 = vmul.f32 %v2094, %v2092
      %v2096 = vmul.f32 %v2094, %v2093
      %v2097 = vadd.f32 %v2089, %v2095
      %v2098 = vadd.f32 %v2090, %v2096
      %s2099 = sld [smem:[#allocation9 + $0x3f]]
      %v2100 = vld [vmem:[#allocation4 + $0x2] sm:$0xff]
      %v2101 = vld [vmem:[#allocation4 + $0xa] sm:$0xff]
      %v2102 = vstv %s2099
      %v2103 = vmul.f32 %v2102, %v2100
      %v2104 = vmul.f32 %v2102, %v2101
      %v2105 = vadd.f32 %v2097, %v2103
      %v2106 = vadd.f32 %v2098, %v2104
      %s2107 = sld [smem:[#allocation9 + $0x46]]
      %v2108 = vld [vmem:[#allocation4 + $0x3] sm:$0xff]
      %v2109 = vld [vmem:[#allocation4 + $0xb] sm:$0xff]
      %v2110 = vstv %s2107
      %v2111 = vmul.f32 %v2110, %v2108
      %v2112 = vmul.f32 %v2110, %v2109
      %v2113 = vadd.f32 %v2105, %v2111
      %v2114 = vadd.f32 %v2106, %v2112
      %s2115 = sld [smem:[#allocation9 + $0x4d]]
      %v2116 = vld [vmem:[#allocation4 + $0x4] sm:$0xff]
      %v2117 = vld [vmem:[#allocation4 + $0xc] sm:$0xff]
      %v2118 = vstv %s2115
      %v2119 = vmul.f32 %v2118, %v2116
      %v2120 = vmul.f32 %v2118, %v2117
      %v2121 = vadd.f32 %v2113, %v2119
      %v2122 = vadd.f32 %v2114, %v2120
      %s2123 = sld [smem:[#allocation9 + $0x54]]
      %v2124 = vld [vmem:[#allocation4 + $0x5] sm:$0xff]
      %v2125 = vld [vmem:[#allocation4 + $0xd] sm:$0xff]
      %v2126 = vstv %s2123
      %v2127 = vmul.f32 %v2126, %v2124
      %v2128 = vmul.f32 %v2126, %v2125
      %v2129 = vadd.f32 %v2121, %v2127
      %v2130 = vadd.f32 %v2122, %v2128
      %s2131 = sld [smem:[#allocation9 + $0x5b]]
      %v2132 = vld [vmem:[#allocation4 + $0x6] sm:$0xff]
      %v2133 = vld [vmem:[#allocation4 + $0xe] sm:$0xff]
      %v2134 = vstv %s2131
      %v2135 = vmul.f32 %v2134, %v2132
      %v2136 = vmul.f32 %v2134, %v2133
      %v2137 = vadd.f32 %v2129, %v2135
      %v2138 = vadd.f32 %v2130, %v2136
      %v2139 = vadd.f32 %v2038, %v2137
      %v2140 = vadd.f32 %v2039, %v2138
      %v2141 = vld [vmem:[%s2040] sm:$0xe0]
      %v2142 = vld [vmem:[%s2040 + $0x8] sm:$0xe0]
      %v2143 = vld [vmem:[%s2040 + $0x10] sm:$0xff]
      %v2144 = vld [vmem:[%s2040 + $0x18] sm:$0xff]
      %v2145 = vld [vmem:[%s2040 + $0x20] sm:$0xff]
      %v2146 = vld [vmem:[%s2040 + $0x28] sm:$0xff]
      %v2147 = vld [vmem:[%s2040 + $0x30] sm:$0x7]
      %v2148 = vld [vmem:[%s2040 + $0x38] sm:$0x7]
      %2157 = vrot.lane.b32.xlu0 %v2141, 2
      %v2158 = vpop.permute.xlu0 %2157
      %2159 = vrot.lane.b32.xlu0 %v2142, 2
      %v2160 = vpop.permute.xlu0 %2159
      %2161 = vrot.lane.b32.xlu0 %v2143, 2
      %v2162 = vpop.permute.xlu0 %2161
      %2163 = vrot.lane.b32.xlu0 %v2144, 2
      %v2164 = vpop.permute.xlu0 %2163
      %2165 = vrot.lane.b32.xlu0 %v2145, 2
      %v2166 = vpop.permute.xlu0 %2165
      %2167 = vrot.lane.b32.xlu0 %v2146, 2
      %v2168 = vpop.permute.xlu0 %2167
      %2169 = vrot.lane.b32.xlu0 %v2147, 2
      %v2170 = vpop.permute.xlu0 %2169
      %2171 = vrot.lane.b32.xlu0 %v2148, 2
      %v2172 = vpop.permute.xlu0 %2171
      %v2173 = vsel %vm317, %v2158, %v2160
      %v2174 = vsel %vm317, %v2162, %v2164
      %v2175 = vsel %vm317, %v2166, %v2168
      %v2176 = vsel %vm317, %v2170, %v2172
      %2181 = vst.msk [vmem:[#allocation4 - $0x5] sm:$0xe0] %vm223, %v2173
      %2182 = vst.msk [vmem:[#allocation4 + $0x3] sm:$0xff] %vm98, %v2174
      %2183 = vst.msk [vmem:[#allocation4 + $0xb] sm:$0xff] %vm98, %v2175
      %2184 = vst.msk [vmem:[#allocation4 + $0x13] sm:$0x7] %vm227, %v2176
      %s2185 = sld [smem:[#allocation9 + $0x32]]
      %v2186 = vld [vmem:[#allocation4] sm:$0xff]
      %v2187 = vld [vmem:[#allocation4 + $0x8] sm:$0xff]
      %v2188 = vstv %s2185
      %v2189 = vmul.f32 %v2188, %v2186
      %v2190 = vmul.f32 %v2188, %v2187
      %s2191 = sld [smem:[#allocation9 + $0x39]]
      %v2192 = vld [vmem:[#allocation4 + $0x1] sm:$0xff]
      %v2193 = vld [vmem:[#allocation4 + $0x9] sm:$0xff]
      %v2194 = vstv %s2191
      %v2195 = vmul.f32 %v2194, %v2192
      %v2196 = vmul.f32 %v2194, %v2193
      %v2197 = vadd.f32 %v2189, %v2195
      %v2198 = vadd.f32 %v2190, %v2196
      %s2199 = sld [smem:[#allocation9 + $0x40]]
      %v2200 = vld [vmem:[#allocation4 + $0x2] sm:$0xff]
      %v2201 = vld [vmem:[#allocation4 + $0xa] sm:$0xff]
      %v2202 = vstv %s2199
      %v2203 = vmul.f32 %v2202, %v2200
      %v2204 = vmul.f32 %v2202, %v2201
      %v2205 = vadd.f32 %v2197, %v2203
      %v2206 = vadd.f32 %v2198, %v2204
      %s2207 = sld [smem:[#allocation9 + $0x47]]
      %v2208 = vld [vmem:[#allocation4 + $0x3] sm:$0xff]
      %v2209 = vld [vmem:[#allocation4 + $0xb] sm:$0xff]
      %v2210 = vstv %s2207
      %v2211 = vmul.f32 %v2210, %v2208
      %v2212 = vmul.f32 %v2210, %v2209
      %v2213 = vadd.f32 %v2205, %v2211
      %v2214 = vadd.f32 %v2206, %v2212
      %s2215 = sld [smem:[#allocation9 + $0x4e]]
      %v2216 = vld [vmem:[#allocation4 + $0x4] sm:$0xff]
      %v2217 = vld [vmem:[#allocation4 + $0xc] sm:$0xff]
      %v2218 = vstv %s2215
      %v2219 = vmul.f32 %v2218, %v2216
      %v2220 = vmul.f32 %v2218, %v2217
      %v2221 = vadd.f32 %v2213, %v2219
      %v2222 = vadd.f32 %v2214, %v2220
      %s2223 = sld [smem:[#allocation9 + $0x55]]
      %v2224 = vld [vmem:[#allocation4 + $0x5] sm:$0xff]
      %v2225 = vld [vmem:[#allocation4 + $0xd] sm:$0xff]
      %v2226 = vstv %s2223
      %v2227 = vmul.f32 %v2226, %v2224
      %v2228 = vmul.f32 %v2226, %v2225
      %v2229 = vadd.f32 %v2221, %v2227
      %v2230 = vadd.f32 %v2222, %v2228
      %s2231 = sld [smem:[#allocation9 + $0x5c]]
      %v2232 = vld [vmem:[#allocation4 + $0x6] sm:$0xff]
      %v2233 = vld [vmem:[#allocation4 + $0xe] sm:$0xff]
      %v2234 = vstv %s2231
      %v2235 = vmul.f32 %v2234, %v2232
      %v2236 = vmul.f32 %v2234, %v2233
      %v2237 = vadd.f32 %v2229, %v2235
      %v2238 = vadd.f32 %v2230, %v2236
      %v2239 = vadd.f32 %v2139, %v2237
      %v2240 = vadd.f32 %v2140, %v2238
      %v2241 = vld [vmem:[%s2040] sm:$0xe0]
      %v2242 = vld [vmem:[%s2040 + $0x8] sm:$0xe0]
      %v2243 = vld [vmem:[%s2040 + $0x10] sm:$0xff]
      %v2244 = vld [vmem:[%s2040 + $0x18] sm:$0xff]
      %v2245 = vld [vmem:[%s2040 + $0x20] sm:$0xff]
      %v2246 = vld [vmem:[%s2040 + $0x28] sm:$0xff]
      %v2247 = vld [vmem:[%s2040 + $0x30] sm:$0x7]
      %v2248 = vld [vmem:[%s2040 + $0x38] sm:$0x7]
      %2257 = vrot.lane.b32.xlu0 %v2241, 1
      %v2258 = vpop.permute.xlu0 %2257
      %2259 = vrot.lane.b32.xlu0 %v2242, 1
      %v2260 = vpop.permute.xlu0 %2259
      %2261 = vrot.lane.b32.xlu0 %v2243, 1
      %v2262 = vpop.permute.xlu0 %2261
      %2263 = vrot.lane.b32.xlu0 %v2244, 1
      %v2264 = vpop.permute.xlu0 %2263
      %2265 = vrot.lane.b32.xlu0 %v2245, 1
      %v2266 = vpop.permute.xlu0 %2265
      %2267 = vrot.lane.b32.xlu0 %v2246, 1
      %v2268 = vpop.permute.xlu0 %2267
      %2269 = vrot.lane.b32.xlu0 %v2247, 1
      %v2270 = vpop.permute.xlu0 %2269
      %2271 = vrot.lane.b32.xlu0 %v2248, 1
      %v2272 = vpop.permute.xlu0 %2271
      %v2273 = vsel %vm418, %v2258, %v2260
      %v2274 = vsel %vm418, %v2262, %v2264
      %v2275 = vsel %vm418, %v2266, %v2268
      %v2276 = vsel %vm418, %v2270, %v2272
      %2281 = vst.msk [vmem:[#allocation4 - $0x5] sm:$0xe0] %vm223, %v2273
      %2282 = vst.msk [vmem:[#allocation4 + $0x3] sm:$0xff] %vm98, %v2274
      %2283 = vst.msk [vmem:[#allocation4 + $0xb] sm:$0xff] %vm98, %v2275
      %2284 = vst.msk [vmem:[#allocation4 + $0x13] sm:$0x7] %vm227, %v2276
      %s2285 = sld [smem:[#allocation9 + $0x33]]
      %v2286 = vld [vmem:[#allocation4] sm:$0xff]
      %v2287 = vld [vmem:[#allocation4 + $0x8] sm:$0xff]
      %v2288 = vstv %s2285
      %v2289 = vmul.f32 %v2288, %v2286
      %v2290 = vmul.f32 %v2288, %v2287
      %s2291 = sld [smem:[#allocation9 + $0x3a]]
      %v2292 = vld [vmem:[#allocation4 + $0x1] sm:$0xff]
      %v2293 = vld [vmem:[#allocation4 + $0x9] sm:$0xff]
      %v2294 = vstv %s2291
      %v2295 = vmul.f32 %v2294, %v2292
      %v2296 = vmul.f32 %v2294, %v2293
      %v2297 = vadd.f32 %v2289, %v2295
      %v2298 = vadd.f32 %v2290, %v2296
      %s2299 = sld [smem:[#allocation9 + $0x41]]
      %v2300 = vld [vmem:[#allocation4 + $0x2] sm:$0xff]
      %v2301 = vld [vmem:[#allocation4 + $0xa] sm:$0xff]
      %v2302 = vstv %s2299
      %v2303 = vmul.f32 %v2302, %v2300
      %v2304 = vmul.f32 %v2302, %v2301
      %v2305 = vadd.f32 %v2297, %v2303
      %v2306 = vadd.f32 %v2298, %v2304
      %s2307 = sld [smem:[#allocation9 + $0x48]]
      %v2308 = vld [vmem:[#allocation4 + $0x3] sm:$0xff]
      %v2309 = vld [vmem:[#allocation4 + $0xb] sm:$0xff]
      %v2310 = vstv %s2307
      %v2311 = vmul.f32 %v2310, %v2308
      %v2312 = vmul.f32 %v2310, %v2309
      %v2313 = vadd.f32 %v2305, %v2311
      %v2314 = vadd.f32 %v2306, %v2312
      %s2315 = sld [smem:[#allocation9 + $0x4f]]
      %v2316 = vld [vmem:[#allocation4 + $0x4] sm:$0xff]
      %v2317 = vld [vmem:[#allocation4 + $0xc] sm:$0xff]
      %v2318 = vstv %s2315
      %v2319 = vmul.f32 %v2318, %v2316
      %v2320 = vmul.f32 %v2318, %v2317
      %v2321 = vadd.f32 %v2313, %v2319
      %v2322 = vadd.f32 %v2314, %v2320
      %s2323 = sld [smem:[#allocation9 + $0x56]]
      %v2324 = vld [vmem:[#allocation4 + $0x5] sm:$0xff]
      %v2325 = vld [vmem:[#allocation4 + $0xd] sm:$0xff]
      %v2326 = vstv %s2323
      %v2327 = vmul.f32 %v2326, %v2324
      %v2328 = vmul.f32 %v2326, %v2325
      %v2329 = vadd.f32 %v2321, %v2327
      %v2330 = vadd.f32 %v2322, %v2328
      %s2331 = sld [smem:[#allocation9 + $0x5d]]
      %v2332 = vld [vmem:[#allocation4 + $0x6] sm:$0xff]
      %v2333 = vld [vmem:[#allocation4 + $0xe] sm:$0xff]
      %v2334 = vstv %s2331
      %v2335 = vmul.f32 %v2334, %v2332
      %v2336 = vmul.f32 %v2334, %v2333
      %v2337 = vadd.f32 %v2329, %v2335
      %v2338 = vadd.f32 %v2330, %v2336
      %v2339 = vadd.f32 %v2239, %v2337
      %v2340 = vadd.f32 %v2240, %v2338
      %v2341 = vld [vmem:[%s2040 + $0x8] sm:$0xe0]
      %v2342 = vld [vmem:[%s2040 + $0x18] sm:$0xff]
      %v2343 = vld [vmem:[%s2040 + $0x28] sm:$0xff]
      %v2344 = vld [vmem:[%s2040 + $0x38] sm:$0x7]
      %2345 = vst.msk [vmem:[#allocation4 - $0x5] sm:$0xe0] %vm223, %v2341
      %2346 = vst.msk [vmem:[#allocation4 + $0x3] sm:$0xff] %vm98, %v2342
      %2347 = vst.msk [vmem:[#allocation4 + $0xb] sm:$0xff] %vm98, %v2343
      %2348 = vst.msk [vmem:[#allocation4 + $0x13] sm:$0x7] %vm227, %v2344
      %s2349 = sld [smem:[#allocation9 + $0x34]]
      %v2350 = vld [vmem:[#allocation4] sm:$0xff]
      %v2351 = vld [vmem:[#allocation4 + $0x8] sm:$0xff]
      %v2352 = vstv %s2349
      %v2353 = vmul.f32 %v2352, %v2350
      %v2354 = vmul.f32 %v2352, %v2351
      %s2355 = sld [smem:[#allocation9 + $0x3b]]
      %v2356 = vld [vmem:[#allocation4 + $0x1] sm:$0xff]
      %v2357 = vld [vmem:[#allocation4 + $0x9] sm:$0xff]
      %v2358 = vstv %s2355
      %v2359 = vmul.f32 %v2358, %v2356
      %v2360 = vmul.f32 %v2358, %v2357
      %v2361 = vadd.f32 %v2353, %v2359
      %v2362 = vadd.f32 %v2354, %v2360
      %s2363 = sld [smem:[#allocation9 + $0x42]]
      %v2364 = vld [vmem:[#allocation4 + $0x2] sm:$0xff]
      %v2365 = vld [vmem:[#allocation4 + $0xa] sm:$0xff]
      %v2366 = vstv %s2363
      %v2367 = vmul.f32 %v2366, %v2364
      %v2368 = vmul.f32 %v2366, %v2365
      %v2369 = vadd.f32 %v2361, %v2367
      %v2370 = vadd.f32 %v2362, %v2368
      %s2371 = sld [smem:[#allocation9 + $0x49]]
      %v2372 = vld [vmem:[#allocation4 + $0x3] sm:$0xff]
      %v2373 = vld [vmem:[#allocation4 + $0xb] sm:$0xff]
      %v2374 = vstv %s2371
      %v2375 = vmul.f32 %v2374, %v2372
      %v2376 = vmul.f32 %v2374, %v2373
      %v2377 = vadd.f32 %v2369, %v2375
      %v2378 = vadd.f32 %v2370, %v2376
      %s2379 = sld [smem:[#allocation9 + $0x50]]
      %v2380 = vld [vmem:[#allocation4 + $0x4] sm:$0xff]
      %v2381 = vld [vmem:[#allocation4 + $0xc] sm:$0xff]
      %v2382 = vstv %s2379
      %v2383 = vmul.f32 %v2382, %v2380
      %v2384 = vmul.f32 %v2382, %v2381
      %v2385 = vadd.f32 %v2377, %v2383
      %v2386 = vadd.f32 %v2378, %v2384
      %s2387 = sld [smem:[#allocation9 + $0x57]]
      %v2388 = vld [vmem:[#allocation4 + $0x5] sm:$0xff]
      %v2389 = vld [vmem:[#allocation4 + $0xd] sm:$0xff]
      %v2390 = vstv %s2387
      %v2391 = vmul.f32 %v2390, %v2388
      %v2392 = vmul.f32 %v2390, %v2389
      %v2393 = vadd.f32 %v2385, %v2391
      %v2394 = vadd.f32 %v2386, %v2392
      %s2395 = sld [smem:[#allocation9 + $0x5e]]
      %v2396 = vld [vmem:[#allocation4 + $0x6] sm:$0xff]
      %v2397 = vld [vmem:[#allocation4 + $0xe] sm:$0xff]
      %v2398 = vstv %s2395
      %v2399 = vmul.f32 %v2398, %v2396
      %v2400 = vmul.f32 %v2398, %v2397
      %v2401 = vadd.f32 %v2393, %v2399
      %v2402 = vadd.f32 %v2394, %v2400
      %v2403 = vadd.f32 %v2339, %v2401
      %v2404 = vadd.f32 %v2340, %v2402
      %v2405 = vld [vmem:[%s2040 + $0x8] sm:$0xe0]
      %v2406 = vld [vmem:[%s2040 + $0x18] sm:$0xff]
      %v2407 = vld [vmem:[%s2040 + $0x28] sm:$0xff]
      %v2408 = vld [vmem:[%s2040 + $0x38] sm:$0x7]
      %2413 = vrot.lane.b32.xlu0 %v2405, 127
      %v2414 = vpop.permute.xlu0 %2413
      %2415 = vrot.lane.b32.xlu0 %v2406, 127
      %v2416 = vpop.permute.xlu0 %2415
      %2417 = vrot.lane.b32.xlu0 %v2407, 127
      %v2418 = vpop.permute.xlu0 %2417
      %2419 = vrot.lane.b32.xlu0 %v2408, 127
      %v2420 = vpop.permute.xlu0 %2419
      %2425 = vst.msk [vmem:[#allocation4 - $0x5] sm:$0xe0] %vm223, %v2414
      %2426 = vst.msk [vmem:[#allocation4 + $0x3] sm:$0xff] %vm98, %v2416
      %2427 = vst.msk [vmem:[#allocation4 + $0xb] sm:$0xff] %vm98, %v2418
      %2428 = vst.msk [vmem:[#allocation4 + $0x13] sm:$0x7] %vm227, %v2420
      %s2429 = sld [smem:[#allocation9 + $0x35]]
      %v2430 = vld [vmem:[#allocation4] sm:$0xff]
      %v2431 = vld [vmem:[#allocation4 + $0x8] sm:$0xff]
      %v2432 = vstv %s2429
      %v2433 = vmul.f32 %v2432, %v2430
      %v2434 = vmul.f32 %v2432, %v2431
      %s2435 = sld [smem:[#allocation9 + $0x3c]]
      %v2436 = vld [vmem:[#allocation4 + $0x1] sm:$0xff]
      %v2437 = vld [vmem:[#allocation4 + $0x9] sm:$0xff]
      %v2438 = vstv %s2435
      %v2439 = vmul.f32 %v2438, %v2436
      %v2440 = vmul.f32 %v2438, %v2437
      %v2441 = vadd.f32 %v2433, %v2439
      %v2442 = vadd.f32 %v2434, %v2440
      %s2443 = sld [smem:[#allocation9 + $0x43]]
      %v2444 = vld [vmem:[#allocation4 + $0x2] sm:$0xff]
      %v2445 = vld [vmem:[#allocation4 + $0xa] sm:$0xff]
      %v2446 = vstv %s2443
      %v2447 = vmul.f32 %v2446, %v2444
      %v2448 = vmul.f32 %v2446, %v2445
      %v2449 = vadd.f32 %v2441, %v2447
      %v2450 = vadd.f32 %v2442, %v2448
      %s2451 = sld [smem:[#allocation9 + $0x4a]]
      %v2452 = vld [vmem:[#allocation4 + $0x3] sm:$0xff]
      %v2453 = vld [vmem:[#allocation4 + $0xb] sm:$0xff]
      %v2454 = vstv %s2451
      %v2455 = vmul.f32 %v2454, %v2452
      %v2456 = vmul.f32 %v2454, %v2453
      %v2457 = vadd.f32 %v2449, %v2455
      %v2458 = vadd.f32 %v2450, %v2456
      %s2459 = sld [smem:[#allocation9 + $0x51]]
      %v2460 = vld [vmem:[#allocation4 + $0x4] sm:$0xff]
      %v2461 = vld [vmem:[#allocation4 + $0xc] sm:$0xff]
      %v2462 = vstv %s2459
      %v2463 = vmul.f32 %v2462, %v2460
      %v2464 = vmul.f32 %v2462, %v2461
      %v2465 = vadd.f32 %v2457, %v2463
      %v2466 = vadd.f32 %v2458, %v2464
      %s2467 = sld [smem:[#allocation9 + $0x58]]
      %v2468 = vld [vmem:[#allocation4 + $0x5] sm:$0xff]
      %v2469 = vld [vmem:[#allocation4 + $0xd] sm:$0xff]
      %v2470 = vstv %s2467
      %v2471 = vmul.f32 %v2470, %v2468
      %v2472 = vmul.f32 %v2470, %v2469
      %v2473 = vadd.f32 %v2465, %v2471
      %v2474 = vadd.f32 %v2466, %v2472
      %s2475 = sld [smem:[#allocation9 + $0x5f]]
      %v2476 = vld [vmem:[#allocation4 + $0x6] sm:$0xff]
      %v2477 = vld [vmem:[#allocation4 + $0xe] sm:$0xff]
      %v2478 = vstv %s2475
      %v2479 = vmul.f32 %v2478, %v2476
      %v2480 = vmul.f32 %v2478, %v2477
      %v2481 = vadd.f32 %v2473, %v2479
      %v2482 = vadd.f32 %v2474, %v2480
      %v2483 = vadd.f32 %v2403, %v2481
      %v2484 = vadd.f32 %v2404, %v2482
      %v2485 = vld [vmem:[%s2040 + $0x8] sm:$0xe0]
      %v2486 = vld [vmem:[%s2040 + $0x18] sm:$0xff]
      %v2487 = vld [vmem:[%s2040 + $0x28] sm:$0xff]
      %v2488 = vld [vmem:[%s2040 + $0x38] sm:$0x7]
      %2493 = vrot.lane.b32.xlu0 %v2485, 126
      %v2494 = vpop.permute.xlu0 %2493
      %2495 = vrot.lane.b32.xlu0 %v2486, 126
      %v2496 = vpop.permute.xlu0 %2495
      %2497 = vrot.lane.b32.xlu0 %v2487, 126
      %v2498 = vpop.permute.xlu0 %2497
      %2499 = vrot.lane.b32.xlu0 %v2488, 126
      %v2500 = vpop.permute.xlu0 %2499
      %2505 = vst.msk [vmem:[#allocation4 - $0x5] sm:$0xe0] %vm223, %v2494
      %2506 = vst.msk [vmem:[#allocation4 + $0x3] sm:$0xff] %vm98, %v2496
      %2507 = vst.msk [vmem:[#allocation4 + $0xb] sm:$0xff] %vm98, %v2498
      %2508 = vst.msk [vmem:[#allocation4 + $0x13] sm:$0x7] %vm227, %v2500
      %s2509 = sld [smem:[#allocation9 + $0x36]]
      %v2510 = vld [vmem:[#allocation4] sm:$0xff]
      %v2511 = vld [vmem:[#allocation4 + $0x8] sm:$0xff]
      %v2512 = vstv %s2509
      %v2513 = vmul.f32 %v2512, %v2510
      %v2514 = vmul.f32 %v2512, %v2511
      %s2515 = sld [smem:[#allocation9 + $0x3d]]
      %v2516 = vld [vmem:[#allocation4 + $0x1] sm:$0xff]
      %v2517 = vld [vmem:[#allocation4 + $0x9] sm:$0xff]
      %v2518 = vstv %s2515
      %v2519 = vmul.f32 %v2518, %v2516
      %v2520 = vmul.f32 %v2518, %v2517
      %v2521 = vadd.f32 %v2513, %v2519
      %v2522 = vadd.f32 %v2514, %v2520
      %s2523 = sld [smem:[#allocation9 + $0x44]]
      %v2524 = vld [vmem:[#allocation4 + $0x2] sm:$0xff]
      %v2525 = vld [vmem:[#allocation4 + $0xa] sm:$0xff]
      %v2526 = vstv %s2523
      %v2527 = vmul.f32 %v2526, %v2524
      %v2528 = vmul.f32 %v2526, %v2525
      %v2529 = vadd.f32 %v2521, %v2527
      %v2530 = vadd.f32 %v2522, %v2528
      %s2531 = sld [smem:[#allocation9 + $0x4b]]
      %v2532 = vld [vmem:[#allocation4 + $0x3] sm:$0xff]
      %v2533 = vld [vmem:[#allocation4 + $0xb] sm:$0xff]
      %v2534 = vstv %s2531
      %v2535 = vmul.f32 %v2534, %v2532
      %v2536 = vmul.f32 %v2534, %v2533
      %v2537 = vadd.f32 %v2529, %v2535
      %v2538 = vadd.f32 %v2530, %v2536
      %s2539 = sld [smem:[#allocation9 + $0x52]]
      %v2540 = vld [vmem:[#allocation4 + $0x4] sm:$0xff]
      %v2541 = vld [vmem:[#allocation4 + $0xc] sm:$0xff]
      %v2542 = vstv %s2539
      %v2543 = vmul.f32 %v2542, %v2540
      %v2544 = vmul.f32 %v2542, %v2541
      %v2545 = vadd.f32 %v2537, %v2543
      %v2546 = vadd.f32 %v2538, %v2544
      %s2547 = sld [smem:[#allocation9 + $0x59]]
      %v2548 = vld [vmem:[#allocation4 + $0x5] sm:$0xff]
      %v2549 = vld [vmem:[#allocation4 + $0xd] sm:$0xff]
      %v2550 = vstv %s2547
      %v2551 = vmul.f32 %v2550, %v2548
      %v2552 = vmul.f32 %v2550, %v2549
      %v2553 = vadd.f32 %v2545, %v2551
      %v2554 = vadd.f32 %v2546, %v2552
      %s2555 = sld [smem:[#allocation9 + $0x60]]
      %v2556 = vld [vmem:[#allocation4 + $0x6] sm:$0xff]
      %v2557 = vld [vmem:[#allocation4 + $0xe] sm:$0xff]
      %v2558 = vstv %s2555
      %v2559 = vmul.f32 %v2558, %v2556
      %v2560 = vmul.f32 %v2558, %v2557
      %v2561 = vadd.f32 %v2553, %v2559
      %v2562 = vadd.f32 %v2554, %v2560
      %v2563 = vadd.f32 %v2483, %v2561
      %v2564 = vadd.f32 %v2484, %v2562
      %v2565 = vld [vmem:[%s2040 + $0x8] sm:$0xe0]
      %v2566 = vld [vmem:[%s2040 + $0x18] sm:$0xff]
      %v2567 = vld [vmem:[%s2040 + $0x28] sm:$0xff]
      %v2568 = vld [vmem:[%s2040 + $0x38] sm:$0x7]
      %2573 = vrot.lane.b32.xlu0 %v2565, 125
      %v2574 = vpop.permute.xlu0 %2573
      %2575 = vrot.lane.b32.xlu0 %v2566, 125
      %v2576 = vpop.permute.xlu0 %2575
      %2577 = vrot.lane.b32.xlu0 %v2567, 125
      %v2578 = vpop.permute.xlu0 %2577
      %2579 = vrot.lane.b32.xlu0 %v2568, 125
      %v2580 = vpop.permute.xlu0 %2579
      %2585 = vst.msk [vmem:[#allocation4 - $0x5] sm:$0xe0] %vm223, %v2574
      %2586 = vst.msk [vmem:[#allocation4 + $0x3] sm:$0xff] %vm98, %v2576
      %2587 = vst.msk [vmem:[#allocation4 + $0xb] sm:$0xff] %vm98, %v2578
      %2588 = vst.msk [vmem:[#allocation4 + $0x13] sm:$0x7] %vm227, %v2580
      %s2589 = sld [smem:[#allocation9 + $0x37]]
      %v2590 = vld [vmem:[#allocation4] sm:$0xff]
      %v2591 = vld [vmem:[#allocation4 + $0x8] sm:$0xff]
      %v2592 = vstv %s2589
      %v2593 = vmul.f32 %v2592, %v2590
      %v2594 = vmul.f32 %v2592, %v2591
      %s2595 = sld [smem:[#allocation9 + $0x3e]]
      %v2596 = vld [vmem:[#allocation4 + $0x1] sm:$0xff]
      %v2597 = vld [vmem:[#allocation4 + $0x9] sm:$0xff]
      %v2598 = vstv %s2595
      %v2599 = vmul.f32 %v2598, %v2596
      %v2600 = vmul.f32 %v2598, %v2597
      %v2601 = vadd.f32 %v2593, %v2599
      %v2602 = vadd.f32 %v2594, %v2600
      %s2603 = sld [smem:[#allocation9 + $0x45]]
      %v2604 = vld [vmem:[#allocation4 + $0x2] sm:$0xff]
      %v2605 = vld [vmem:[#allocation4 + $0xa] sm:$0xff]
      %v2606 = vstv %s2603
      %v2607 = vmul.f32 %v2606, %v2604
      %v2608 = vmul.f32 %v2606, %v2605
      %v2609 = vadd.f32 %v2601, %v2607
      %v2610 = vadd.f32 %v2602, %v2608
      %s2611 = sld [smem:[#allocation9 + $0x4c]]
      %v2612 = vld [vmem:[#allocation4 + $0x3] sm:$0xff]
      %v2613 = vld [vmem:[#allocation4 + $0xb] sm:$0xff]
      %v2614 = vstv %s2611
      %v2615 = vmul.f32 %v2614, %v2612
      %v2616 = vmul.f32 %v2614, %v2613
      %v2617 = vadd.f32 %v2609, %v2615
      %v2618 = vadd.f32 %v2610, %v2616
      %s2619 = sld [smem:[#allocation9 + $0x53]]
      %v2620 = vld [vmem:[#allocation4 + $0x4] sm:$0xff]
      %v2621 = vld [vmem:[#allocation4 + $0xc] sm:$0xff]
      %v2622 = vstv %s2619
      %v2623 = vmul.f32 %v2622, %v2620
      %v2624 = vmul.f32 %v2622, %v2621
      %v2625 = vadd.f32 %v2617, %v2623
      %v2626 = vadd.f32 %v2618, %v2624
      %s2627 = sld [smem:[#allocation9 + $0x5a]]
      %v2628 = vld [vmem:[#allocation4 + $0x5] sm:$0xff]
      %v2629 = vld [vmem:[#allocation4 + $0xd] sm:$0xff]
      %v2630 = vstv %s2627
      %v2631 = vmul.f32 %v2630, %v2628
      %v2632 = vmul.f32 %v2630, %v2629
      %v2633 = vadd.f32 %v2625, %v2631
      %v2634 = vadd.f32 %v2626, %v2632
      %s2635 = sld [smem:[#allocation9 + $0x61]]
      %v2636 = vld [vmem:[#allocation4 + $0x6] sm:$0xff]
      %v2637 = vld [vmem:[#allocation4 + $0xe] sm:$0xff]
      %v2638 = vstv %s2635
      %v2639 = vmul.f32 %v2638, %v2636
      %v2640 = vmul.f32 %v2638, %v2637
      %v2641 = vadd.f32 %v2633, %v2639
      %v2642 = vadd.f32 %v2634, %v2640
      %v2643 = vadd.f32 %v2563, %v2641
      %v2644 = vadd.f32 %v2564, %v2642
      %v2645 = vxor.u32 %v2643, 2147483648
      %v2646 = vxor.u32 %v2644, 2147483648
      %v2647 = vmul.f32 %v2645, 1.442695
      %v2648 = vpow.pop %v2647
      %v2649 = vmul.f32 %v2646, 1.442695
      %v2650 = vpow.pop %v2649
      %v2651 = vadd.f32 %v2648, 1.0
      %v2652 = vadd.f32 %v2650, 1.0
      %v2653 = vrcp.pop %v2651
      %v2654 = vmul.f32 %v2651, %v2653
      %v2655 = vsub.f32 1.0, %v2654
      %v2656 = vmul.f32 %v2653, %v2655
      %v2657 = vadd.f32 %v2653, %v2656
      %vm2658 = vweird.f32 %v2651
      %vm2659 = vweird.f32 %v2653
      %vm2660 = vmor %vm2658, %vm2659
      %v2661 = vsel %vm2660, %v2653, %v2657
      %v2662 = vand.u32 2147483647, %v2651
      %vm2663 = vcmp.eq.f32.partialorder %v2662, 8.507059e+37
      %v2664 = vand.u32 %v2651, 2147483648
      %v2665 = vor.u32 1.1754944e-38, %v2664
      %v2666 = vsel %vm2663, %v2665, %v2661
      %v2667 = vmul.f32 1.0, %v2666
      %v2668 = vrcp.pop %v2652
      %v2669 = vmul.f32 %v2652, %v2668
      %v2670 = vsub.f32 1.0, %v2669
      %v2671 = vmul.f32 %v2668, %v2670
      %v2672 = vadd.f32 %v2668, %v2671
      %vm2673 = vweird.f32 %v2652
      %vm2674 = vweird.f32 %v2668
      %vm2675 = vmor %vm2673, %vm2674
      %v2676 = vsel %vm2675, %v2668, %v2672
      %v2677 = vand.u32 2147483647, %v2652
      %vm2678 = vcmp.eq.f32.partialorder %v2677, 8.507059e+37
      %v2679 = vand.u32 %v2652, 2147483648
      %v2680 = vor.u32 1.1754944e-38, %v2679
      %v2681 = vsel %vm2678, %v2680, %v2676
      %v2682 = vmul.f32 1.0, %v2681
      %s2683 = scalar_lea.vmem [#allocation10], 16
      %2684 = vst.msk [vmem:[%s2683] sm:$0xff] %vm98, %v2667
      %2685 = vst.msk [vmem:[%s2683 + $0x8] sm:$0xff] %vm98, %v2682
    $region25: #{tpu_custom_call.1} parent=1 // pred_fallthru
      _
    // Predicated region
    $region26: #{tpu_custom_call.1} parent=1 // pred_check
      _
    $region27: #{tpu_custom_call.1} parent=1 // pred_check_branch
      %2687 = sbr.rel (0) target = $region29
    $region28: #{tpu_custom_call.1} parent=1 // pred_region
      %2689 = vsyncadd [#allocation7], 0
      %s2690 = sshll.u32 [#allocation10], 4
      %s2691 = int_to_ptr.vmem [resolvable:$true] %s2690
      %s2692 = sshll.u32 %s2, 4
      %s2693 = int_to_ptr.hbm [resolvable:$true] %s2692
      %2698 = dma.vmem_to_hbm [thread:$0]  %s2691, 512, %s2693, [#allocation7], 128, 128, 8
    $region29: #{tpu_custom_call.1} parent=1 // pred_fallthru
      _
    // Predicated region
    $region30: #{tpu_custom_call.1} parent=1 // pred_check
      _
    $region31: #{tpu_custom_call.1} parent=1 // pred_check_branch
      %2700 = sbr.rel (0) target = $region33
    $region32: #{tpu_custom_call.1} parent=1 // pred_region
      %2702 = dma.done [#allocation7], 512
    $region33: #{tpu_custom_call.1} parent=1 // pred_fallthru
      _
    %2703 = vsyncpa [#allocation6], 1
    %2704 = vsyncpa [#allocation7], 1
    %2705 = vsyncpa [#allocation8], 1

</llo_original>
